<compile_context>
chip_gen: v7x
topology: tpu7x:2x2x1
jax: 0.10.0
libtpu: 0.0.40
codegen_flags: <defaults>
</compile_context>

<pallas_src>
import functools
import math

import jax
import jax.numpy as jnp
from jax.experimental import pallas as pl
from jax.experimental.pallas import tpu as pltpu


def _round_up(x, m):
    return (x + m - 1) // m * m


# ----------------------------- Pallas kernel --------------------------------
def _kan_linear_kernel(x_ref, grid_ref, recip_ref, w_ref, o_ref, *scratch,
                       n_grid_pts, spline_order, in_p):
    """One (batch tile, out tile) step of KANLinear.forward.

    x_ref:      (tm, in_p)                padded input tile (f32)
    grid_ref:   (NG, in_p)                knot grid (transposed), constant block
    recip_ref:  (K*2*(NG-2), in_p)        precomputed 1/knot-differences
    w_ref:      ((1+GK)*in_p, tn)         fused [base_wt ; scaled_spline_wt] tile
    o_ref:      (tm, tn)                  output tile
    scratch[0]: (tm, NG*in_p) f32 VMEM    [silu | Cox-de Boor workspace]
    scratch[1]: (tm, (1+GK)*in_p) bf16    operand staging (bf16 path only)
    """
    ng = n_grid_pts
    K = spline_order
    gk = ng - 1 - K                          # grid_size + spline_order
    nr = ng - 2                              # rows per (k, side) slab in recip

    work_ref = scratch[0]
    op_ref = scratch[1] if len(scratch) > 1 else None

    # ---- operand staging: once per batch tile (first out tile only) --------
    @pl.when(pl.program_id(1) == 0)
    def _stage_operand():
        x = x_ref[...]                                        # (tm, in_p)

        # SiLU(x) -> operand block 0 (hoisted out of the out-tile loop).
        work_ref[:, 0:in_p] = x * pl.reciprocal(1.0 + jnp.exp(-x), approx=True)

        # Knot rows loaded directly as (1, in_p) slices (no XLU row extract).
        g_rows = [grid_ref[pl.ds(j, 1), :] for j in range(ng)]

        # degree-0 bases into workspace blocks 1 .. ng-1
        for j in range(ng - 1):
            b0 = ((x >= g_rows[j]) & (x < g_rows[j + 1])).astype(jnp.float32)
            work_ref[:, (1 + j) * in_p:(2 + j) * in_p] = b0

        # Cox-de Boor recursion, in place (ascending j is hazard-free).
        # Divides replaced by precomputed reciprocals; b_{j+1} carried in a
        # Python variable so each slab is read from VMEM once per degree.
        for k in range(1, K + 1):
            b_j = work_ref[:, in_p:2 * in_p]
            for j in range(ng - k - 1):
                b_j1 = work_ref[:, (2 + j) * in_p:(3 + j) * in_p]
                inv_dl = recip_ref[pl.ds(((k - 1) * 2 + 0) * nr + j, 1), :]
                inv_dr = recip_ref[pl.ds(((k - 1) * 2 + 1) * nr + j, 1), :]
                new = ((x - g_rows[j]) * inv_dl * b_j
                       + (g_rows[j + k + 1] - x) * inv_dr * b_j1)
                work_ref[:, (1 + j) * in_p:(2 + j) * in_p] = new
                b_j = b_j1

        # bf16 path: cast the fused [silu | bases] slab once per batch tile.
        if op_ref is not None:
            op_ref[...] = work_ref[:, :(1 + gk) * in_p].astype(op_ref.dtype)

    # ---- single fused MXU matmul per out tile --------------------------------
    if op_ref is not None:
        operand = op_ref[...]
    else:
        operand = work_ref[:, :(1 + gk) * in_p]
    o_ref[...] = jnp.dot(operand, w_ref[...],
                         preferred_element_type=jnp.float32).astype(o_ref.dtype)


# ------------------------------- Wrapper -------------------------------------
def kan_linear_forward(x, grid, base_weight, spline_weight, spline_scaler, *,
                       spline_order, tm=256, tn=None, use_bf16_matmul=True):
    """Pallas implementation of KANLinear.forward.

    x:             (B, in_features)
    grid:          (in_features, NG)   NG = grid_size + 2*spline_order + 1
    base_weight:   (out_features, in_features)
    spline_weight: (out_features, in_features, GK)  GK = grid_size + spline_order
    spline_scaler: (out_features, in_features)   (pass ones if standalone scale
                                                  is disabled)
    returns:       (B, out_features) float32

    use_bf16_matmul: bf16 MXU operands with f32 accumulation.  Recommended on
    all generations (the v5e MXU is bf16-native; f32 operands are emulated and
    double weight-stream bytes).  Set False for exact-f32 operands.
    """
    B, in_features = x.shape
    out_features = base_weight.shape[0]
    gk = spline_weight.shape[-1]
    ng = grid.shape[-1]
    K = spline_order
    assert ng - 1 - K == gk

    # ---- lane-dense padding (features/outputs -> multiples of 128) ----------
    in_p = _round_up(in_features, 128)
    out_p = _round_up(out_features, 128)

    w_item = 2 if use_bf16_matmul else 4

    # batch tiling (clamp tm to the padded batch; bf16 scratch wants 16-row mult)
    sub = 16 if use_bf16_matmul else 8
    tm = _round_up(min(tm, _round_up(B, sub)), sub)
    B_p = _round_up(B, tm)
    n_bt = B_p // tm

    # per-core VMEM capacity (v7x: 64 MiB/TC; v5e/v6e: 128 MiB)
    try:
        vmem_cap = int(pltpu.get_tpu_info().vmem_capacity_bytes)
    except Exception:  # pragma: no cover - conservative fallback
        vmem_cap = 64 * 1024 * 1024

    # tn-independent VMEM: double-buffered x tile, constant grid/recip blocks,
    # f32 bases workspace and (bf16 path) the operand staging scratch.
    fixed_vmem = (2 * tm * in_p * 4
                  + 2 * ng * in_p * 4
                  + 2 * K * 2 * (ng - 2) * in_p * 4
                  + tm * ng * in_p * 4)
    if use_bf16_matmul:
        fixed_vmem += tm * (1 + gk) * in_p * 2

    def _tile_vmem(tn_):
        # + double-buffered output tile and double-buffered fused weight slab
        return fixed_vmem + 2 * tm * tn_ * 4 + 2 * (1 + gk) * in_p * tn_ * w_item

    if tn is None:
        budget = int(0.8 * vmem_cap)
        tn = 128
        # Prefer full residency (tn = out_p: weights DMA'd once for the whole
        # kernel), then 256-aligned tiles for the v6e/v7x MXU, then 128.
        for cand in [out_p] + [c for c in (2048, 1024, 768, 512, 384, 256, 128)
                               if c < out_p]:
            if out_p % cand == 0 and _tile_vmem(cand) <= budget:
                tn = cand
                break
    assert out_p % tn == 0 and tn % 128 == 0
    n_ot = out_p // tn

    # ---- padding & parameter prep (plain JAX glue) ---------------------------
    x_p = jnp.pad(x.astype(jnp.float32),
                  ((0, B_p - B), (0, in_p - in_features)))
    grid_p = jnp.pad(grid.astype(jnp.float32),
                     ((0, in_p - in_features), (0, 0)), mode="edge")
    bw_p = jnp.pad(base_weight.astype(jnp.float32),
                   ((0, out_p - out_features), (0, in_p - in_features)))
    sw_p = jnp.pad(spline_weight.astype(jnp.float32),
                   ((0, out_p - out_features), (0, in_p - in_features), (0, 0)))
    ss_p = jnp.pad(spline_scaler.astype(jnp.float32),
                   ((0, out_p - out_features), (0, in_p - in_features)))

    grid_t = grid_p.T                                            # (NG, in_p)
    scaled_sw = sw_p * ss_p[..., None]                           # (out_p,in_p,GK)
    # spline rows: index j*in_p + f  <->  scaled_sw[o, f, j]
    spline_wt = jnp.transpose(scaled_sw, (2, 1, 0)).reshape(gk * in_p, out_p)
    base_wt = bw_p.T                                             # (in_p, out_p)
    # fused weight: [base_wt ; spline_wt] matches the [silu | bases] operand.
    fused_w = jnp.concatenate([base_wt, spline_wt], axis=0)      # ((1+GK)*in_p,out_p)

    # x-independent knot-difference reciprocals (divide -> multiply in-kernel)
    recip_rows = []
    for k in range(1, K + 1):
        inv_dl = 1.0 / (grid_t[k:-1] - grid_t[:-(k + 1)])        # (NG-k-1, in_p)
        inv_dr = 1.0 / (grid_t[k + 1:] - grid_t[1:-k])           # (NG-k-1, in_p)
        pad_rows = (ng - 2) - (ng - k - 1)
        inv_dl = jnp.pad(inv_dl, ((0, pad_rows), (0, 0)), constant_values=1.0)
        inv_dr = jnp.pad(inv_dr, ((0, pad_rows), (0, 0)), constant_values=1.0)
        recip_rows += [inv_dl, inv_dr]
    recip = jnp.concatenate(recip_rows, axis=0)                  # (K*2*(NG-2),in_p)

    op_dtype = jnp.bfloat16 if use_bf16_matmul else jnp.float32
    fused_w = fused_w.astype(op_dtype)

    kernel = functools.partial(_kan_linear_kernel, n_grid_pts=ng,
                               spline_order=K, in_p=in_p)

    scratch_shapes = [pltpu.VMEM((tm, ng * in_p), jnp.float32)]
    if use_bf16_matmul:
        scratch_shapes.append(pltpu.VMEM((tm, (1 + gk) * in_p), jnp.bfloat16))

    grid_spec = pltpu.PrefetchScalarGridSpec(
        num_scalar_prefetch=0,
        grid=(n_bt, n_ot),
        in_specs=[
            pl.BlockSpec((tm, in_p), lambda i, j: (i, 0)),
            pl.BlockSpec((ng, in_p), lambda i, j: (0, 0)),
            pl.BlockSpec((K * 2 * (ng - 2), in_p), lambda i, j: (0, 0)),
            # constant over i when n_ot == 1 -> fused weight resident in VMEM
            pl.BlockSpec(((1 + gk) * in_p, tn), lambda i, j: (0, j)),
        ],
        out_specs=pl.BlockSpec((tm, tn), lambda i, j: (i, j)),
        scratch_shapes=scratch_shapes,
    )

    w_streams = 1 if n_ot == 1 else n_bt
    flops = (2.0 * B_p * (1 + gk) * in_p * out_p      # fused matmul
             + 10.0 * B_p * in_p * ng * K)            # Cox-de Boor (rough)
    bytes_accessed = (4 * B_p * (in_p + out_p)
                      + w_streams * w_item * (1 + gk) * in_p * out_p
                      + 4 * in_p * ng * (1 + 2 * K))
    cost = pl.CostEstimate(flops=int(flops),
                           transcendentals=int(B_p * in_p),
                           bytes_accessed=int(bytes_accessed))

    vmem_limit = max(32 * 1024 * 1024,
                     min(vmem_cap, int(_tile_vmem(tn) * 1.25)))

    out_padded = pl.pallas_call(
        kernel,
        out_shape=jax.ShapeDtypeStruct((B_p, out_p), jnp.float32),
        grid_spec=grid_spec,
        compiler_params=pltpu.CompilerParams(
            dimension_semantics=("parallel", "arbitrary"),
            vmem_limit_bytes=vmem_limit),
        cost_estimate=cost,
    )(x_p, grid_t, recip, fused_w)

    return out_padded[:B, :out_features]


# --------------------------- Pure-JAX reference -------------------------------
def _b_splines_ref(x, grid, spline_order):
    x = x[..., None]                                             # (B, in, 1)
    bases = ((x >= grid[:, :-1]) & (x < grid[:, 1:])).astype(x.dtype)
    for k in range(1, spline_order + 1):
        bases = ((x - grid[:, :-(k + 1)])
                 / (grid[:, k:-1] - grid[:, :-(k + 1)]) * bases[:, :, :-1]
                 + (grid[:, k + 1:] - x)
                 / (grid[:, k + 1:] - grid[:, 1:-k]) * bases[:, :, 1:])
    return bases


def _forward_ref(x, grid, base_weight, spline_weight, spline_scaler, spline_order):
    base = jax.nn.silu(x) @ base_weight.T
    b = _b_splines_ref(x, grid, spline_order).reshape(x.shape[0], -1)
    w = (spline_weight * spline_scaler[..., None]).reshape(base_weight.shape[0], -1)
    return base + b @ w.T


def _make_grid(in_features, grid_size, spline_order, grid_range):
    h = (grid_range[1] - grid_range[0]) / grid_size
    grid_1d = (jnp.arange(-spline_order, grid_size + spline_order + 1,
                          dtype=jnp.float32) * h + grid_range[0])
    return jnp.broadcast_to(grid_1d, (in_features, grid_1d.shape[0]))


def _make_params(key, in_features, out_features, gk):
    k_bw, k_sw, k_ss, k_x = jax.random.split(key, 4)
    bound = 1.0 / math.sqrt(in_features)
    base_weight = jax.random.uniform(
        k_bw, (out_features, in_features), jnp.float32, -bound, bound)
    spline_weight = jax.random.uniform(
        k_sw, (out_features, in_features, gk), jnp.float32, -0.1, 0.1)
    spline_scaler = jax.random.uniform(
        k_ss, (out_features, in_features), jnp.float32, -bound, bound)
    return base_weight, spline_weight, spline_scaler, k_x


# --------------------------------- Main ---------------------------------------
if __name__ == "__main__":
    # Module hyperparameters (KANLinear defaults), small shapes.
    grid_size = 5
    spline_order = 3
    grid_range = [-1.0, 1.0]
    gk = grid_size + spline_order                       # 8

    # TODO(synk): PyTorch init uses kaiming_uniform_ + a curve2coeff lstsq fit;
    #             here parameters are deterministic random with matching shapes.
    key = jax.random.PRNGKey(0)
    k1, k2 = jax.random.split(key)

    # ---- config 1: weight-resident path (out_p fits in one tile) ------------
    in_features, out_features, batch = 32, 16, 64
    grid = _make_grid(in_features, grid_size, spline_order, grid_range)
    base_weight, spline_weight, spline_scaler, k_x = _make_params(
        k1, in_features, out_features, gk)
    x = jax.random.uniform(k_x, (batch, in_features), jnp.float32, -1.0, 1.0)
    ref = _forward_ref(x, grid, base_weight, spline_weight, spline_scaler,
                       spline_order)

    # exact-f32 MXU operands
    out_f32 = kan_linear_forward(x, grid, base_weight, spline_weight,
                                 spline_scaler, spline_order=spline_order,
                                 tm=32, use_bf16_matmul=False)
    out_f32 = jax.block_until_ready(out_f32)
    assert out_f32.shape == (batch, out_features)
    assert jnp.allclose(out_f32, ref, atol=2e-2, rtol=2e-2), (
        float(jnp.max(jnp.abs(out_f32 - ref))))

    # bf16 MXU operands (default path on all generations), f32 accumulation
    out_bf16 = kan_linear_forward(x, grid, base_weight, spline_weight,
                                  spline_scaler, spline_order=spline_order,
                                  tm=32, use_bf16_matmul=True)
    out_bf16 = jax.block_until_ready(out_bf16)
    assert jnp.allclose(out_bf16, ref, atol=5e-2, rtol=5e-2), (
        float(jnp.max(jnp.abs(out_bf16 - ref))))

    # ---- config 2: forced out-feature tiling (n_ot > 1) + batch tiling ------
    in2, out2, batch2 = 40, 200, 48
    grid2 = _make_grid(in2, grid_size, spline_order, grid_range)
    bw2, sw2, ss2, k_x2 = _make_params(k2, in2, out2, gk)
    x2 = jax.random.uniform(k_x2, (batch2, in2), jnp.float32, -1.0, 1.0)
    ref2 = _forward_ref(x2, grid2, bw2, sw2, ss2, spline_order)

    out2_tiled = kan_linear_forward(x2, grid2, bw2, sw2, ss2,
                                    spline_order=spline_order,
                                    tm=32, tn=128, use_bf16_matmul=False)
    out2_tiled = jax.block_until_ready(out2_tiled)
    assert out2_tiled.shape == (batch2, out2)
    assert jnp.allclose(out2_tiled, ref2, atol=2e-2, rtol=2e-2), (
        float(jnp.max(jnp.abs(out2_tiled - ref2))))

    print("KERNEL_OK")
</pallas_src>

<mosaic_0001>
module attributes {stable_mosaic.version = 11 : i64} {
  func.func @_kan_linear_kernel(%arg0: i32, %arg1: i32, %arg2: memref<32x128xf32, #tpu.memory_space<vmem>>, %arg3: memref<12x128xf32, #tpu.memory_space<vmem>>, %arg4: memref<60x128xf32, #tpu.memory_space<vmem>>, %arg5: memref<1152x128xf32, #tpu.memory_space<vmem>>, %arg6: memref<32x128xf32, #tpu.memory_space<vmem>>, %arg7: memref<32x1536xf32, #tpu.memory_space<vmem>>) attributes {dimension_semantics = [#tpu.dimension_semantics<parallel>, #tpu.dimension_semantics<arbitrary>], iteration_bounds = array<i64: 2, 1>, scalar_prefetch = 0 : i64, scratch_operands = 1 : i64, tpu.core_type = #tpu.core_type<tc>, window_params = [{transform_indices = @transform_0, window_bounds = array<i64: 32, 128>}, {pipeline_mode = #tpu.pipeline_mode<synchronous>, transform_indices = @transform_1, window_bounds = array<i64: 12, 128>}, {pipeline_mode = #tpu.pipeline_mode<synchronous>, transform_indices = @transform_2, window_bounds = array<i64: 60, 128>}, {transform_indices = @transform_3, window_bounds = array<i64: 1152, 128>}, {transform_indices = @transform_4, window_bounds = array<i64: 32, 128>}]} {
    %c0_i32 = arith.constant 0 : i32
    %0 = arith.cmpi eq, %arg1, %c0_i32 : i32
    %1 = arith.extui %0 : i1 to i32
    %c0_i32_0 = arith.constant 0 : i32
    %2 = arith.cmpi ne, %1, %c0_i32_0 : i32
    scf.if %2 {
      %c0_6 = arith.constant 0 : index
      %c0_7 = arith.constant 0 : index
      %7 = vector.load %arg2[%c0_6, %c0_7] : memref<32x128xf32, #tpu.memory_space<vmem>>, vector<32x128xf32>
      %cst_8 = arith.constant 0.000000e+00 : f32
      %8 = vector.broadcast %cst_8 : f32 to vector<32x128xf32>
      %9 = arith.subf %8, %7 : vector<32x128xf32>
      %10 = math.exp %9 : vector<32x128xf32>
      %cst_9 = arith.constant 1.000000e+00 : f32
      %11 = vector.broadcast %cst_9 : f32 to vector<32x128xf32>
      %12 = arith.addf %11, %10 : vector<32x128xf32>
      %13 = tpu.reciprocal %12 {approx = true} : vector<32x128xf32> -> vector<32x128xf32>
      %14 = arith.mulf %7, %13 : vector<32x128xf32>
      %c0_10 = arith.constant 0 : index
      %c0_11 = arith.constant 0 : index
      %15 = vector.load %arg7[%c0_10, %c0_11] : memref<32x1536xf32, #tpu.memory_space<vmem>>, vector<32x128xf32>
      tpu.vector_store %arg7[%c0_10, %c0_11], %14 {strides = array<i32>} : memref<32x1536xf32, #tpu.memory_space<vmem>>, vector<32x128xf32>,
      %c0_12 = arith.constant 0 : index
      %c0_13 = arith.constant 0 : index
      %16 = vector.load %arg3[%c0_12, %c0_13] : memref<12x128xf32, #tpu.memory_space<vmem>>, vector<1x128xf32>
      %c1 = arith.constant 1 : index
      %c0_14 = arith.constant 0 : index
      %17 = vector.load %arg3[%c1, %c0_14] : memref<12x128xf32, #tpu.memory_space<vmem>>, vector<1x128xf32>
      %c2 = arith.constant 2 : index
      %c0_15 = arith.constant 0 : index
      %18 = vector.load %arg3[%c2, %c0_15] : memref<12x128xf32, #tpu.memory_space<vmem>>, vector<1x128xf32>
      %c3 = arith.constant 3 : index
      %c0_16 = arith.constant 0 : index
      %19 = vector.load %arg3[%c3, %c0_16] : memref<12x128xf32, #tpu.memory_space<vmem>>, vector<1x128xf32>
      %c4 = arith.constant 4 : index
      %c0_17 = arith.constant 0 : index
      %20 = vector.load %arg3[%c4, %c0_17] : memref<12x128xf32, #tpu.memory_space<vmem>>, vector<1x128xf32>
      %c5 = arith.constant 5 : index
      %c0_18 = arith.constant 0 : index
      %21 = vector.load %arg3[%c5, %c0_18] : memref<12x128xf32, #tpu.memory_space<vmem>>, vector<1x128xf32>
      %c6 = arith.constant 6 : index
      %c0_19 = arith.constant 0 : index
      %22 = vector.load %arg3[%c6, %c0_19] : memref<12x128xf32, #tpu.memory_space<vmem>>, vector<1x128xf32>
      %c7 = arith.constant 7 : index
      %c0_20 = arith.constant 0 : index
      %23 = vector.load %arg3[%c7, %c0_20] : memref<12x128xf32, #tpu.memory_space<vmem>>, vector<1x128xf32>
      %c8 = arith.constant 8 : index
      %c0_21 = arith.constant 0 : index
      %24 = vector.load %arg3[%c8, %c0_21] : memref<12x128xf32, #tpu.memory_space<vmem>>, vector<1x128xf32>
      %c9 = arith.constant 9 : index
      %c0_22 = arith.constant 0 : index
      %25 = vector.load %arg3[%c9, %c0_22] : memref<12x128xf32, #tpu.memory_space<vmem>>, vector<1x128xf32>
      %c10 = arith.constant 10 : index
      %c0_23 = arith.constant 0 : index
      %26 = vector.load %arg3[%c10, %c0_23] : memref<12x128xf32, #tpu.memory_space<vmem>>, vector<1x128xf32>
      %c11 = arith.constant 11 : index
      %c0_24 = arith.constant 0 : index
      %27 = vector.load %arg3[%c11, %c0_24] : memref<12x128xf32, #tpu.memory_space<vmem>>, vector<1x128xf32>
      %28 = vector.broadcast %16 : vector<1x128xf32> to vector<32x128xf32>
      %29 = arith.cmpf oge, %7, %28 : vector<32x128xf32>
      %30 = vector.broadcast %17 : vector<1x128xf32> to vector<32x128xf32>
      %31 = arith.cmpf olt, %7, %30 : vector<32x128xf32>
      %32 = arith.andi %29, %31 : vector<32x128xi1>
      %33 = arith.extui %32 : vector<32x128xi1> to vector<32x128xi32>
      %34 = arith.sitofp %33 : vector<32x128xi32> to vector<32x128xf32>
      %c0_25 = arith.constant 0 : index
      %c128 = arith.constant 128 : index
      %35 = vector.load %arg7[%c0_25, %c128] : memref<32x1536xf32, #tpu.memory_space<vmem>>, vector<32x128xf32>
      tpu.vector_store %arg7[%c0_25, %c128], %34 {strides = array<i32>} : memref<32x1536xf32, #tpu.memory_space<vmem>>, vector<32x128xf32>,
      %36 = vector.broadcast %17 : vector<1x128xf32> to vector<32x128xf32>
      %37 = arith.cmpf oge, %7, %36 : vector<32x128xf32>
      %38 = vector.broadcast %18 : vector<1x128xf32> to vector<32x128xf32>
      %39 = arith.cmpf olt, %7, %38 : vector<32x128xf32>
      %40 = arith.andi %37, %39 : vector<32x128xi1>
      %41 = arith.extui %40 : vector<32x128xi1> to vector<32x128xi32>
      %42 = arith.sitofp %41 : vector<32x128xi32> to vector<32x128xf32>
      %c0_26 = arith.constant 0 : index
      %c256 = arith.constant 256 : index
      %43 = vector.load %arg7[%c0_26, %c256] : memref<32x1536xf32, #tpu.memory_space<vmem>>, vector<32x128xf32>
      tpu.vector_store %arg7[%c0_26, %c256], %42 {strides = array<i32>} : memref<32x1536xf32, #tpu.memory_space<vmem>>, vector<32x128xf32>,
      %44 = vector.broadcast %18 : vector<1x128xf32> to vector<32x128xf32>
      %45 = arith.cmpf oge, %7, %44 : vector<32x128xf32>
      %46 = vector.broadcast %19 : vector<1x128xf32> to vector<32x128xf32>
      %47 = arith.cmpf olt, %7, %46 : vector<32x128xf32>
      %48 = arith.andi %45, %47 : vector<32x128xi1>
      %49 = arith.extui %48 : vector<32x128xi1> to vector<32x128xi32>
      %50 = arith.sitofp %49 : vector<32x128xi32> to vector<32x128xf32>
      %c0_27 = arith.constant 0 : index
      %c384 = arith.constant 384 : index
      %51 = vector.load %arg7[%c0_27, %c384] : memref<32x1536xf32, #tpu.memory_space<vmem>>, vector<32x128xf32>
      tpu.vector_store %arg7[%c0_27, %c384], %50 {strides = array<i32>} : memref<32x1536xf32, #tpu.memory_space<vmem>>, vector<32x128xf32>,
      %52 = vector.broadcast %19 : vector<1x128xf32> to vector<32x128xf32>
      %53 = arith.cmpf oge, %7, %52 : vector<32x128xf32>
      %54 = vector.broadcast %20 : vector<1x128xf32> to vector<32x128xf32>
      %55 = arith.cmpf olt, %7, %54 : vector<32x128xf32>
      %56 = arith.andi %53, %55 : vector<32x128xi1>
      %57 = arith.extui %56 : vector<32x128xi1> to vector<32x128xi32>
      %58 = arith.sitofp %57 : vector<32x128xi32> to vector<32x128xf32>
      %c0_28 = arith.constant 0 : index
      %c512 = arith.constant 512 : index
      %59 = vector.load %arg7[%c0_28, %c512] : memref<32x1536xf32, #tpu.memory_space<vmem>>, vector<32x128xf32>
      tpu.vector_store %arg7[%c0_28, %c512], %58 {strides = array<i32>} : memref<32x1536xf32, #tpu.memory_space<vmem>>, vector<32x128xf32>,
      %60 = vector.broadcast %20 : vector<1x128xf32> to vector<32x128xf32>
      %61 = arith.cmpf oge, %7, %60 : vector<32x128xf32>
      %62 = vector.broadcast %21 : vector<1x128xf32> to vector<32x128xf32>
      %63 = arith.cmpf olt, %7, %62 : vector<32x128xf32>
      %64 = arith.andi %61, %63 : vector<32x128xi1>
      %65 = arith.extui %64 : vector<32x128xi1> to vector<32x128xi32>
      %66 = arith.sitofp %65 : vector<32x128xi32> to vector<32x128xf32>
      %c0_29 = arith.constant 0 : index
      %c640 = arith.constant 640 : index
      %67 = vector.load %arg7[%c0_29, %c640] : memref<32x1536xf32, #tpu.memory_space<vmem>>, vector<32x128xf32>
      tpu.vector_store %arg7[%c0_29, %c640], %66 {strides = array<i32>} : memref<32x1536xf32, #tpu.memory_space<vmem>>, vector<32x128xf32>,
      %68 = vector.broadcast %21 : vector<1x128xf32> to vector<32x128xf32>
      %69 = arith.cmpf oge, %7, %68 : vector<32x128xf32>
      %70 = vector.broadcast %22 : vector<1x128xf32> to vector<32x128xf32>
      %71 = arith.cmpf olt, %7, %70 : vector<32x128xf32>
      %72 = arith.andi %69, %71 : vector<32x128xi1>
      %73 = arith.extui %72 : vector<32x128xi1> to vector<32x128xi32>
      %74 = arith.sitofp %73 : vector<32x128xi32> to vector<32x128xf32>
      %c0_30 = arith.constant 0 : index
      %c768 = arith.constant 768 : index
      %75 = vector.load %arg7[%c0_30, %c768] : memref<32x1536xf32, #tpu.memory_space<vmem>>, vector<32x128xf32>
      tpu.vector_store %arg7[%c0_30, %c768], %74 {strides = array<i32>} : memref<32x1536xf32, #tpu.memory_space<vmem>>, vector<32x128xf32>,
      %76 = vector.broadcast %22 : vector<1x128xf32> to vector<32x128xf32>
      %77 = arith.cmpf oge, %7, %76 : vector<32x128xf32>
      %78 = vector.broadcast %23 : vector<1x128xf32> to vector<32x128xf32>
      %79 = arith.cmpf olt, %7, %78 : vector<32x128xf32>
      %80 = arith.andi %77, %79 : vector<32x128xi1>
      %81 = arith.extui %80 : vector<32x128xi1> to vector<32x128xi32>
      %82 = arith.sitofp %81 : vector<32x128xi32> to vector<32x128xf32>
      %c0_31 = arith.constant 0 : index
      %c896 = arith.constant 896 : index
      %83 = vector.load %arg7[%c0_31, %c896] : memref<32x1536xf32, #tpu.memory_space<vmem>>, vector<32x128xf32>
      tpu.vector_store %arg7[%c0_31, %c896], %82 {strides = array<i32>} : memref<32x1536xf32, #tpu.memory_space<vmem>>, vector<32x128xf32>,
      %84 = vector.broadcast %23 : vector<1x128xf32> to vector<32x128xf32>
      %85 = arith.cmpf oge, %7, %84 : vector<32x128xf32>
      %86 = vector.broadcast %24 : vector<1x128xf32> to vector<32x128xf32>
      %87 = arith.cmpf olt, %7, %86 : vector<32x128xf32>
      %88 = arith.andi %85, %87 : vector<32x128xi1>
      %89 = arith.extui %88 : vector<32x128xi1> to vector<32x128xi32>
      %90 = arith.sitofp %89 : vector<32x128xi32> to vector<32x128xf32>
      %c0_32 = arith.constant 0 : index
      %c1024 = arith.constant 1024 : index
      %91 = vector.load %arg7[%c0_32, %c1024] : memref<32x1536xf32, #tpu.memory_space<vmem>>, vector<32x128xf32>
      tpu.vector_store %arg7[%c0_32, %c1024], %90 {strides = array<i32>} : memref<32x1536xf32, #tpu.memory_space<vmem>>, vector<32x128xf32>,
      %92 = vector.broadcast %24 : vector<1x128xf32> to vector<32x128xf32>
      %93 = arith.cmpf oge, %7, %92 : vector<32x128xf32>
      %94 = vector.broadcast %25 : vector<1x128xf32> to vector<32x128xf32>
      %95 = arith.cmpf olt, %7, %94 : vector<32x128xf32>
      %96 = arith.andi %93, %95 : vector<32x128xi1>
      %97 = arith.extui %96 : vector<32x128xi1> to vector<32x128xi32>
      %98 = arith.sitofp %97 : vector<32x128xi32> to vector<32x128xf32>
      %c0_33 = arith.constant 0 : index
      %c1152 = arith.constant 1152 : index
      %99 = vector.load %arg7[%c0_33, %c1152] : memref<32x1536xf32, #tpu.memory_space<vmem>>, vector<32x128xf32>
      tpu.vector_store %arg7[%c0_33, %c1152], %98 {strides = array<i32>} : memref<32x1536xf32, #tpu.memory_space<vmem>>, vector<32x128xf32>,
      %100 = vector.broadcast %25 : vector<1x128xf32> to vector<32x128xf32>
      %101 = arith.cmpf oge, %7, %100 : vector<32x128xf32>
      %102 = vector.broadcast %26 : vector<1x128xf32> to vector<32x128xf32>
      %103 = arith.cmpf olt, %7, %102 : vector<32x128xf32>
      %104 = arith.andi %101, %103 : vector<32x128xi1>
      %105 = arith.extui %104 : vector<32x128xi1> to vector<32x128xi32>
      %106 = arith.sitofp %105 : vector<32x128xi32> to vector<32x128xf32>
      %c0_34 = arith.constant 0 : index
      %c1280 = arith.constant 1280 : index
      %107 = vector.load %arg7[%c0_34, %c1280] : memref<32x1536xf32, #tpu.memory_space<vmem>>, vector<32x128xf32>
      tpu.vector_store %arg7[%c0_34, %c1280], %106 {strides = array<i32>} : memref<32x1536xf32, #tpu.memory_space<vmem>>, vector<32x128xf32>,
      %108 = vector.broadcast %26 : vector<1x128xf32> to vector<32x128xf32>
      %109 = arith.cmpf oge, %7, %108 : vector<32x128xf32>
      %110 = vector.broadcast %27 : vector<1x128xf32> to vector<32x128xf32>
      %111 = arith.cmpf olt, %7, %110 : vector<32x128xf32>
      %112 = arith.andi %109, %111 : vector<32x128xi1>
      %113 = arith.extui %112 : vector<32x128xi1> to vector<32x128xi32>
      %114 = arith.sitofp %113 : vector<32x128xi32> to vector<32x128xf32>
      %c0_35 = arith.constant 0 : index
      %c1408 = arith.constant 1408 : index
      %115 = vector.load %arg7[%c0_35, %c1408] : memref<32x1536xf32, #tpu.memory_space<vmem>>, vector<32x128xf32>
      tpu.vector_store %arg7[%c0_35, %c1408], %114 {strides = array<i32>} : memref<32x1536xf32, #tpu.memory_space<vmem>>, vector<32x128xf32>,
      %c0_36 = arith.constant 0 : index
      %c128_37 = arith.constant 128 : index
      %116 = vector.load %arg7[%c0_36, %c128_37] : memref<32x1536xf32, #tpu.memory_space<vmem>>, vector<32x128xf32>
      %c0_38 = arith.constant 0 : index
      %c256_39 = arith.constant 256 : index
      %117 = vector.load %arg7[%c0_38, %c256_39] : memref<32x1536xf32, #tpu.memory_space<vmem>>, vector<32x128xf32>
      %c0_40 = arith.constant 0 : index
      %c0_41 = arith.constant 0 : index
      %118 = vector.load %arg4[%c0_40, %c0_41] : memref<60x128xf32, #tpu.memory_space<vmem>>, vector<1x128xf32>
      %c10_42 = arith.constant 10 : index
      %c0_43 = arith.constant 0 : index
      %119 = vector.load %arg4[%c10_42, %c0_43] : memref<60x128xf32, #tpu.memory_space<vmem>>, vector<1x128xf32>
      %120 = vector.broadcast %16 : vector<1x128xf32> to vector<32x128xf32>
      %121 = arith.subf %7, %120 : vector<32x128xf32>
      %122 = vector.broadcast %118 : vector<1x128xf32> to vector<32x128xf32>
      %123 = arith.mulf %121, %122 : vector<32x128xf32>
      %124 = arith.mulf %123, %116 : vector<32x128xf32>
      %125 = vector.broadcast %18 : vector<1x128xf32> to vector<32x128xf32>
      %126 = arith.subf %125, %7 : vector<32x128xf32>
      %127 = vector.broadcast %119 : vector<1x128xf32> to vector<32x128xf32>
      %128 = arith.mulf %126, %127 : vector<32x128xf32>
      %129 = arith.mulf %128, %117 : vector<32x128xf32>
      %130 = arith.addf %124, %129 : vector<32x128xf32>
      %c0_44 = arith.constant 0 : index
      %c128_45 = arith.constant 128 : index
      %131 = vector.load %arg7[%c0_44, %c128_45] : memref<32x1536xf32, #tpu.memory_space<vmem>>, vector<32x128xf32>
      tpu.vector_store %arg7[%c0_44, %c128_45], %130 {strides = array<i32>} : memref<32x1536xf32, #tpu.memory_space<vmem>>, vector<32x128xf32>,
      %c0_46 = arith.constant 0 : index
      %c384_47 = arith.constant 384 : index
      %132 = vector.load %arg7[%c0_46, %c384_47] : memref<32x1536xf32, #tpu.memory_space<vmem>>, vector<32x128xf32>
      %c1_48 = arith.constant 1 : index
      %c0_49 = arith.constant 0 : index
      %133 = vector.load %arg4[%c1_48, %c0_49] : memref<60x128xf32, #tpu.memory_space<vmem>>, vector<1x128xf32>
      %c11_50 = arith.constant 11 : index
      %c0_51 = arith.constant 0 : index
      %134 = vector.load %arg4[%c11_50, %c0_51] : memref<60x128xf32, #tpu.memory_space<vmem>>, vector<1x128xf32>
      %135 = vector.broadcast %17 : vector<1x128xf32> to vector<32x128xf32>
      %136 = arith.subf %7, %135 : vector<32x128xf32>
      %137 = vector.broadcast %133 : vector<1x128xf32> to vector<32x128xf32>
      %138 = arith.mulf %136, %137 : vector<32x128xf32>
      %139 = arith.mulf %138, %117 : vector<32x128xf32>
      %140 = vector.broadcast %19 : vector<1x128xf32> to vector<32x128xf32>
      %141 = arith.subf %140, %7 : vector<32x128xf32>
      %142 = vector.broadcast %134 : vector<1x128xf32> to vector<32x128xf32>
      %143 = arith.mulf %141, %142 : vector<32x128xf32>
      %144 = arith.mulf %143, %132 : vector<32x128xf32>
      %145 = arith.addf %139, %144 : vector<32x128xf32>
      %c0_52 = arith.constant 0 : index
      %c256_53 = arith.constant 256 : index
      %146 = vector.load %arg7[%c0_52, %c256_53] : memref<32x1536xf32, #tpu.memory_space<vmem>>, vector<32x128xf32>
      tpu.vector_store %arg7[%c0_52, %c256_53], %145 {strides = array<i32>} : memref<32x1536xf32, #tpu.memory_space<vmem>>, vector<32x128xf32>,
      %c0_54 = arith.constant 0 : index
      %c512_55 = arith.constant 512 : index
      %147 = vector.load %arg7[%c0_54, %c512_55] : memref<32x1536xf32, #tpu.memory_space<vmem>>, vector<32x128xf32>
      %c2_56 = arith.constant 2 : index
      %c0_57 = arith.constant 0 : index
      %148 = vector.load %arg4[%c2_56, %c0_57] : memref<60x128xf32, #tpu.memory_space<vmem>>, vector<1x128xf32>
      %c12 = arith.constant 12 : index
      %c0_58 = arith.constant 0 : index
      %149 = vector.load %arg4[%c12, %c0_58] : memref<60x128xf32, #tpu.memory_space<vmem>>, vector<1x128xf32>
      %150 = vector.broadcast %18 : vector<1x128xf32> to vector<32x128xf32>
      %151 = arith.subf %7, %150 : vector<32x128xf32>
      %152 = vector.broadcast %148 : vector<1x128xf32> to vector<32x128xf32>
      %153 = arith.mulf %151, %152 : vector<32x128xf32>
      %154 = arith.mulf %153, %132 : vector<32x128xf32>
      %155 = vector.broadcast %20 : vector<1x128xf32> to vector<32x128xf32>
      %156 = arith.subf %155, %7 : vector<32x128xf32>
      %157 = vector.broadcast %149 : vector<1x128xf32> to vector<32x128xf32>
      %158 = arith.mulf %156, %157 : vector<32x128xf32>
      %159 = arith.mulf %158, %147 : vector<32x128xf32>
      %160 = arith.addf %154, %159 : vector<32x128xf32>
      %c0_59 = arith.constant 0 : index
      %c384_60 = arith.constant 384 : index
      %161 = vector.load %arg7[%c0_59, %c384_60] : memref<32x1536xf32, #tpu.memory_space<vmem>>, vector<32x128xf32>
      tpu.vector_store %arg7[%c0_59, %c384_60], %160 {strides = array<i32>} : memref<32x1536xf32, #tpu.memory_space<vmem>>, vector<32x128xf32>,
      %c0_61 = arith.constant 0 : index
      %c640_62 = arith.constant 640 : index
      %162 = vector.load %arg7[%c0_61, %c640_62] : memref<32x1536xf32, #tpu.memory_space<vmem>>, vector<32x128xf32>
      %c3_63 = arith.constant 3 : index
      %c0_64 = arith.constant 0 : index
      %163 = vector.load %arg4[%c3_63, %c0_64] : memref<60x128xf32, #tpu.memory_space<vmem>>, vector<1x128xf32>
      %c13 = arith.constant 13 : index
      %c0_65 = arith.constant 0 : index
      %164 = vector.load %arg4[%c13, %c0_65] : memref<60x128xf32, #tpu.memory_space<vmem>>, vector<1x128xf32>
      %165 = vector.broadcast %19 : vector<1x128xf32> to vector<32x128xf32>
      %166 = arith.subf %7, %165 : vector<32x128xf32>
      %167 = vector.broadcast %163 : vector<1x128xf32> to vector<32x128xf32>
      %168 = arith.mulf %166, %167 : vector<32x128xf32>
      %169 = arith.mulf %168, %147 : vector<32x128xf32>
      %170 = vector.broadcast %21 : vector<1x128xf32> to vector<32x128xf32>
      %171 = arith.subf %170, %7 : vector<32x128xf32>
      %172 = vector.broadcast %164 : vector<1x128xf32> to vector<32x128xf32>
      %173 = arith.mulf %171, %172 : vector<32x128xf32>
      %174 = arith.mulf %173, %162 : vector<32x128xf32>
      %175 = arith.addf %169, %174 : vector<32x128xf32>
      %c0_66 = arith.constant 0 : index
      %c512_67 = arith.constant 512 : index
      %176 = vector.load %arg7[%c0_66, %c512_67] : memref<32x1536xf32, #tpu.memory_space<vmem>>, vector<32x128xf32>
      tpu.vector_store %arg7[%c0_66, %c512_67], %175 {strides = array<i32>} : memref<32x1536xf32, #tpu.memory_space<vmem>>, vector<32x128xf32>,
      %c0_68 = arith.constant 0 : index
      %c768_69 = arith.constant 768 : index
      %177 = vector.load %arg7[%c0_68, %c768_69] : memref<32x1536xf32, #tpu.memory_space<vmem>>, vector<32x128xf32>
      %c4_70 = arith.constant 4 : index
      %c0_71 = arith.constant 0 : index
      %178 = vector.load %arg4[%c4_70, %c0_71] : memref<60x128xf32, #tpu.memory_space<vmem>>, vector<1x128xf32>
      %c14 = arith.constant 14 : index
      %c0_72 = arith.constant 0 : index
      %179 = vector.load %arg4[%c14, %c0_72] : memref<60x128xf32, #tpu.memory_space<vmem>>, vector<1x128xf32>
      %180 = vector.broadcast %20 : vector<1x128xf32> to vector<32x128xf32>
      %181 = arith.subf %7, %180 : vector<32x128xf32>
      %182 = vector.broadcast %178 : vector<1x128xf32> to vector<32x128xf32>
      %183 = arith.mulf %181, %182 : vector<32x128xf32>
      %184 = arith.mulf %183, %162 : vector<32x128xf32>
      %185 = vector.broadcast %22 : vector<1x128xf32> to vector<32x128xf32>
      %186 = arith.subf %185, %7 : vector<32x128xf32>
      %187 = vector.broadcast %179 : vector<1x128xf32> to vector<32x128xf32>
      %188 = arith.mulf %186, %187 : vector<32x128xf32>
      %189 = arith.mulf %188, %177 : vector<32x128xf32>
      %190 = arith.addf %184, %189 : vector<32x128xf32>
      %c0_73 = arith.constant 0 : index
      %c640_74 = arith.constant 640 : index
      %191 = vector.load %arg7[%c0_73, %c640_74] : memref<32x1536xf32, #tpu.memory_space<vmem>>, vector<32x128xf32>
      tpu.vector_store %arg7[%c0_73, %c640_74], %190 {strides = array<i32>} : memref<32x1536xf32, #tpu.memory_space<vmem>>, vector<32x128xf32>,
      %c0_75 = arith.constant 0 : index
      %c896_76 = arith.constant 896 : index
      %192 = vector.load %arg7[%c0_75, %c896_76] : memref<32x1536xf32, #tpu.memory_space<vmem>>, vector<32x128xf32>
      %c5_77 = arith.constant 5 : index
      %c0_78 = arith.constant 0 : index
      %193 = vector.load %arg4[%c5_77, %c0_78] : memref<60x128xf32, #tpu.memory_space<vmem>>, vector<1x128xf32>
      %c15 = arith.constant 15 : index
      %c0_79 = arith.constant 0 : index
      %194 = vector.load %arg4[%c15, %c0_79] : memref<60x128xf32, #tpu.memory_space<vmem>>, vector<1x128xf32>
      %195 = vector.broadcast %21 : vector<1x128xf32> to vector<32x128xf32>
      %196 = arith.subf %7, %195 : vector<32x128xf32>
      %197 = vector.broadcast %193 : vector<1x128xf32> to vector<32x128xf32>
      %198 = arith.mulf %196, %197 : vector<32x128xf32>
      %199 = arith.mulf %198, %177 : vector<32x128xf32>
      %200 = vector.broadcast %23 : vector<1x128xf32> to vector<32x128xf32>
      %201 = arith.subf %200, %7 : vector<32x128xf32>
      %202 = vector.broadcast %194 : vector<1x128xf32> to vector<32x128xf32>
      %203 = arith.mulf %201, %202 : vector<32x128xf32>
      %204 = arith.mulf %203, %192 : vector<32x128xf32>
      %205 = arith.addf %199, %204 : vector<32x128xf32>
      %c0_80 = arith.constant 0 : index
      %c768_81 = arith.constant 768 : index
      %206 = vector.load %arg7[%c0_80, %c768_81] : memref<32x1536xf32, #tpu.memory_space<vmem>>, vector<32x128xf32>
      tpu.vector_store %arg7[%c0_80, %c768_81], %205 {strides = array<i32>} : memref<32x1536xf32, #tpu.memory_space<vmem>>, vector<32x128xf32>,
      %c0_82 = arith.constant 0 : index
      %c1024_83 = arith.constant 1024 : index
      %207 = vector.load %arg7[%c0_82, %c1024_83] : memref<32x1536xf32, #tpu.memory_space<vmem>>, vector<32x128xf32>
      %c6_84 = arith.constant 6 : index
      %c0_85 = arith.constant 0 : index
      %208 = vector.load %arg4[%c6_84, %c0_85] : memref<60x128xf32, #tpu.memory_space<vmem>>, vector<1x128xf32>
      %c16 = arith.constant 16 : index
      %c0_86 = arith.constant 0 : index
      %209 = vector.load %arg4[%c16, %c0_86] : memref<60x128xf32, #tpu.memory_space<vmem>>, vector<1x128xf32>
      %210 = vector.broadcast %22 : vector<1x128xf32> to vector<32x128xf32>
      %211 = arith.subf %7, %210 : vector<32x128xf32>
      %212 = vector.broadcast %208 : vector<1x128xf32> to vector<32x128xf32>
      %213 = arith.mulf %211, %212 : vector<32x128xf32>
      %214 = arith.mulf %213, %192 : vector<32x128xf32>
      %215 = vector.broadcast %24 : vector<1x128xf32> to vector<32x128xf32>
      %216 = arith.subf %215, %7 : vector<32x128xf32>
      %217 = vector.broadcast %209 : vector<1x128xf32> to vector<32x128xf32>
      %218 = arith.mulf %216, %217 : vector<32x128xf32>
      %219 = arith.mulf %218, %207 : vector<32x128xf32>
      %220 = arith.addf %214, %219 : vector<32x128xf32>
      %c0_87 = arith.constant 0 : index
      %c896_88 = arith.constant 896 : index
      %221 = vector.load %arg7[%c0_87, %c896_88] : memref<32x1536xf32, #tpu.memory_space<vmem>>, vector<32x128xf32>
      tpu.vector_store %arg7[%c0_87, %c896_88], %220 {strides = array<i32>} : memref<32x1536xf32, #tpu.memory_space<vmem>>, vector<32x128xf32>,
      %c0_89 = arith.constant 0 : index
      %c1152_90 = arith.constant 1152 : index
      %222 = vector.load %arg7[%c0_89, %c1152_90] : memref<32x1536xf32, #tpu.memory_space<vmem>>, vector<32x128xf32>
      %c7_91 = arith.constant 7 : index
      %c0_92 = arith.constant 0 : index
      %223 = vector.load %arg4[%c7_91, %c0_92] : memref<60x128xf32, #tpu.memory_space<vmem>>, vector<1x128xf32>
      %c17 = arith.constant 17 : index
      %c0_93 = arith.constant 0 : index
      %224 = vector.load %arg4[%c17, %c0_93] : memref<60x128xf32, #tpu.memory_space<vmem>>, vector<1x128xf32>
      %225 = vector.broadcast %23 : vector<1x128xf32> to vector<32x128xf32>
      %226 = arith.subf %7, %225 : vector<32x128xf32>
      %227 = vector.broadcast %223 : vector<1x128xf32> to vector<32x128xf32>
      %228 = arith.mulf %226, %227 : vector<32x128xf32>
      %229 = arith.mulf %228, %207 : vector<32x128xf32>
      %230 = vector.broadcast %25 : vector<1x128xf32> to vector<32x128xf32>
      %231 = arith.subf %230, %7 : vector<32x128xf32>
      %232 = vector.broadcast %224 : vector<1x128xf32> to vector<32x128xf32>
      %233 = arith.mulf %231, %232 : vector<32x128xf32>
      %234 = arith.mulf %233, %222 : vector<32x128xf32>
      %235 = arith.addf %229, %234 : vector<32x128xf32>
      %c0_94 = arith.constant 0 : index
      %c1024_95 = arith.constant 1024 : index
      %236 = vector.load %arg7[%c0_94, %c1024_95] : memref<32x1536xf32, #tpu.memory_space<vmem>>, vector<32x128xf32>
      tpu.vector_store %arg7[%c0_94, %c1024_95], %235 {strides = array<i32>} : memref<32x1536xf32, #tpu.memory_space<vmem>>, vector<32x128xf32>,
      %c0_96 = arith.constant 0 : index
      %c1280_97 = arith.constant 1280 : index
      %237 = vector.load %arg7[%c0_96, %c1280_97] : memref<32x1536xf32, #tpu.memory_space<vmem>>, vector<32x128xf32>
      %c8_98 = arith.constant 8 : index
      %c0_99 = arith.constant 0 : index
      %238 = vector.load %arg4[%c8_98, %c0_99] : memref<60x128xf32, #tpu.memory_space<vmem>>, vector<1x128xf32>
      %c18 = arith.constant 18 : index
      %c0_100 = arith.constant 0 : index
      %239 = vector.load %arg4[%c18, %c0_100] : memref<60x128xf32, #tpu.memory_space<vmem>>, vector<1x128xf32>
      %240 = vector.broadcast %24 : vector<1x128xf32> to vector<32x128xf32>
      %241 = arith.subf %7, %240 : vector<32x128xf32>
      %242 = vector.broadcast %238 : vector<1x128xf32> to vector<32x128xf32>
      %243 = arith.mulf %241, %242 : vector<32x128xf32>
      %244 = arith.mulf %243, %222 : vector<32x128xf32>
      %245 = vector.broadcast %26 : vector<1x128xf32> to vector<32x128xf32>
      %246 = arith.subf %245, %7 : vector<32x128xf32>
      %247 = vector.broadcast %239 : vector<1x128xf32> to vector<32x128xf32>
      %248 = arith.mulf %246, %247 : vector<32x128xf32>
      %249 = arith.mulf %248, %237 : vector<32x128xf32>
      %250 = arith.addf %244, %249 : vector<32x128xf32>
      %c0_101 = arith.constant 0 : index
      %c1152_102 = arith.constant 1152 : index
      %251 = vector.load %arg7[%c0_101, %c1152_102] : memref<32x1536xf32, #tpu.memory_space<vmem>>, vector<32x128xf32>
      tpu.vector_store %arg7[%c0_101, %c1152_102], %250 {strides = array<i32>} : memref<32x1536xf32, #tpu.memory_space<vmem>>, vector<32x128xf32>,
      %c0_103 = arith.constant 0 : index
      %c1408_104 = arith.constant 1408 : index
      %252 = vector.load %arg7[%c0_103, %c1408_104] : memref<32x1536xf32, #tpu.memory_space<vmem>>, vector<32x128xf32>
      %c9_105 = arith.constant 9 : index
      %c0_106 = arith.constant 0 : index
      %253 = vector.load %arg4[%c9_105, %c0_106] : memref<60x128xf32, #tpu.memory_space<vmem>>, vector<1x128xf32>
      %c19 = arith.constant 19 : index
      %c0_107 = arith.constant 0 : index
      %254 = vector.load %arg4[%c19, %c0_107] : memref<60x128xf32, #tpu.memory_space<vmem>>, vector<1x128xf32>
      %255 = vector.broadcast %25 : vector<1x128xf32> to vector<32x128xf32>
      %256 = arith.subf %7, %255 : vector<32x128xf32>
      %257 = vector.broadcast %253 : vector<1x128xf32> to vector<32x128xf32>
      %258 = arith.mulf %256, %257 : vector<32x128xf32>
      %259 = arith.mulf %258, %237 : vector<32x128xf32>
      %260 = vector.broadcast %27 : vector<1x128xf32> to vector<32x128xf32>
      %261 = arith.subf %260, %7 : vector<32x128xf32>
      %262 = vector.broadcast %254 : vector<1x128xf32> to vector<32x128xf32>
      %263 = arith.mulf %261, %262 : vector<32x128xf32>
      %264 = arith.mulf %263, %252 : vector<32x128xf32>
      %265 = arith.addf %259, %264 : vector<32x128xf32>
      %c0_108 = arith.constant 0 : index
      %c1280_109 = arith.constant 1280 : index
      %266 = vector.load %arg7[%c0_108, %c1280_109] : memref<32x1536xf32, #tpu.memory_space<vmem>>, vector<32x128xf32>
      tpu.vector_store %arg7[%c0_108, %c1280_109], %265 {strides = array<i32>} : memref<32x1536xf32, #tpu.memory_space<vmem>>, vector<32x128xf32>,
      %c0_110 = arith.constant 0 : index
      %c128_111 = arith.constant 128 : index
      %267 = vector.load %arg7[%c0_110, %c128_111] : memref<32x1536xf32, #tpu.memory_space<vmem>>, vector<32x128xf32>
      %c0_112 = arith.constant 0 : index
      %c256_113 = arith.constant 256 : index
      %268 = vector.load %arg7[%c0_112, %c256_113] : memref<32x1536xf32, #tpu.memory_space<vmem>>, vector<32x128xf32>
      %c20 = arith.constant 20 : index
      %c0_114 = arith.constant 0 : index
      %269 = vector.load %arg4[%c20, %c0_114] : memref<60x128xf32, #tpu.memory_space<vmem>>, vector<1x128xf32>
      %c30 = arith.constant 30 : index
      %c0_115 = arith.constant 0 : index
      %270 = vector.load %arg4[%c30, %c0_115] : memref<60x128xf32, #tpu.memory_space<vmem>>, vector<1x128xf32>
      %271 = vector.broadcast %16 : vector<1x128xf32> to vector<32x128xf32>
      %272 = arith.subf %7, %271 : vector<32x128xf32>
      %273 = vector.broadcast %269 : vector<1x128xf32> to vector<32x128xf32>
      %274 = arith.mulf %272, %273 : vector<32x128xf32>
      %275 = arith.mulf %274, %267 : vector<32x128xf32>
      %276 = vector.broadcast %19 : vector<1x128xf32> to vector<32x128xf32>
      %277 = arith.subf %276, %7 : vector<32x128xf32>
      %278 = vector.broadcast %270 : vector<1x128xf32> to vector<32x128xf32>
      %279 = arith.mulf %277, %278 : vector<32x128xf32>
      %280 = arith.mulf %279, %268 : vector<32x128xf32>
      %281 = arith.addf %275, %280 : vector<32x128xf32>
      %c0_116 = arith.constant 0 : index
      %c128_117 = arith.constant 128 : index
      %282 = vector.load %arg7[%c0_116, %c128_117] : memref<32x1536xf32, #tpu.memory_space<vmem>>, vector<32x128xf32>
      tpu.vector_store %arg7[%c0_116, %c128_117], %281 {strides = array<i32>} : memref<32x1536xf32, #tpu.memory_space<vmem>>, vector<32x128xf32>,
      %c0_118 = arith.constant 0 : index
      %c384_119 = arith.constant 384 : index
      %283 = vector.load %arg7[%c0_118, %c384_119] : memref<32x1536xf32, #tpu.memory_space<vmem>>, vector<32x128xf32>
      %c21 = arith.constant 21 : index
      %c0_120 = arith.constant 0 : index
      %284 = vector.load %arg4[%c21, %c0_120] : memref<60x128xf32, #tpu.memory_space<vmem>>, vector<1x128xf32>
      %c31 = arith.constant 31 : index
      %c0_121 = arith.constant 0 : index
      %285 = vector.load %arg4[%c31, %c0_121] : memref<60x128xf32, #tpu.memory_space<vmem>>, vector<1x128xf32>
      %286 = vector.broadcast %17 : vector<1x128xf32> to vector<32x128xf32>
      %287 = arith.subf %7, %286 : vector<32x128xf32>
      %288 = vector.broadcast %284 : vector<1x128xf32> to vector<32x128xf32>
      %289 = arith.mulf %287, %288 : vector<32x128xf32>
      %290 = arith.mulf %289, %268 : vector<32x128xf32>
      %291 = vector.broadcast %20 : vector<1x128xf32> to vector<32x128xf32>
      %292 = arith.subf %291, %7 : vector<32x128xf32>
      %293 = vector.broadcast %285 : vector<1x128xf32> to vector<32x128xf32>
      %294 = arith.mulf %292, %293 : vector<32x128xf32>
      %295 = arith.mulf %294, %283 : vector<32x128xf32>
      %296 = arith.addf %290, %295 : vector<32x128xf32>
      %c0_122 = arith.constant 0 : index
      %c256_123 = arith.constant 256 : index
      %297 = vector.load %arg7[%c0_122, %c256_123] : memref<32x1536xf32, #tpu.memory_space<vmem>>, vector<32x128xf32>
      tpu.vector_store %arg7[%c0_122, %c256_123], %296 {strides = array<i32>} : memref<32x1536xf32, #tpu.memory_space<vmem>>, vector<32x128xf32>,
      %c0_124 = arith.constant 0 : index
      %c512_125 = arith.constant 512 : index
      %298 = vector.load %arg7[%c0_124, %c512_125] : memref<32x1536xf32, #tpu.memory_space<vmem>>, vector<32x128xf32>
      %c22 = arith.constant 22 : index
      %c0_126 = arith.constant 0 : index
      %299 = vector.load %arg4[%c22, %c0_126] : memref<60x128xf32, #tpu.memory_space<vmem>>, vector<1x128xf32>
      %c32 = arith.constant 32 : index
      %c0_127 = arith.constant 0 : index
      %300 = vector.load %arg4[%c32, %c0_127] : memref<60x128xf32, #tpu.memory_space<vmem>>, vector<1x128xf32>
      %301 = vector.broadcast %18 : vector<1x128xf32> to vector<32x128xf32>
      %302 = arith.subf %7, %301 : vector<32x128xf32>
      %303 = vector.broadcast %299 : vector<1x128xf32> to vector<32x128xf32>
      %304 = arith.mulf %302, %303 : vector<32x128xf32>
      %305 = arith.mulf %304, %283 : vector<32x128xf32>
      %306 = vector.broadcast %21 : vector<1x128xf32> to vector<32x128xf32>
      %307 = arith.subf %306, %7 : vector<32x128xf32>
      %308 = vector.broadcast %300 : vector<1x128xf32> to vector<32x128xf32>
      %309 = arith.mulf %307, %308 : vector<32x128xf32>
      %310 = arith.mulf %309, %298 : vector<32x128xf32>
      %311 = arith.addf %305, %310 : vector<32x128xf32>
      %c0_128 = arith.constant 0 : index
      %c384_129 = arith.constant 384 : index
      %312 = vector.load %arg7[%c0_128, %c384_129] : memref<32x1536xf32, #tpu.memory_space<vmem>>, vector<32x128xf32>
      tpu.vector_store %arg7[%c0_128, %c384_129], %311 {strides = array<i32>} : memref<32x1536xf32, #tpu.memory_space<vmem>>, vector<32x128xf32>,
      %c0_130 = arith.constant 0 : index
      %c640_131 = arith.constant 640 : index
      %313 = vector.load %arg7[%c0_130, %c640_131] : memref<32x1536xf32, #tpu.memory_space<vmem>>, vector<32x128xf32>
      %c23 = arith.constant 23 : index
      %c0_132 = arith.constant 0 : index
      %314 = vector.load %arg4[%c23, %c0_132] : memref<60x128xf32, #tpu.memory_space<vmem>>, vector<1x128xf32>
      %c33 = arith.constant 33 : index
      %c0_133 = arith.constant 0 : index
      %315 = vector.load %arg4[%c33, %c0_133] : memref<60x128xf32, #tpu.memory_space<vmem>>, vector<1x128xf32>
      %316 = vector.broadcast %19 : vector<1x128xf32> to vector<32x128xf32>
      %317 = arith.subf %7, %316 : vector<32x128xf32>
      %318 = vector.broadcast %314 : vector<1x128xf32> to vector<32x128xf32>
      %319 = arith.mulf %317, %318 : vector<32x128xf32>
      %320 = arith.mulf %319, %298 : vector<32x128xf32>
      %321 = vector.broadcast %22 : vector<1x128xf32> to vector<32x128xf32>
      %322 = arith.subf %321, %7 : vector<32x128xf32>
      %323 = vector.broadcast %315 : vector<1x128xf32> to vector<32x128xf32>
      %324 = arith.mulf %322, %323 : vector<32x128xf32>
      %325 = arith.mulf %324, %313 : vector<32x128xf32>
      %326 = arith.addf %320, %325 : vector<32x128xf32>
      %c0_134 = arith.constant 0 : index
      %c512_135 = arith.constant 512 : index
      %327 = vector.load %arg7[%c0_134, %c512_135] : memref<32x1536xf32, #tpu.memory_space<vmem>>, vector<32x128xf32>
      tpu.vector_store %arg7[%c0_134, %c512_135], %326 {strides = array<i32>} : memref<32x1536xf32, #tpu.memory_space<vmem>>, vector<32x128xf32>,
      %c0_136 = arith.constant 0 : index
      %c768_137 = arith.constant 768 : index
      %328 = vector.load %arg7[%c0_136, %c768_137] : memref<32x1536xf32, #tpu.memory_space<vmem>>, vector<32x128xf32>
      %c24 = arith.constant 24 : index
      %c0_138 = arith.constant 0 : index
      %329 = vector.load %arg4[%c24, %c0_138] : memref<60x128xf32, #tpu.memory_space<vmem>>, vector<1x128xf32>
      %c34 = arith.constant 34 : index
      %c0_139 = arith.constant 0 : index
      %330 = vector.load %arg4[%c34, %c0_139] : memref<60x128xf32, #tpu.memory_space<vmem>>, vector<1x128xf32>
      %331 = vector.broadcast %20 : vector<1x128xf32> to vector<32x128xf32>
      %332 = arith.subf %7, %331 : vector<32x128xf32>
      %333 = vector.broadcast %329 : vector<1x128xf32> to vector<32x128xf32>
      %334 = arith.mulf %332, %333 : vector<32x128xf32>
      %335 = arith.mulf %334, %313 : vector<32x128xf32>
      %336 = vector.broadcast %23 : vector<1x128xf32> to vector<32x128xf32>
      %337 = arith.subf %336, %7 : vector<32x128xf32>
      %338 = vector.broadcast %330 : vector<1x128xf32> to vector<32x128xf32>
      %339 = arith.mulf %337, %338 : vector<32x128xf32>
      %340 = arith.mulf %339, %328 : vector<32x128xf32>
      %341 = arith.addf %335, %340 : vector<32x128xf32>
      %c0_140 = arith.constant 0 : index
      %c640_141 = arith.constant 640 : index
      %342 = vector.load %arg7[%c0_140, %c640_141] : memref<32x1536xf32, #tpu.memory_space<vmem>>, vector<32x128xf32>
      tpu.vector_store %arg7[%c0_140, %c640_141], %341 {strides = array<i32>} : memref<32x1536xf32, #tpu.memory_space<vmem>>, vector<32x128xf32>,
      %c0_142 = arith.constant 0 : index
      %c896_143 = arith.constant 896 : index
      %343 = vector.load %arg7[%c0_142, %c896_143] : memref<32x1536xf32, #tpu.memory_space<vmem>>, vector<32x128xf32>
      %c25 = arith.constant 25 : index
      %c0_144 = arith.constant 0 : index
      %344 = vector.load %arg4[%c25, %c0_144] : memref<60x128xf32, #tpu.memory_space<vmem>>, vector<1x128xf32>
      %c35 = arith.constant 35 : index
      %c0_145 = arith.constant 0 : index
      %345 = vector.load %arg4[%c35, %c0_145] : memref<60x128xf32, #tpu.memory_space<vmem>>, vector<1x128xf32>
      %346 = vector.broadcast %21 : vector<1x128xf32> to vector<32x128xf32>
      %347 = arith.subf %7, %346 : vector<32x128xf32>
      %348 = vector.broadcast %344 : vector<1x128xf32> to vector<32x128xf32>
      %349 = arith.mulf %347, %348 : vector<32x128xf32>
      %350 = arith.mulf %349, %328 : vector<32x128xf32>
      %351 = vector.broadcast %24 : vector<1x128xf32> to vector<32x128xf32>
      %352 = arith.subf %351, %7 : vector<32x128xf32>
      %353 = vector.broadcast %345 : vector<1x128xf32> to vector<32x128xf32>
      %354 = arith.mulf %352, %353 : vector<32x128xf32>
      %355 = arith.mulf %354, %343 : vector<32x128xf32>
      %356 = arith.addf %350, %355 : vector<32x128xf32>
      %c0_146 = arith.constant 0 : index
      %c768_147 = arith.constant 768 : index
      %357 = vector.load %arg7[%c0_146, %c768_147] : memref<32x1536xf32, #tpu.memory_space<vmem>>, vector<32x128xf32>
      tpu.vector_store %arg7[%c0_146, %c768_147], %356 {strides = array<i32>} : memref<32x1536xf32, #tpu.memory_space<vmem>>, vector<32x128xf32>,
      %c0_148 = arith.constant 0 : index
      %c1024_149 = arith.constant 1024 : index
      %358 = vector.load %arg7[%c0_148, %c1024_149] : memref<32x1536xf32, #tpu.memory_space<vmem>>, vector<32x128xf32>
      %c26 = arith.constant 26 : index
      %c0_150 = arith.constant 0 : index
      %359 = vector.load %arg4[%c26, %c0_150] : memref<60x128xf32, #tpu.memory_space<vmem>>, vector<1x128xf32>
      %c36 = arith.constant 36 : index
      %c0_151 = arith.constant 0 : index
      %360 = vector.load %arg4[%c36, %c0_151] : memref<60x128xf32, #tpu.memory_space<vmem>>, vector<1x128xf32>
      %361 = vector.broadcast %22 : vector<1x128xf32> to vector<32x128xf32>
      %362 = arith.subf %7, %361 : vector<32x128xf32>
      %363 = vector.broadcast %359 : vector<1x128xf32> to vector<32x128xf32>
      %364 = arith.mulf %362, %363 : vector<32x128xf32>
      %365 = arith.mulf %364, %343 : vector<32x128xf32>
      %366 = vector.broadcast %25 : vector<1x128xf32> to vector<32x128xf32>
      %367 = arith.subf %366, %7 : vector<32x128xf32>
      %368 = vector.broadcast %360 : vector<1x128xf32> to vector<32x128xf32>
      %369 = arith.mulf %367, %368 : vector<32x128xf32>
      %370 = arith.mulf %369, %358 : vector<32x128xf32>
      %371 = arith.addf %365, %370 : vector<32x128xf32>
      %c0_152 = arith.constant 0 : index
      %c896_153 = arith.constant 896 : index
      %372 = vector.load %arg7[%c0_152, %c896_153] : memref<32x1536xf32, #tpu.memory_space<vmem>>, vector<32x128xf32>
      tpu.vector_store %arg7[%c0_152, %c896_153], %371 {strides = array<i32>} : memref<32x1536xf32, #tpu.memory_space<vmem>>, vector<32x128xf32>,
      %c0_154 = arith.constant 0 : index
      %c1152_155 = arith.constant 1152 : index
      %373 = vector.load %arg7[%c0_154, %c1152_155] : memref<32x1536xf32, #tpu.memory_space<vmem>>, vector<32x128xf32>
      %c27 = arith.constant 27 : index
      %c0_156 = arith.constant 0 : index
      %374 = vector.load %arg4[%c27, %c0_156] : memref<60x128xf32, #tpu.memory_space<vmem>>, vector<1x128xf32>
      %c37 = arith.constant 37 : index
      %c0_157 = arith.constant 0 : index
      %375 = vector.load %arg4[%c37, %c0_157] : memref<60x128xf32, #tpu.memory_space<vmem>>, vector<1x128xf32>
      %376 = vector.broadcast %23 : vector<1x128xf32> to vector<32x128xf32>
      %377 = arith.subf %7, %376 : vector<32x128xf32>
      %378 = vector.broadcast %374 : vector<1x128xf32> to vector<32x128xf32>
      %379 = arith.mulf %377, %378 : vector<32x128xf32>
      %380 = arith.mulf %379, %358 : vector<32x128xf32>
      %381 = vector.broadcast %26 : vector<1x128xf32> to vector<32x128xf32>
      %382 = arith.subf %381, %7 : vector<32x128xf32>
      %383 = vector.broadcast %375 : vector<1x128xf32> to vector<32x128xf32>
      %384 = arith.mulf %382, %383 : vector<32x128xf32>
      %385 = arith.mulf %384, %373 : vector<32x128xf32>
      %386 = arith.addf %380, %385 : vector<32x128xf32>
      %c0_158 = arith.constant 0 : index
      %c1024_159 = arith.constant 1024 : index
      %387 = vector.load %arg7[%c0_158, %c1024_159] : memref<32x1536xf32, #tpu.memory_space<vmem>>, vector<32x128xf32>
      tpu.vector_store %arg7[%c0_158, %c1024_159], %386 {strides = array<i32>} : memref<32x1536xf32, #tpu.memory_space<vmem>>, vector<32x128xf32>,
      %c0_160 = arith.constant 0 : index
      %c1280_161 = arith.constant 1280 : index
      %388 = vector.load %arg7[%c0_160, %c1280_161] : memref<32x1536xf32, #tpu.memory_space<vmem>>, vector<32x128xf32>
      %c28 = arith.constant 28 : index
      %c0_162 = arith.constant 0 : index
      %389 = vector.load %arg4[%c28, %c0_162] : memref<60x128xf32, #tpu.memory_space<vmem>>, vector<1x128xf32>
      %c38 = arith.constant 38 : index
      %c0_163 = arith.constant 0 : index
      %390 = vector.load %arg4[%c38, %c0_163] : memref<60x128xf32, #tpu.memory_space<vmem>>, vector<1x128xf32>
      %391 = vector.broadcast %24 : vector<1x128xf32> to vector<32x128xf32>
      %392 = arith.subf %7, %391 : vector<32x128xf32>
      %393 = vector.broadcast %389 : vector<1x128xf32> to vector<32x128xf32>
      %394 = arith.mulf %392, %393 : vector<32x128xf32>
      %395 = arith.mulf %394, %373 : vector<32x128xf32>
      %396 = vector.broadcast %27 : vector<1x128xf32> to vector<32x128xf32>
      %397 = arith.subf %396, %7 : vector<32x128xf32>
      %398 = vector.broadcast %390 : vector<1x128xf32> to vector<32x128xf32>
      %399 = arith.mulf %397, %398 : vector<32x128xf32>
      %400 = arith.mulf %399, %388 : vector<32x128xf32>
      %401 = arith.addf %395, %400 : vector<32x128xf32>
      %c0_164 = arith.constant 0 : index
      %c1152_165 = arith.constant 1152 : index
      %402 = vector.load %arg7[%c0_164, %c1152_165] : memref<32x1536xf32, #tpu.memory_space<vmem>>, vector<32x128xf32>
      tpu.vector_store %arg7[%c0_164, %c1152_165], %401 {strides = array<i32>} : memref<32x1536xf32, #tpu.memory_space<vmem>>, vector<32x128xf32>,
      %c0_166 = arith.constant 0 : index
      %c128_167 = arith.constant 128 : index
      %403 = vector.load %arg7[%c0_166, %c128_167] : memref<32x1536xf32, #tpu.memory_space<vmem>>, vector<32x128xf32>
      %c0_168 = arith.constant 0 : index
      %c256_169 = arith.constant 256 : index
      %404 = vector.load %arg7[%c0_168, %c256_169] : memref<32x1536xf32, #tpu.memory_space<vmem>>, vector<32x128xf32>
      %c40 = arith.constant 40 : index
      %c0_170 = arith.constant 0 : index
      %405 = vector.load %arg4[%c40, %c0_170] : memref<60x128xf32, #tpu.memory_space<vmem>>, vector<1x128xf32>
      %c50 = arith.constant 50 : index
      %c0_171 = arith.constant 0 : index
      %406 = vector.load %arg4[%c50, %c0_171] : memref<60x128xf32, #tpu.memory_space<vmem>>, vector<1x128xf32>
      %407 = vector.broadcast %16 : vector<1x128xf32> to vector<32x128xf32>
      %408 = arith.subf %7, %407 : vector<32x128xf32>
      %409 = vector.broadcast %405 : vector<1x128xf32> to vector<32x128xf32>
      %410 = arith.mulf %408, %409 : vector<32x128xf32>
      %411 = arith.mulf %410, %403 : vector<32x128xf32>
      %412 = vector.broadcast %20 : vector<1x128xf32> to vector<32x128xf32>
      %413 = arith.subf %412, %7 : vector<32x128xf32>
      %414 = vector.broadcast %406 : vector<1x128xf32> to vector<32x128xf32>
      %415 = arith.mulf %413, %414 : vector<32x128xf32>
      %416 = arith.mulf %415, %404 : vector<32x128xf32>
      %417 = arith.addf %411, %416 : vector<32x128xf32>
      %c0_172 = arith.constant 0 : index
      %c128_173 = arith.constant 128 : index
      %418 = vector.load %arg7[%c0_172, %c128_173] : memref<32x1536xf32, #tpu.memory_space<vmem>>, vector<32x128xf32>
      tpu.vector_store %arg7[%c0_172, %c128_173], %417 {strides = array<i32>} : memref<32x1536xf32, #tpu.memory_space<vmem>>, vector<32x128xf32>,
      %c0_174 = arith.constant 0 : index
      %c384_175 = arith.constant 384 : index
      %419 = vector.load %arg7[%c0_174, %c384_175] : memref<32x1536xf32, #tpu.memory_space<vmem>>, vector<32x128xf32>
      %c41 = arith.constant 41 : index
      %c0_176 = arith.constant 0 : index
      %420 = vector.load %arg4[%c41, %c0_176] : memref<60x128xf32, #tpu.memory_space<vmem>>, vector<1x128xf32>
      %c51 = arith.constant 51 : index
      %c0_177 = arith.constant 0 : index
      %421 = vector.load %arg4[%c51, %c0_177] : memref<60x128xf32, #tpu.memory_space<vmem>>, vector<1x128xf32>
      %422 = vector.broadcast %17 : vector<1x128xf32> to vector<32x128xf32>
      %423 = arith.subf %7, %422 : vector<32x128xf32>
      %424 = vector.broadcast %420 : vector<1x128xf32> to vector<32x128xf32>
      %425 = arith.mulf %423, %424 : vector<32x128xf32>
      %426 = arith.mulf %425, %404 : vector<32x128xf32>
      %427 = vector.broadcast %21 : vector<1x128xf32> to vector<32x128xf32>
      %428 = arith.subf %427, %7 : vector<32x128xf32>
      %429 = vector.broadcast %421 : vector<1x128xf32> to vector<32x128xf32>
      %430 = arith.mulf %428, %429 : vector<32x128xf32>
      %431 = arith.mulf %430, %419 : vector<32x128xf32>
      %432 = arith.addf %426, %431 : vector<32x128xf32>
      %c0_178 = arith.constant 0 : index
      %c256_179 = arith.constant 256 : index
      %433 = vector.load %arg7[%c0_178, %c256_179] : memref<32x1536xf32, #tpu.memory_space<vmem>>, vector<32x128xf32>
      tpu.vector_store %arg7[%c0_178, %c256_179], %432 {strides = array<i32>} : memref<32x1536xf32, #tpu.memory_space<vmem>>, vector<32x128xf32>,
      %c0_180 = arith.constant 0 : index
      %c512_181 = arith.constant 512 : index
      %434 = vector.load %arg7[%c0_180, %c512_181] : memref<32x1536xf32, #tpu.memory_space<vmem>>, vector<32x128xf32>
      %c42 = arith.constant 42 : index
      %c0_182 = arith.constant 0 : index
      %435 = vector.load %arg4[%c42, %c0_182] : memref<60x128xf32, #tpu.memory_space<vmem>>, vector<1x128xf32>
      %c52 = arith.constant 52 : index
      %c0_183 = arith.constant 0 : index
      %436 = vector.load %arg4[%c52, %c0_183] : memref<60x128xf32, #tpu.memory_space<vmem>>, vector<1x128xf32>
      %437 = vector.broadcast %18 : vector<1x128xf32> to vector<32x128xf32>
      %438 = arith.subf %7, %437 : vector<32x128xf32>
      %439 = vector.broadcast %435 : vector<1x128xf32> to vector<32x128xf32>
      %440 = arith.mulf %438, %439 : vector<32x128xf32>
      %441 = arith.mulf %440, %419 : vector<32x128xf32>
      %442 = vector.broadcast %22 : vector<1x128xf32> to vector<32x128xf32>
      %443 = arith.subf %442, %7 : vector<32x128xf32>
      %444 = vector.broadcast %436 : vector<1x128xf32> to vector<32x128xf32>
      %445 = arith.mulf %443, %444 : vector<32x128xf32>
      %446 = arith.mulf %445, %434 : vector<32x128xf32>
      %447 = arith.addf %441, %446 : vector<32x128xf32>
      %c0_184 = arith.constant 0 : index
      %c384_185 = arith.constant 384 : index
      %448 = vector.load %arg7[%c0_184, %c384_185] : memref<32x1536xf32, #tpu.memory_space<vmem>>, vector<32x128xf32>
      tpu.vector_store %arg7[%c0_184, %c384_185], %447 {strides = array<i32>} : memref<32x1536xf32, #tpu.memory_space<vmem>>, vector<32x128xf32>,
      %c0_186 = arith.constant 0 : index
      %c640_187 = arith.constant 640 : index
      %449 = vector.load %arg7[%c0_186, %c640_187] : memref<32x1536xf32, #tpu.memory_space<vmem>>, vector<32x128xf32>
      %c43 = arith.constant 43 : index
      %c0_188 = arith.constant 0 : index
      %450 = vector.load %arg4[%c43, %c0_188] : memref<60x128xf32, #tpu.memory_space<vmem>>, vector<1x128xf32>
      %c53 = arith.constant 53 : index
      %c0_189 = arith.constant 0 : index
      %451 = vector.load %arg4[%c53, %c0_189] : memref<60x128xf32, #tpu.memory_space<vmem>>, vector<1x128xf32>
      %452 = vector.broadcast %19 : vector<1x128xf32> to vector<32x128xf32>
      %453 = arith.subf %7, %452 : vector<32x128xf32>
      %454 = vector.broadcast %450 : vector<1x128xf32> to vector<32x128xf32>
      %455 = arith.mulf %453, %454 : vector<32x128xf32>
      %456 = arith.mulf %455, %434 : vector<32x128xf32>
      %457 = vector.broadcast %23 : vector<1x128xf32> to vector<32x128xf32>
      %458 = arith.subf %457, %7 : vector<32x128xf32>
      %459 = vector.broadcast %451 : vector<1x128xf32> to vector<32x128xf32>
      %460 = arith.mulf %458, %459 : vector<32x128xf32>
      %461 = arith.mulf %460, %449 : vector<32x128xf32>
      %462 = arith.addf %456, %461 : vector<32x128xf32>
      %c0_190 = arith.constant 0 : index
      %c512_191 = arith.constant 512 : index
      %463 = vector.load %arg7[%c0_190, %c512_191] : memref<32x1536xf32, #tpu.memory_space<vmem>>, vector<32x128xf32>
      tpu.vector_store %arg7[%c0_190, %c512_191], %462 {strides = array<i32>} : memref<32x1536xf32, #tpu.memory_space<vmem>>, vector<32x128xf32>,
      %c0_192 = arith.constant 0 : index
      %c768_193 = arith.constant 768 : index
      %464 = vector.load %arg7[%c0_192, %c768_193] : memref<32x1536xf32, #tpu.memory_space<vmem>>, vector<32x128xf32>
      %c44 = arith.constant 44 : index
      %c0_194 = arith.constant 0 : index
      %465 = vector.load %arg4[%c44, %c0_194] : memref<60x128xf32, #tpu.memory_space<vmem>>, vector<1x128xf32>
      %c54 = arith.constant 54 : index
      %c0_195 = arith.constant 0 : index
      %466 = vector.load %arg4[%c54, %c0_195] : memref<60x128xf32, #tpu.memory_space<vmem>>, vector<1x128xf32>
      %467 = vector.broadcast %20 : vector<1x128xf32> to vector<32x128xf32>
      %468 = arith.subf %7, %467 : vector<32x128xf32>
      %469 = vector.broadcast %465 : vector<1x128xf32> to vector<32x128xf32>
      %470 = arith.mulf %468, %469 : vector<32x128xf32>
      %471 = arith.mulf %470, %449 : vector<32x128xf32>
      %472 = vector.broadcast %24 : vector<1x128xf32> to vector<32x128xf32>
      %473 = arith.subf %472, %7 : vector<32x128xf32>
      %474 = vector.broadcast %466 : vector<1x128xf32> to vector<32x128xf32>
      %475 = arith.mulf %473, %474 : vector<32x128xf32>
      %476 = arith.mulf %475, %464 : vector<32x128xf32>
      %477 = arith.addf %471, %476 : vector<32x128xf32>
      %c0_196 = arith.constant 0 : index
      %c640_197 = arith.constant 640 : index
      %478 = vector.load %arg7[%c0_196, %c640_197] : memref<32x1536xf32, #tpu.memory_space<vmem>>, vector<32x128xf32>
      tpu.vector_store %arg7[%c0_196, %c640_197], %477 {strides = array<i32>} : memref<32x1536xf32, #tpu.memory_space<vmem>>, vector<32x128xf32>,
      %c0_198 = arith.constant 0 : index
      %c896_199 = arith.constant 896 : index
      %479 = vector.load %arg7[%c0_198, %c896_199] : memref<32x1536xf32, #tpu.memory_space<vmem>>, vector<32x128xf32>
      %c45 = arith.constant 45 : index
      %c0_200 = arith.constant 0 : index
      %480 = vector.load %arg4[%c45, %c0_200] : memref<60x128xf32, #tpu.memory_space<vmem>>, vector<1x128xf32>
      %c55 = arith.constant 55 : index
      %c0_201 = arith.constant 0 : index
      %481 = vector.load %arg4[%c55, %c0_201] : memref<60x128xf32, #tpu.memory_space<vmem>>, vector<1x128xf32>
      %482 = vector.broadcast %21 : vector<1x128xf32> to vector<32x128xf32>
      %483 = arith.subf %7, %482 : vector<32x128xf32>
      %484 = vector.broadcast %480 : vector<1x128xf32> to vector<32x128xf32>
      %485 = arith.mulf %483, %484 : vector<32x128xf32>
      %486 = arith.mulf %485, %464 : vector<32x128xf32>
      %487 = vector.broadcast %25 : vector<1x128xf32> to vector<32x128xf32>
      %488 = arith.subf %487, %7 : vector<32x128xf32>
      %489 = vector.broadcast %481 : vector<1x128xf32> to vector<32x128xf32>
      %490 = arith.mulf %488, %489 : vector<32x128xf32>
      %491 = arith.mulf %490, %479 : vector<32x128xf32>
      %492 = arith.addf %486, %491 : vector<32x128xf32>
      %c0_202 = arith.constant 0 : index
      %c768_203 = arith.constant 768 : index
      %493 = vector.load %arg7[%c0_202, %c768_203] : memref<32x1536xf32, #tpu.memory_space<vmem>>, vector<32x128xf32>
      tpu.vector_store %arg7[%c0_202, %c768_203], %492 {strides = array<i32>} : memref<32x1536xf32, #tpu.memory_space<vmem>>, vector<32x128xf32>,
      %c0_204 = arith.constant 0 : index
      %c1024_205 = arith.constant 1024 : index
      %494 = vector.load %arg7[%c0_204, %c1024_205] : memref<32x1536xf32, #tpu.memory_space<vmem>>, vector<32x128xf32>
      %c46 = arith.constant 46 : index
      %c0_206 = arith.constant 0 : index
      %495 = vector.load %arg4[%c46, %c0_206] : memref<60x128xf32, #tpu.memory_space<vmem>>, vector<1x128xf32>
      %c56 = arith.constant 56 : index
      %c0_207 = arith.constant 0 : index
      %496 = vector.load %arg4[%c56, %c0_207] : memref<60x128xf32, #tpu.memory_space<vmem>>, vector<1x128xf32>
      %497 = vector.broadcast %22 : vector<1x128xf32> to vector<32x128xf32>
      %498 = arith.subf %7, %497 : vector<32x128xf32>
      %499 = vector.broadcast %495 : vector<1x128xf32> to vector<32x128xf32>
      %500 = arith.mulf %498, %499 : vector<32x128xf32>
      %501 = arith.mulf %500, %479 : vector<32x128xf32>
      %502 = vector.broadcast %26 : vector<1x128xf32> to vector<32x128xf32>
      %503 = arith.subf %502, %7 : vector<32x128xf32>
      %504 = vector.broadcast %496 : vector<1x128xf32> to vector<32x128xf32>
      %505 = arith.mulf %503, %504 : vector<32x128xf32>
      %506 = arith.mulf %505, %494 : vector<32x128xf32>
      %507 = arith.addf %501, %506 : vector<32x128xf32>
      %c0_208 = arith.constant 0 : index
      %c896_209 = arith.constant 896 : index
      %508 = vector.load %arg7[%c0_208, %c896_209] : memref<32x1536xf32, #tpu.memory_space<vmem>>, vector<32x128xf32>
      tpu.vector_store %arg7[%c0_208, %c896_209], %507 {strides = array<i32>} : memref<32x1536xf32, #tpu.memory_space<vmem>>, vector<32x128xf32>,
      %c0_210 = arith.constant 0 : index
      %c1152_211 = arith.constant 1152 : index
      %509 = vector.load %arg7[%c0_210, %c1152_211] : memref<32x1536xf32, #tpu.memory_space<vmem>>, vector<32x128xf32>
      %c47 = arith.constant 47 : index
      %c0_212 = arith.constant 0 : index
      %510 = vector.load %arg4[%c47, %c0_212] : memref<60x128xf32, #tpu.memory_space<vmem>>, vector<1x128xf32>
      %c57 = arith.constant 57 : index
      %c0_213 = arith.constant 0 : index
      %511 = vector.load %arg4[%c57, %c0_213] : memref<60x128xf32, #tpu.memory_space<vmem>>, vector<1x128xf32>
      %512 = vector.broadcast %23 : vector<1x128xf32> to vector<32x128xf32>
      %513 = arith.subf %7, %512 : vector<32x128xf32>
      %514 = vector.broadcast %510 : vector<1x128xf32> to vector<32x128xf32>
      %515 = arith.mulf %513, %514 : vector<32x128xf32>
      %516 = arith.mulf %515, %494 : vector<32x128xf32>
      %517 = vector.broadcast %27 : vector<1x128xf32> to vector<32x128xf32>
      %518 = arith.subf %517, %7 : vector<32x128xf32>
      %519 = vector.broadcast %511 : vector<1x128xf32> to vector<32x128xf32>
      %520 = arith.mulf %518, %519 : vector<32x128xf32>
      %521 = arith.mulf %520, %509 : vector<32x128xf32>
      %522 = arith.addf %516, %521 : vector<32x128xf32>
      %c0_214 = arith.constant 0 : index
      %c1024_215 = arith.constant 1024 : index
      %523 = vector.load %arg7[%c0_214, %c1024_215] : memref<32x1536xf32, #tpu.memory_space<vmem>>, vector<32x128xf32>
      tpu.vector_store %arg7[%c0_214, %c1024_215], %522 {strides = array<i32>} : memref<32x1536xf32, #tpu.memory_space<vmem>>, vector<32x128xf32>,
    } else {
    }
    %c0 = arith.constant 0 : index
    %c0_1 = arith.constant 0 : index
    %3 = vector.load %arg7[%c0, %c0_1] : memref<32x1536xf32, #tpu.memory_space<vmem>>, vector<32x1152xf32>
    %c0_2 = arith.constant 0 : index
    %c0_3 = arith.constant 0 : index
    %4 = vector.load %arg5[%c0_2, %c0_3] : memref<1152x128xf32, #tpu.memory_space<vmem>>, vector<1152x128xf32>
    %cst = arith.constant dense<0.000000e+00> : vector<32x128xf32>
    %5 = tpu.matmul %3, %4, %cst {dimension_numbers = #tpu.dot_dimension_numbers<[1], [0], [0], [1], [0, 0, 1, 1], [], []>} : vector<32x1152xf32>, vector<1152x128xf32>, vector<32x128xf32> -> vector<32x128xf32>
    %c0_4 = arith.constant 0 : index
    %c0_5 = arith.constant 0 : index
    %6 = vector.load %arg6[%c0_4, %c0_5] : memref<32x128xf32, #tpu.memory_space<vmem>>, vector<32x128xf32>
    tpu.vector_store %arg6[%c0_4, %c0_5], %5 {strides = array<i32>} : memref<32x128xf32, #tpu.memory_space<vmem>>, vector<32x128xf32>,
    return
  }
  func.func @transform_0(%arg0: i32, %arg1: i32) -> (i32, i32) {
    %c0_i32 = arith.constant 0 : i32
    %c0_i32_0 = arith.constant 0 : i32
    return %arg0, %c0_i32 : i32, i32
  }
  func.func @transform_1(%arg0: i32, %arg1: i32) -> (i32, i32) {
    %c0_i32 = arith.constant 0 : i32
    %c0_i32_0 = arith.constant 0 : i32
    %c0_i32_1 = arith.constant 0 : i32
    return %c0_i32, %c0_i32_0 : i32, i32
  }
  func.func @transform_2(%arg0: i32, %arg1: i32) -> (i32, i32) {
    %c0_i32 = arith.constant 0 : i32
    %c0_i32_0 = arith.constant 0 : i32
    %c0_i32_1 = arith.constant 0 : i32
    return %c0_i32, %c0_i32_0 : i32, i32
  }
  func.func @transform_3(%arg0: i32, %arg1: i32) -> (i32, i32) {
    %c0_i32 = arith.constant 0 : i32
    %c0_i32_0 = arith.constant 0 : i32
    return %c0_i32, %arg1 : i32, i32
  }
  func.func @transform_4(%arg0: i32, %arg1: i32) -> (i32, i32) {
    %c0_i32 = arith.constant 0 : i32
    return %arg0, %arg1 : i32, i32
  }
}

</mosaic_0001>

<llo_original>
// kernel: tpu_custom_call.1
$region0: #{tpu_custom_call.1}
  #allocation0 [shape = 'u32[]', space=smem, size = 0x4, offset = 0x4, fixed_abs, tag = 'smem constant byte address 0x4 - core index']
  #allocation1 [shape = 'u32[144,128]{1,0:T(1,128)}', space=vmem, size = 0x12000, scoped, tag = 'internal scratch']
  #allocation2 [shape = 'f32[32,1536]{1,0:T(8,128)}', space=vmem, size = 0x30000, scoped, tag = 'scratch operand']
  %s0 = inlined_call_operand.hbm [shape: f32[64,128], index: 0, kind: input, shape index: {}]
  %s1 = inlined_call_operand.hbm [shape: f32[12,128], index: 1, kind: input, shape index: {}]
  %s2 = inlined_call_operand.hbm [shape: f32[60,128], index: 2, kind: input, shape index: {}]
  %s3 = inlined_call_operand.hbm [shape: f32[1152,128], index: 3, kind: input, shape index: {}]
  %s4 = inlined_call_operand.hbm [shape: f32[64,128], index: 4, kind: output, shape index: {}]
  %s5 = sld [smem:[#allocation0]]
  $region69: #{tpu_custom_call.1} parent=0
    _
  %s7 = ssub.s32 1, %s5
  %s8 = scalar_select 0, %s7, %s5
  $region1: #{tpu_custom_call.1} parent=0
    #allocation3 [shape = 'u8[32768]{0}', space=vmem, size = 0x8000, scoped, tag = 'input window, operand 0']
    #allocation4 [shape = 's32[2]{0}', space=sflag, size = 0x8, scoped, tag = 'scoped memory for tpu_custom_call.1']
    #allocation5 [shape = 's32[2]{0}', space=sflag, size = 0x8, scoped, tag = 'scoped memory for tpu_custom_call.1']
    #allocation6 [shape = 'u8[8192]{0}', space=vmem, size = 0x2000, scoped, tag = 'input window, operand 1, single buffered']
    #allocation7 [shape = 's32[1]{0}', space=sflag, size = 0x4, scoped, tag = 'scoped memory for tpu_custom_call.1']
    #allocation8 [shape = 'u8[32768]{0}', space=vmem, size = 0x8000, scoped, tag = 'input window, operand 2, single buffered']
    #allocation9 [shape = 'u8[589824]{0}', space=vmem, size = 0x90000, scoped, tag = 'input window, operand 3, single buffered']
    #allocation10 [shape = 's32[1]{0}', space=sflag, size = 0x4, scoped, tag = 'scoped memory for tpu_custom_call.1']
    #allocation11 [shape = 'u8[32768]{0}', space=vmem, size = 0x8000, scoped, tag = 'output window, operand 0']
    %9 = vsyncpa [#allocation4], 0
    %s10 = scalar_lea.sflag [#allocation4], 1
    %11 = vsyncpa %s10, 0
    %12 = vsyncpa [#allocation7], 0
    %13 = vsyncpa [#allocation10], 0
    %14 = vsyncpa [#allocation5], 0
    %s15 = scalar_lea.sflag [#allocation5], 1
    %16 = vsyncpa %s15, 0
    loop: start=0, step=1, limit=4
    $region2: #{tpu_custom_call.1} parent=1 // loop_pre_header
      _
    $region3: #{tpu_custom_call.1} parent=1 // loop_header
      %s18 = sphi 0, %s22
      %p19 = scmp.ge.s32.totalorder %s18, 4
      %s25 = sphi 0, %s37
      %s26 = sphi 0, %s33
      %s27 = sphi 0, %s25
      %s28 = sphi 0, %s26
      %s29 = sphi 0, %s27
      %s30 = sphi 0, %s28
      %s40 = sphi 0, %s42
      %s43 = sphi 0, %s40
      %s44 = sphi 0, %s43
      %s60 = sphi 0, %s44
      %s64 = sphi 0, %s64
      %s66 = sphi 0, %s64
      %s67 = sphi 0, %s66
      %s81 = sphi 0, %s67
      %s85 = sphi 0, %s85
      %s87 = sphi 0, %s85
      %s88 = sphi 0, %s87
      %s102 = sphi 0, %s88
      %s108 = sphi 0, %s110
      %s111 = sphi 0, %s108
      %s112 = sphi 0, %s111
      %s128 = sphi 0, %s112
      %s136 = sphi 0, %s138
      %s139 = sphi 0, %s136
      %s140 = sphi 0, %s139
      %s156 = sphi 0, %s140
    $region4: #{tpu_custom_call.1} parent=1 // loop_header_branch
      %21 = sbr.rel (%p19) target = $region8
    $region5: #{tpu_custom_call.1} parent=1 // loop_body
      %s23 = ssub.s32 %s18, 1
      %s24 = ssub.s32 %s18, 2
      %s31 = sadd.s32 1, %s26
      %p32 = scmp.ge.s32.totalorder %s31, 1
      %s33 = scalar_select %p32, 0, %s31
      %s34 = sadd.s32 1, %s25
      %s35 = scalar_select %p32, %s34, %s25
      %p36 = scmp.ge.s32.totalorder %s35, 2
      %s37 = scalar_select %p36, 0, %s35
      %s38 = ssub.s32 %s25, %s37
      %p39 = scmp.eq.s32.totalorder %s38, 0
      %s41 = sadd.s32 %s40, 1
      %s42 = scalar_select %p39, %s40, %s41
      %p45 = pneg %p39
      %p46 = scmp.eq.s32.totalorder %s18, 1
      %p47 = por %p45, %p46
      %p48 = scmp.ne.s32.totalorder %s40, %s43
      %p49 = scmp.eq.s32.totalorder %s18, 0
      %p50 = por %p48, %p49
      %p51 = scmp.ne.s32.totalorder %s40, %s43
      %p52 = scmp.eq.s32.totalorder %s23, 1
      %p53 = por %p51, %p52
      %p54 = scmp.ne.s32.totalorder %s43, %s44
      %p55 = scmp.eq.s32.totalorder %s23, 0
      %p56 = por %p54, %p55
      %p57 = scmp.ne.s32.totalorder %s43, %s44
      %p58 = scmp.eq.s32.totalorder %s24, 1
      %p59 = por %p57, %p58
      %p61 = scmp.ne.s32.totalorder %s44, %s60
      %p62 = scmp.eq.s32.totalorder %s24, 0
      %p63 = por %p61, %p62
      %s65 = sadd.s32 %s64, 1
      %p68 = scmp.eq.s32.totalorder %s18, 1
      %p69 = scmp.ne.s32.totalorder %s64, %s66
      %p70 = scmp.eq.s32.totalorder %s18, 0
      %p71 = por %p69, %p70
      %p72 = scmp.ne.s32.totalorder %s64, %s66
      %p73 = scmp.eq.s32.totalorder %s23, 1
      %p74 = por %p72, %p73
      %p75 = scmp.ne.s32.totalorder %s66, %s67
      %p76 = scmp.eq.s32.totalorder %s23, 0
      %p77 = por %p75, %p76
      %p78 = scmp.ne.s32.totalorder %s66, %s67
      %p79 = scmp.eq.s32.totalorder %s24, 1
      %p80 = por %p78, %p79
      %p82 = scmp.ne.s32.totalorder %s67, %s81
      %p83 = scmp.eq.s32.totalorder %s24, 0
      %p84 = por %p82, %p83
      %s86 = sadd.s32 %s85, 1
      %p89 = scmp.eq.s32.totalorder %s18, 1
      %p90 = scmp.ne.s32.totalorder %s85, %s87
      %p91 = scmp.eq.s32.totalorder %s18, 0
      %p92 = por %p90, %p91
      %p93 = scmp.ne.s32.totalorder %s85, %s87
      %p94 = scmp.eq.s32.totalorder %s23, 1
      %p95 = por %p93, %p94
      %p96 = scmp.ne.s32.totalorder %s87, %s88
      %p97 = scmp.eq.s32.totalorder %s23, 0
      %p98 = por %p96, %p97
      %p99 = scmp.ne.s32.totalorder %s87, %s88
      %p100 = scmp.eq.s32.totalorder %s24, 1
      %p101 = por %p99, %p100
      %p103 = scmp.ne.s32.totalorder %s88, %s102
      %p104 = scmp.eq.s32.totalorder %s24, 0
      %p105 = por %p103, %p104
      %s106 = ssub.s32 %s26, %s33
      %p107 = scmp.eq.s32.totalorder %s106, 0
      %s109 = sadd.s32 %s108, 1
      %s110 = scalar_select %p107, %s108, %s109
      %p113 = pneg %p107
      %p114 = scmp.eq.s32.totalorder %s18, 1
      %p115 = por %p113, %p114
      %p116 = scmp.ne.s32.totalorder %s108, %s111
      %p117 = scmp.eq.s32.totalorder %s18, 0
      %p118 = por %p116, %p117
      %p119 = scmp.ne.s32.totalorder %s108, %s111
      %p120 = scmp.eq.s32.totalorder %s23, 1
      %p121 = por %p119, %p120
      %p122 = scmp.ne.s32.totalorder %s111, %s112
      %p123 = scmp.eq.s32.totalorder %s23, 0
      %p124 = por %p122, %p123
      %p125 = scmp.ne.s32.totalorder %s111, %s112
      %p126 = scmp.eq.s32.totalorder %s24, 1
      %p127 = por %p125, %p126
      %p129 = scmp.ne.s32.totalorder %s112, %s128
      %p130 = scmp.eq.s32.totalorder %s24, 0
      %p131 = por %p129, %p130
      %s132 = ssub.s32 %s25, %s37
      %s133 = ssub.s32 %s26, %s33
      %s134 = sor.u32 %s132, %s133
      %p135 = scmp.eq.s32.totalorder %s134, 0
      %s137 = sadd.s32 %s136, 1
      %s138 = scalar_select %p135, %s136, %s137
      %p141 = pneg %p135
      %p142 = scmp.eq.s32.totalorder %s18, 1
      %p143 = por %p141, %p142
      %p144 = scmp.ne.s32.totalorder %s136, %s139
      %p145 = scmp.eq.s32.totalorder %s18, 0
      %p146 = por %p144, %p145
      %p147 = scmp.ne.s32.totalorder %s136, %s139
      %p148 = scmp.eq.s32.totalorder %s23, 1
      %p149 = por %p147, %p148
      %p150 = scmp.ne.s32.totalorder %s139, %s140
      %p151 = scmp.eq.s32.totalorder %s23, 0
      %p152 = por %p150, %p151
      %p153 = scmp.ne.s32.totalorder %s139, %s140
      %p154 = scmp.eq.s32.totalorder %s24, 1
      %p155 = por %p153, %p154
      %p157 = scmp.ne.s32.totalorder %s140, %s156
      %p158 = scmp.eq.s32.totalorder %s24, 0
      %p159 = por %p157, %p158
      %p160 = scmp.le.s32.totalorder 1, %s18
      %p161 = scmp.lt.s32.totalorder %s18, 3
      %p162 = pnand %p160, %p161
      %p163 = pneg %p162
      // Predicated region
      $region9: #{tpu_custom_call.1} parent=5 // pred_check
        _
      $region10: #{tpu_custom_call.1} parent=5 // pred_check_branch
        %165 = sbr.rel (%p162) target = $region12
      $region11: #{tpu_custom_call.1} parent=5 // pred_region
        %s166 = ssub.s32 %s18, 1
        // Predicated region
        $region13: #{tpu_custom_call.1} parent=11 // pred_check
          %p167 = pneg %p77
        $region14: #{tpu_custom_call.1} parent=11 // pred_check_branch
          %169 = sbr.rel (%p167) target = $region16
        $region15: #{tpu_custom_call.1} parent=11 // pred_region
          %s171 = ssub.s32 256, 256
          %172 = vsyncadd [#allocation7], %s171
          %s173 = sshll.u32 [#allocation6], 4
          %s174 = int_to_ptr.vmem [resolvable:$true] %s173
          %179 = dma.hbm_to_vmem [thread:$0]  %s1, 256, %s174, [#allocation7], 128, 128, 8
        $region16: #{tpu_custom_call.1} parent=11 // pred_fallthru
          _
        // Predicated region
        $region17: #{tpu_custom_call.1} parent=11 // pred_check
          %p180 = pneg %p98
        $region18: #{tpu_custom_call.1} parent=11 // pred_check_branch
          %182 = sbr.rel (%p180) target = $region20
        $region19: #{tpu_custom_call.1} parent=11 // pred_region
          %s184 = ssub.s32 1024, 1024
          %185 = vsyncadd [#allocation7], %s184
          %s186 = sshll.u32 [#allocation8], 4
          %s187 = int_to_ptr.vmem [resolvable:$true] %s186
          %192 = dma.hbm_to_vmem [thread:$0]  %s2, 1024, %s187, [#allocation7], 128, 128, 8
        $region20: #{tpu_custom_call.1} parent=11 // pred_fallthru
          _
        // Predicated region
        $region21: #{tpu_custom_call.1} parent=11 // pred_check
          %p193 = pneg %p124
        $region22: #{tpu_custom_call.1} parent=11 // pred_check_branch
          %195 = sbr.rel (%p193) target = $region24
        $region23: #{tpu_custom_call.1} parent=11 // pred_region
          %s197 = ssub.s32 18432, 18432
          %198 = vsyncadd [#allocation10], %s197
          %s199 = smul.addr %s28, 128
          %s200 = scalar_lea.hbm %s3, %s199
          %s201 = sshll.u32 [#allocation9], 4
          %s202 = int_to_ptr.vmem [resolvable:$true] %s201
          %207 = dma.hbm_to_vmem [thread:$0]  %s200, 18432, %s202, [#allocation10], 128, 128, 8
        $region24: #{tpu_custom_call.1} parent=11 // pred_fallthru
          _
      $region12: #{tpu_custom_call.1} parent=5 // pred_fallthru
        _
      %p208 = scmp.lt.s32.totalorder %s18, 2
      // Predicated region
      $region25: #{tpu_custom_call.1} parent=5 // pred_check
        %p209 = pneg %p208
      $region26: #{tpu_custom_call.1} parent=5 // pred_check_branch
        %211 = sbr.rel (%p209) target = $region28
      $region27: #{tpu_custom_call.1} parent=5 // pred_region
        // Predicated region
        $region29: #{tpu_custom_call.1} parent=27 // pred_check
          %p212 = pneg %p50
        $region30: #{tpu_custom_call.1} parent=27 // pred_check_branch
          %214 = sbr.rel (%p212) target = $region32
        $region31: #{tpu_custom_call.1} parent=27 // pred_region
          %s215 = sand.u32 %s40, 1
          %s216 = scalar_lea.sflag [#allocation4], %s215
          %s217 = sand.u32 %s40, 1
          %s218 = smul.addr %s217, 32
          %s219 = scalar_lea.vmem [#allocation3], %s218
          %s220 = smul.u32 4, %s25
          %s222 = ssub.s32 512, 512
          %223 = vsyncadd %s216, %s222
          %s224 = smul.addr %s220, 128
          %s225 = scalar_lea.hbm %s0, %s224
          %s226 = sshll.u32 %s219, 4
          %s227 = int_to_ptr.vmem [resolvable:$true] %s226
          %232 = dma.hbm_to_vmem [thread:$0]  %s225, 512, %s227, %s216, 128, 128, 8
        $region32: #{tpu_custom_call.1} parent=27 // pred_fallthru
          _
      $region28: #{tpu_custom_call.1} parent=5 // pred_fallthru
        _
      %p233 = scmp.le.s32.totalorder 1, %s18
      %p234 = scmp.lt.s32.totalorder %s18, 3
      %p235 = pnand %p233, %p234
      %p236 = pneg %p235
      // Predicated region
      $region33: #{tpu_custom_call.1} parent=5 // pred_check
        _
      $region34: #{tpu_custom_call.1} parent=5 // pred_check_branch
        %238 = sbr.rel (%p235) target = $region36
      $region35: #{tpu_custom_call.1} parent=5 // pred_region
        %s239 = ssub.s32 %s18, 1
        %s240 = sand.u32 %s43, 1
        %s241 = scalar_lea.sflag [#allocation4], %s240
        %s242 = sand.u32 %s43, 1
        %s243 = smul.addr %s242, 32
        %s244 = scalar_lea.vmem [#allocation3], %s243
        // Predicated region
        $region37: #{tpu_custom_call.1} parent=35 // pred_check
          %p245 = pneg %p56
        $region38: #{tpu_custom_call.1} parent=35 // pred_check_branch
          %247 = sbr.rel (%p245) target = $region40
        $region39: #{tpu_custom_call.1} parent=35 // pred_region
          %248 = dma.done %s241, 512
        $region40: #{tpu_custom_call.1} parent=35 // pred_fallthru
          _
        // Predicated region
        $region41: #{tpu_custom_call.1} parent=35 // pred_check
          %p249 = pneg %p77
        $region42: #{tpu_custom_call.1} parent=35 // pred_check_branch
          %251 = sbr.rel (%p249) target = $region44
        $region43: #{tpu_custom_call.1} parent=35 // pred_region
          %252 = dma.done [#allocation7], 256
        $region44: #{tpu_custom_call.1} parent=35 // pred_fallthru
          _
        // Predicated region
        $region45: #{tpu_custom_call.1} parent=35 // pred_check
          %p253 = pneg %p98
        $region46: #{tpu_custom_call.1} parent=35 // pred_check_branch
          %255 = sbr.rel (%p253) target = $region48
        $region47: #{tpu_custom_call.1} parent=35 // pred_region
          %256 = dma.done [#allocation7], 1024
        $region48: #{tpu_custom_call.1} parent=35 // pred_fallthru
          _
        // Predicated region
        $region49: #{tpu_custom_call.1} parent=35 // pred_check
          %p257 = pneg %p124
        $region50: #{tpu_custom_call.1} parent=35 // pred_check_branch
          %259 = sbr.rel (%p257) target = $region52
        $region51: #{tpu_custom_call.1} parent=35 // pred_region
          %260 = dma.done [#allocation10], 18432
        $region52: #{tpu_custom_call.1} parent=35 // pred_fallthru
          _
        %s261 = sand.u32 %s43, 1
        %s262 = scalar_lea.sflag [#allocation4], %s261
        %s263 = sand.u32 %s43, 1
        %s264 = smul.addr %s263, 32
        %s265 = scalar_lea.vmem [#allocation3], %s264
        %p266 = pneg %p56
        %p267 = pneg %p53
        %p268 = pneg %p77
        %p269 = pneg %p74
        %p270 = pneg %p98
        %p271 = pneg %p95
        %p272 = pneg %p124
        %p273 = pneg %p121
        %p274 = pneg %p152
        %p275 = pneg %p149
        %s276 = sand.u32 %s139, 1
        %s277 = scalar_lea.sflag [#allocation5], %s276
        %s278 = sand.u32 %s139, 1
        %s279 = smul.addr %s278, 32
        %s280 = scalar_lea.vmem [#allocation11], %s279
        %s281 = smul.u32 4, %s27
        %s282 = smul.u32 4, %s27
        %p283 = scmp.eq.s32.totalorder %s28, 0
        // Predicated region
        $region53: #{tpu_custom_call.1} parent=35 // pred_check
          %p284 = pneg %p283
        $region54: #{tpu_custom_call.1} parent=35 // pred_check_branch
          %286 = sbr.rel (%p284) target = $region56
        $region55: #{tpu_custom_call.1} parent=35 // pred_region
          %v287 = vld [vmem:[%s244] sm:$0xff]
          %v288 = vld [vmem:[%s244 + $0x8] sm:$0xff]
          %v289 = vld [vmem:[%s244 + $0x10] sm:$0xff]
          %v290 = vld [vmem:[%s244 + $0x18] sm:$0xff]
          %v291 = vsub.f32 0.0, %v287
          %v292 = vsub.f32 0.0, %v288
          %v293 = vsub.f32 0.0, %v289
          %v294 = vsub.f32 0.0, %v290
          %v295 = vmul.f32 %v291, 1.442695
          %v296 = vpow.pop %v295
          %v297 = vmul.f32 %v292, 1.442695
          %v298 = vpow.pop %v297
          %v299 = vmul.f32 %v293, 1.442695
          %v300 = vpow.pop %v299
          %v301 = vmul.f32 %v294, 1.442695
          %v302 = vpow.pop %v301
          %v303 = vadd.f32 %v296, 1.0
          %v304 = vadd.f32 %v298, 1.0
          %v305 = vadd.f32 %v300, 1.0
          %v306 = vadd.f32 %v302, 1.0
          %v307 = vrcp.pop %v303
          %v308 = vrcp.pop %v304
          %v309 = vrcp.pop %v305
          %v310 = vrcp.pop %v306
          %v311 = vmul.f32 %v287, %v307
          %v312 = vmul.f32 %v288, %v308
          %v313 = vmul.f32 %v289, %v309
          %v314 = vmul.f32 %v290, %v310
          %315 = vst [vmem:[#allocation2] sm:$0xff] %v311
          %316 = vst [vmem:[#allocation2 + $0x60] sm:$0xff] %v312
          %317 = vst [vmem:[#allocation2 + $0xc0] sm:$0xff] %v313
          %318 = vst [vmem:[#allocation2 + $0x120] sm:$0xff] %v314
          %v319 = vld [vmem:[#allocation6] sm:$0x1]
          %v320 = vld [vmem:[#allocation6 + $0x1] sm:$0x1]
          %v321 = vld [vmem:[#allocation6 + $0x2] sm:$0x1]
          %v322 = vld [vmem:[#allocation6 + $0x3] sm:$0x1]
          %v323 = vld [vmem:[#allocation6 + $0x4] sm:$0x1]
          %v324 = vld [vmem:[#allocation6 + $0x5] sm:$0x1]
          %v325 = vld [vmem:[#allocation6 + $0x6] sm:$0x1]
          %v326 = vld [vmem:[#allocation6 + $0x7] sm:$0x1]
          %v327 = vld [vmem:[#allocation6 + $0x8] sm:$0x1]
          %v328 = vld [vmem:[#allocation6 + $0x9] sm:$0x1]
          %v329 = vld [vmem:[#allocation6 + $0xa] sm:$0x1]
          %v330 = vld [vmem:[#allocation6 + $0xb] sm:$0x1]
          %v331 = vlaneseq
          %v332 = vshrl.u32 %v331, 7
          %v333 = vsub.s32 0, %v332
          %v334 = vrot.slane %v319, %v333
          %vm335 = vcmp.ge.f32.partialorder %v287, %v334
          %vm336 = vcmp.ge.f32.partialorder %v288, %v334
          %vm337 = vcmp.ge.f32.partialorder %v289, %v334
          %vm338 = vcmp.ge.f32.partialorder %v290, %v334
          %v339 = vlaneseq
          %v340 = vshrl.u32 %v339, 7
          %v341 = vsub.s32 0, %v340
          %v342 = vrot.slane %v320, %v341
          %vm343 = vcmp.lt.f32.partialorder %v287, %v342
          %vm344 = vcmp.lt.f32.partialorder %v288, %v342
          %vm345 = vcmp.lt.f32.partialorder %v289, %v342
          %vm346 = vcmp.lt.f32.partialorder %v290, %v342
          %vm347 = vmand %vm335, %vm343
          %vm348 = vmand %vm336, %vm344
          %vm349 = vmand %vm337, %vm345
          %vm350 = vmand %vm338, %vm346
          %v351 = vsel %vm347, 1, 0
          %v352 = vsel %vm348, 1, 0
          %v353 = vsel %vm349, 1, 0
          %v354 = vsel %vm350, 1, 0
          %v355 = vcvt.s32.f32 %v351
          %v356 = vcvt.s32.f32 %v352
          %v357 = vcvt.s32.f32 %v353
          %v358 = vcvt.s32.f32 %v354
          %359 = vst [vmem:[#allocation2 + $0x8] sm:$0xff] %v355
          %360 = vst [vmem:[#allocation2 + $0x68] sm:$0xff] %v356
          %361 = vst [vmem:[#allocation2 + $0xc8] sm:$0xff] %v357
          %362 = vst [vmem:[#allocation2 + $0x128] sm:$0xff] %v358
          %vm363 = vcmp.ge.f32.partialorder %v287, %v342
          %vm364 = vcmp.ge.f32.partialorder %v288, %v342
          %vm365 = vcmp.ge.f32.partialorder %v289, %v342
          %vm366 = vcmp.ge.f32.partialorder %v290, %v342
          %v367 = vlaneseq
          %v368 = vshrl.u32 %v367, 7
          %v369 = vsub.s32 0, %v368
          %v370 = vrot.slane %v321, %v369
          %vm371 = vcmp.lt.f32.partialorder %v287, %v370
          %vm372 = vcmp.lt.f32.partialorder %v288, %v370
          %vm373 = vcmp.lt.f32.partialorder %v289, %v370
          %vm374 = vcmp.lt.f32.partialorder %v290, %v370
          %vm375 = vmand %vm363, %vm371
          %vm376 = vmand %vm364, %vm372
          %vm377 = vmand %vm365, %vm373
          %vm378 = vmand %vm366, %vm374
          %v379 = vsel %vm375, 1, 0
          %v380 = vsel %vm376, 1, 0
          %v381 = vsel %vm377, 1, 0
          %v382 = vsel %vm378, 1, 0
          %v383 = vcvt.s32.f32 %v379
          %v384 = vcvt.s32.f32 %v380
          %v385 = vcvt.s32.f32 %v381
          %v386 = vcvt.s32.f32 %v382
          %387 = vst [vmem:[#allocation2 + $0x10] sm:$0xff] %v383
          %388 = vst [vmem:[#allocation2 + $0x70] sm:$0xff] %v384
          %389 = vst [vmem:[#allocation2 + $0xd0] sm:$0xff] %v385
          %390 = vst [vmem:[#allocation2 + $0x130] sm:$0xff] %v386
          %vm391 = vcmp.ge.f32.partialorder %v287, %v370
          %vm392 = vcmp.ge.f32.partialorder %v288, %v370
          %vm393 = vcmp.ge.f32.partialorder %v289, %v370
          %vm394 = vcmp.ge.f32.partialorder %v290, %v370
          %v395 = vlaneseq
          %v396 = vshrl.u32 %v395, 7
          %v397 = vsub.s32 0, %v396
          %v398 = vrot.slane %v322, %v397
          %vm399 = vcmp.lt.f32.partialorder %v287, %v398
          %vm400 = vcmp.lt.f32.partialorder %v288, %v398
          %vm401 = vcmp.lt.f32.partialorder %v289, %v398
          %vm402 = vcmp.lt.f32.partialorder %v290, %v398
          %vm403 = vmand %vm391, %vm399
          %vm404 = vmand %vm392, %vm400
          %vm405 = vmand %vm393, %vm401
          %vm406 = vmand %vm394, %vm402
          %v407 = vsel %vm403, 1, 0
          %v408 = vsel %vm404, 1, 0
          %v409 = vsel %vm405, 1, 0
          %v410 = vsel %vm406, 1, 0
          %v411 = vcvt.s32.f32 %v407
          %v412 = vcvt.s32.f32 %v408
          %v413 = vcvt.s32.f32 %v409
          %v414 = vcvt.s32.f32 %v410
          %415 = vst [vmem:[#allocation2 + $0x18] sm:$0xff] %v411
          %416 = vst [vmem:[#allocation2 + $0x78] sm:$0xff] %v412
          %417 = vst [vmem:[#allocation2 + $0xd8] sm:$0xff] %v413
          %418 = vst [vmem:[#allocation2 + $0x138] sm:$0xff] %v414
          %vm419 = vcmp.ge.f32.partialorder %v287, %v398
          %vm420 = vcmp.ge.f32.partialorder %v288, %v398
          %vm421 = vcmp.ge.f32.partialorder %v289, %v398
          %vm422 = vcmp.ge.f32.partialorder %v290, %v398
          %v423 = vlaneseq
          %v424 = vshrl.u32 %v423, 7
          %v425 = vsub.s32 0, %v424
          %v426 = vrot.slane %v323, %v425
          %vm427 = vcmp.lt.f32.partialorder %v287, %v426
          %vm428 = vcmp.lt.f32.partialorder %v288, %v426
          %vm429 = vcmp.lt.f32.partialorder %v289, %v426
          %vm430 = vcmp.lt.f32.partialorder %v290, %v426
          %vm431 = vmand %vm419, %vm427
          %vm432 = vmand %vm420, %vm428
          %vm433 = vmand %vm421, %vm429
          %vm434 = vmand %vm422, %vm430
          %v435 = vsel %vm431, 1, 0
          %v436 = vsel %vm432, 1, 0
          %v437 = vsel %vm433, 1, 0
          %v438 = vsel %vm434, 1, 0
          %v439 = vcvt.s32.f32 %v435
          %v440 = vcvt.s32.f32 %v436
          %v441 = vcvt.s32.f32 %v437
          %v442 = vcvt.s32.f32 %v438
          %443 = vst [vmem:[#allocation2 + $0x20] sm:$0xff] %v439
          %444 = vst [vmem:[#allocation2 + $0x80] sm:$0xff] %v440
          %445 = vst [vmem:[#allocation2 + $0xe0] sm:$0xff] %v441
          %446 = vst [vmem:[#allocation2 + $0x140] sm:$0xff] %v442
          %vm447 = vcmp.ge.f32.partialorder %v287, %v426
          %vm448 = vcmp.ge.f32.partialorder %v288, %v426
          %vm449 = vcmp.ge.f32.partialorder %v289, %v426
          %vm450 = vcmp.ge.f32.partialorder %v290, %v426
          %v451 = vlaneseq
          %v452 = vshrl.u32 %v451, 7
          %v453 = vsub.s32 0, %v452
          %v454 = vrot.slane %v324, %v453
          %vm455 = vcmp.lt.f32.partialorder %v287, %v454
          %vm456 = vcmp.lt.f32.partialorder %v288, %v454
          %vm457 = vcmp.lt.f32.partialorder %v289, %v454
          %vm458 = vcmp.lt.f32.partialorder %v290, %v454
          %vm459 = vmand %vm447, %vm455
          %vm460 = vmand %vm448, %vm456
          %vm461 = vmand %vm449, %vm457
          %vm462 = vmand %vm450, %vm458
          %v463 = vsel %vm459, 1, 0
          %v464 = vsel %vm460, 1, 0
          %v465 = vsel %vm461, 1, 0
          %v466 = vsel %vm462, 1, 0
          %v467 = vcvt.s32.f32 %v463
          %v468 = vcvt.s32.f32 %v464
          %v469 = vcvt.s32.f32 %v465
          %v470 = vcvt.s32.f32 %v466
          %471 = vst [vmem:[#allocation2 + $0x28] sm:$0xff] %v467
          %472 = vst [vmem:[#allocation2 + $0x88] sm:$0xff] %v468
          %473 = vst [vmem:[#allocation2 + $0xe8] sm:$0xff] %v469
          %474 = vst [vmem:[#allocation2 + $0x148] sm:$0xff] %v470
          %vm475 = vcmp.ge.f32.partialorder %v287, %v454
          %vm476 = vcmp.ge.f32.partialorder %v288, %v454
          %vm477 = vcmp.ge.f32.partialorder %v289, %v454
          %vm478 = vcmp.ge.f32.partialorder %v290, %v454
          %v479 = vlaneseq
          %v480 = vshrl.u32 %v479, 7
          %v481 = vsub.s32 0, %v480
          %v482 = vrot.slane %v325, %v481
          %vm483 = vcmp.lt.f32.partialorder %v287, %v482
          %vm484 = vcmp.lt.f32.partialorder %v288, %v482
          %vm485 = vcmp.lt.f32.partialorder %v289, %v482
          %vm486 = vcmp.lt.f32.partialorder %v290, %v482
          %vm487 = vmand %vm475, %vm483
          %vm488 = vmand %vm476, %vm484
          %vm489 = vmand %vm477, %vm485
          %vm490 = vmand %vm478, %vm486
          %v491 = vsel %vm487, 1, 0
          %v492 = vsel %vm488, 1, 0
          %v493 = vsel %vm489, 1, 0
          %v494 = vsel %vm490, 1, 0
          %v495 = vcvt.s32.f32 %v491
          %v496 = vcvt.s32.f32 %v492
          %v497 = vcvt.s32.f32 %v493
          %v498 = vcvt.s32.f32 %v494
          %499 = vst [vmem:[#allocation2 + $0x30] sm:$0xff] %v495
          %500 = vst [vmem:[#allocation2 + $0x90] sm:$0xff] %v496
          %501 = vst [vmem:[#allocation2 + $0xf0] sm:$0xff] %v497
          %502 = vst [vmem:[#allocation2 + $0x150] sm:$0xff] %v498
          %vm503 = vcmp.ge.f32.partialorder %v287, %v482
          %vm504 = vcmp.ge.f32.partialorder %v288, %v482
          %vm505 = vcmp.ge.f32.partialorder %v289, %v482
          %vm506 = vcmp.ge.f32.partialorder %v290, %v482
          %v507 = vlaneseq
          %v508 = vshrl.u32 %v507, 7
          %v509 = vsub.s32 0, %v508
          %v510 = vrot.slane %v326, %v509
          %vm511 = vcmp.lt.f32.partialorder %v287, %v510
          %vm512 = vcmp.lt.f32.partialorder %v288, %v510
          %vm513 = vcmp.lt.f32.partialorder %v289, %v510
          %vm514 = vcmp.lt.f32.partialorder %v290, %v510
          %vm515 = vmand %vm503, %vm511
          %vm516 = vmand %vm504, %vm512
          %vm517 = vmand %vm505, %vm513
          %vm518 = vmand %vm506, %vm514
          %v519 = vsel %vm515, 1, 0
          %v520 = vsel %vm516, 1, 0
          %v521 = vsel %vm517, 1, 0
          %v522 = vsel %vm518, 1, 0
          %v523 = vcvt.s32.f32 %v519
          %v524 = vcvt.s32.f32 %v520
          %v525 = vcvt.s32.f32 %v521
          %v526 = vcvt.s32.f32 %v522
          %527 = vst [vmem:[#allocation2 + $0x38] sm:$0xff] %v523
          %528 = vst [vmem:[#allocation2 + $0x98] sm:$0xff] %v524
          %529 = vst [vmem:[#allocation2 + $0xf8] sm:$0xff] %v525
          %530 = vst [vmem:[#allocation2 + $0x158] sm:$0xff] %v526
          %vm531 = vcmp.ge.f32.partialorder %v287, %v510
          %vm532 = vcmp.ge.f32.partialorder %v288, %v510
          %vm533 = vcmp.ge.f32.partialorder %v289, %v510
          %vm534 = vcmp.ge.f32.partialorder %v290, %v510
          %v535 = vlaneseq
          %v536 = vshrl.u32 %v535, 7
          %v537 = vsub.s32 0, %v536
          %v538 = vrot.slane %v327, %v537
          %vm539 = vcmp.lt.f32.partialorder %v287, %v538
          %vm540 = vcmp.lt.f32.partialorder %v288, %v538
          %vm541 = vcmp.lt.f32.partialorder %v289, %v538
          %vm542 = vcmp.lt.f32.partialorder %v290, %v538
          %vm543 = vmand %vm531, %vm539
          %vm544 = vmand %vm532, %vm540
          %vm545 = vmand %vm533, %vm541
          %vm546 = vmand %vm534, %vm542
          %v547 = vsel %vm543, 1, 0
          %v548 = vsel %vm544, 1, 0
          %v549 = vsel %vm545, 1, 0
          %v550 = vsel %vm546, 1, 0
          %v551 = vcvt.s32.f32 %v547
          %v552 = vcvt.s32.f32 %v548
          %v553 = vcvt.s32.f32 %v549
          %v554 = vcvt.s32.f32 %v550
          %555 = vst [vmem:[#allocation2 + $0x40] sm:$0xff] %v551
          %556 = vst [vmem:[#allocation2 + $0xa0] sm:$0xff] %v552
          %557 = vst [vmem:[#allocation2 + $0x100] sm:$0xff] %v553
          %558 = vst [vmem:[#allocation2 + $0x160] sm:$0xff] %v554
          %vm559 = vcmp.ge.f32.partialorder %v287, %v538
          %vm560 = vcmp.ge.f32.partialorder %v288, %v538
          %vm561 = vcmp.ge.f32.partialorder %v289, %v538
          %vm562 = vcmp.ge.f32.partialorder %v290, %v538
          %v563 = vlaneseq
          %v564 = vshrl.u32 %v563, 7
          %v565 = vsub.s32 0, %v564
          %v566 = vrot.slane %v328, %v565
          %vm567 = vcmp.lt.f32.partialorder %v287, %v566
          %vm568 = vcmp.lt.f32.partialorder %v288, %v566
          %vm569 = vcmp.lt.f32.partialorder %v289, %v566
          %vm570 = vcmp.lt.f32.partialorder %v290, %v566
          %vm571 = vmand %vm559, %vm567
          %vm572 = vmand %vm560, %vm568
          %vm573 = vmand %vm561, %vm569
          %vm574 = vmand %vm562, %vm570
          %v575 = vsel %vm571, 1, 0
          %v576 = vsel %vm572, 1, 0
          %v577 = vsel %vm573, 1, 0
          %v578 = vsel %vm574, 1, 0
          %v579 = vcvt.s32.f32 %v575
          %v580 = vcvt.s32.f32 %v576
          %v581 = vcvt.s32.f32 %v577
          %v582 = vcvt.s32.f32 %v578
          %583 = vst [vmem:[#allocation2 + $0x48] sm:$0xff] %v579
          %584 = vst [vmem:[#allocation2 + $0xa8] sm:$0xff] %v580
          %585 = vst [vmem:[#allocation2 + $0x108] sm:$0xff] %v581
          %586 = vst [vmem:[#allocation2 + $0x168] sm:$0xff] %v582
          %vm587 = vcmp.ge.f32.partialorder %v287, %v566
          %vm588 = vcmp.ge.f32.partialorder %v288, %v566
          %vm589 = vcmp.ge.f32.partialorder %v289, %v566
          %vm590 = vcmp.ge.f32.partialorder %v290, %v566
          %v591 = vlaneseq
          %v592 = vshrl.u32 %v591, 7
          %v593 = vsub.s32 0, %v592
          %v594 = vrot.slane %v329, %v593
          %vm595 = vcmp.lt.f32.partialorder %v287, %v594
          %vm596 = vcmp.lt.f32.partialorder %v288, %v594
          %vm597 = vcmp.lt.f32.partialorder %v289, %v594
          %vm598 = vcmp.lt.f32.partialorder %v290, %v594
          %vm599 = vmand %vm587, %vm595
          %vm600 = vmand %vm588, %vm596
          %vm601 = vmand %vm589, %vm597
          %vm602 = vmand %vm590, %vm598
          %v603 = vsel %vm599, 1, 0
          %v604 = vsel %vm600, 1, 0
          %v605 = vsel %vm601, 1, 0
          %v606 = vsel %vm602, 1, 0
          %v607 = vcvt.s32.f32 %v603
          %v608 = vcvt.s32.f32 %v604
          %v609 = vcvt.s32.f32 %v605
          %v610 = vcvt.s32.f32 %v606
          %611 = vst [vmem:[#allocation2 + $0x50] sm:$0xff] %v607
          %612 = vst [vmem:[#allocation2 + $0xb0] sm:$0xff] %v608
          %613 = vst [vmem:[#allocation2 + $0x110] sm:$0xff] %v609
          %614 = vst [vmem:[#allocation2 + $0x170] sm:$0xff] %v610
          %vm615 = vcmp.ge.f32.partialorder %v287, %v594
          %vm616 = vcmp.ge.f32.partialorder %v288, %v594
          %vm617 = vcmp.ge.f32.partialorder %v289, %v594
          %vm618 = vcmp.ge.f32.partialorder %v290, %v594
          %v619 = vlaneseq
          %v620 = vshrl.u32 %v619, 7
          %v621 = vsub.s32 0, %v620
          %v622 = vrot.slane %v330, %v621
          %vm623 = vcmp.lt.f32.partialorder %v287, %v622
          %vm624 = vcmp.lt.f32.partialorder %v288, %v622
          %vm625 = vcmp.lt.f32.partialorder %v289, %v622
          %vm626 = vcmp.lt.f32.partialorder %v290, %v622
          %vm627 = vmand %vm615, %vm623
          %vm628 = vmand %vm616, %vm624
          %vm629 = vmand %vm617, %vm625
          %vm630 = vmand %vm618, %vm626
          %v631 = vsel %vm627, 1, 0
          %v632 = vsel %vm628, 1, 0
          %v633 = vsel %vm629, 1, 0
          %v634 = vsel %vm630, 1, 0
          %v635 = vcvt.s32.f32 %v631
          %v636 = vcvt.s32.f32 %v632
          %v637 = vcvt.s32.f32 %v633
          %v638 = vcvt.s32.f32 %v634
          %639 = vst [vmem:[#allocation2 + $0x58] sm:$0xff] %v635
          %640 = vst [vmem:[#allocation2 + $0xb8] sm:$0xff] %v636
          %641 = vst [vmem:[#allocation2 + $0x118] sm:$0xff] %v637
          %642 = vst [vmem:[#allocation2 + $0x178] sm:$0xff] %v638
          %v643 = vld [vmem:[#allocation2 + $0x8] sm:$0xff]
          %v644 = vld [vmem:[#allocation2 + $0x68] sm:$0xff]
          %v645 = vld [vmem:[#allocation2 + $0xc8] sm:$0xff]
          %v646 = vld [vmem:[#allocation2 + $0x128] sm:$0xff]
          %v647 = vld [vmem:[#allocation2 + $0x10] sm:$0xff]
          %v648 = vld [vmem:[#allocation2 + $0x70] sm:$0xff]
          %v649 = vld [vmem:[#allocation2 + $0xd0] sm:$0xff]
          %v650 = vld [vmem:[#allocation2 + $0x130] sm:$0xff]
          %v651 = vld [vmem:[#allocation8] sm:$0x1]
          %v652 = vld [vmem:[#allocation8 + $0xa] sm:$0x1]
          %v653 = vsub.f32 %v287, %v334
          %v654 = vsub.f32 %v288, %v334
          %v655 = vsub.f32 %v289, %v334
          %v656 = vsub.f32 %v290, %v334
          %v657 = vlaneseq
          %v658 = vshrl.u32 %v657, 7
          %v659 = vsub.s32 0, %v658
          %v660 = vrot.slane %v651, %v659
          %v661 = vmul.f32 %v653, %v660
          %v662 = vmul.f32 %v654, %v660
          %v663 = vmul.f32 %v655, %v660
          %v664 = vmul.f32 %v656, %v660
          %v665 = vmul.f32 %v661, %v643
          %v666 = vmul.f32 %v662, %v644
          %v667 = vmul.f32 %v663, %v645
          %v668 = vmul.f32 %v664, %v646
          %v669 = vsub.f32 %v370, %v287
          %v670 = vsub.f32 %v370, %v288
          %v671 = vsub.f32 %v370, %v289
          %v672 = vsub.f32 %v370, %v290
          %v673 = vlaneseq
          %v674 = vshrl.u32 %v673, 7
          %v675 = vsub.s32 0, %v674
          %v676 = vrot.slane %v652, %v675
          %v677 = vmul.f32 %v669, %v676
          %v678 = vmul.f32 %v670, %v676
          %v679 = vmul.f32 %v671, %v676
          %v680 = vmul.f32 %v672, %v676
          %v681 = vmul.f32 %v677, %v647
          %v682 = vmul.f32 %v678, %v648
          %v683 = vmul.f32 %v679, %v649
          %v684 = vmul.f32 %v680, %v650
          %v685 = vadd.f32 %v665, %v681
          %v686 = vadd.f32 %v666, %v682
          %v687 = vadd.f32 %v667, %v683
          %v688 = vadd.f32 %v668, %v684
          %689 = vst [vmem:[#allocation2 + $0x8] sm:$0xff] %v685
          %690 = vst [vmem:[#allocation2 + $0x68] sm:$0xff] %v686
          %691 = vst [vmem:[#allocation2 + $0xc8] sm:$0xff] %v687
          %692 = vst [vmem:[#allocation2 + $0x128] sm:$0xff] %v688
          %v693 = vld [vmem:[#allocation2 + $0x18] sm:$0xff]
          %v694 = vld [vmem:[#allocation2 + $0x78] sm:$0xff]
          %v695 = vld [vmem:[#allocation2 + $0xd8] sm:$0xff]
          %v696 = vld [vmem:[#allocation2 + $0x138] sm:$0xff]
          %v697 = vld [vmem:[#allocation8 + $0x1] sm:$0x1]
          %v698 = vld [vmem:[#allocation8 + $0xb] sm:$0x1]
          %v699 = vsub.f32 %v287, %v342
          %v700 = vsub.f32 %v288, %v342
          %v701 = vsub.f32 %v289, %v342
          %v702 = vsub.f32 %v290, %v342
          %v703 = vlaneseq
          %v704 = vshrl.u32 %v703, 7
          %v705 = vsub.s32 0, %v704
          %v706 = vrot.slane %v697, %v705
          %v707 = vmul.f32 %v699, %v706
          %v708 = vmul.f32 %v700, %v706
          %v709 = vmul.f32 %v701, %v706
          %v710 = vmul.f32 %v702, %v706
          %v711 = vmul.f32 %v707, %v647
          %v712 = vmul.f32 %v708, %v648
          %v713 = vmul.f32 %v709, %v649
          %v714 = vmul.f32 %v710, %v650
          %v715 = vsub.f32 %v398, %v287
          %v716 = vsub.f32 %v398, %v288
          %v717 = vsub.f32 %v398, %v289
          %v718 = vsub.f32 %v398, %v290
          %v719 = vlaneseq
          %v720 = vshrl.u32 %v719, 7
          %v721 = vsub.s32 0, %v720
          %v722 = vrot.slane %v698, %v721
          %v723 = vmul.f32 %v715, %v722
          %v724 = vmul.f32 %v716, %v722
          %v725 = vmul.f32 %v717, %v722
          %v726 = vmul.f32 %v718, %v722
          %v727 = vmul.f32 %v723, %v693
          %v728 = vmul.f32 %v724, %v694
          %v729 = vmul.f32 %v725, %v695
          %v730 = vmul.f32 %v726, %v696
          %v731 = vadd.f32 %v711, %v727
          %v732 = vadd.f32 %v712, %v728
          %v733 = vadd.f32 %v713, %v729
          %v734 = vadd.f32 %v714, %v730
          %735 = vst [vmem:[#allocation2 + $0x10] sm:$0xff] %v731
          %736 = vst [vmem:[#allocation2 + $0x70] sm:$0xff] %v732
          %737 = vst [vmem:[#allocation2 + $0xd0] sm:$0xff] %v733
          %738 = vst [vmem:[#allocation2 + $0x130] sm:$0xff] %v734
          %v739 = vld [vmem:[#allocation2 + $0x20] sm:$0xff]
          %v740 = vld [vmem:[#allocation2 + $0x80] sm:$0xff]
          %v741 = vld [vmem:[#allocation2 + $0xe0] sm:$0xff]
          %v742 = vld [vmem:[#allocation2 + $0x140] sm:$0xff]
          %v743 = vld [vmem:[#allocation8 + $0x2] sm:$0x1]
          %v744 = vld [vmem:[#allocation8 + $0xc] sm:$0x1]
          %v745 = vsub.f32 %v287, %v370
          %v746 = vsub.f32 %v288, %v370
          %v747 = vsub.f32 %v289, %v370
          %v748 = vsub.f32 %v290, %v370
          %v749 = vlaneseq
          %v750 = vshrl.u32 %v749, 7
          %v751 = vsub.s32 0, %v750
          %v752 = vrot.slane %v743, %v751
          %v753 = vmul.f32 %v745, %v752
          %v754 = vmul.f32 %v746, %v752
          %v755 = vmul.f32 %v747, %v752
          %v756 = vmul.f32 %v748, %v752
          %v757 = vmul.f32 %v753, %v693
          %v758 = vmul.f32 %v754, %v694
          %v759 = vmul.f32 %v755, %v695
          %v760 = vmul.f32 %v756, %v696
          %v761 = vsub.f32 %v426, %v287
          %v762 = vsub.f32 %v426, %v288
          %v763 = vsub.f32 %v426, %v289
          %v764 = vsub.f32 %v426, %v290
          %v765 = vlaneseq
          %v766 = vshrl.u32 %v765, 7
          %v767 = vsub.s32 0, %v766
          %v768 = vrot.slane %v744, %v767
          %v769 = vmul.f32 %v761, %v768
          %v770 = vmul.f32 %v762, %v768
          %v771 = vmul.f32 %v763, %v768
          %v772 = vmul.f32 %v764, %v768
          %v773 = vmul.f32 %v769, %v739
          %v774 = vmul.f32 %v770, %v740
          %v775 = vmul.f32 %v771, %v741
          %v776 = vmul.f32 %v772, %v742
          %v777 = vadd.f32 %v757, %v773
          %v778 = vadd.f32 %v758, %v774
          %v779 = vadd.f32 %v759, %v775
          %v780 = vadd.f32 %v760, %v776
          %781 = vst [vmem:[#allocation2 + $0x18] sm:$0xff] %v777
          %782 = vst [vmem:[#allocation2 + $0x78] sm:$0xff] %v778
          %783 = vst [vmem:[#allocation2 + $0xd8] sm:$0xff] %v779
          %784 = vst [vmem:[#allocation2 + $0x138] sm:$0xff] %v780
          %v785 = vld [vmem:[#allocation2 + $0x28] sm:$0xff]
          %v786 = vld [vmem:[#allocation2 + $0x88] sm:$0xff]
          %v787 = vld [vmem:[#allocation2 + $0xe8] sm:$0xff]
          %v788 = vld [vmem:[#allocation2 + $0x148] sm:$0xff]
          %v789 = vld [vmem:[#allocation8 + $0x3] sm:$0x1]
          %v790 = vld [vmem:[#allocation8 + $0xd] sm:$0x1]
          %v791 = vsub.f32 %v287, %v398
          %v792 = vsub.f32 %v288, %v398
          %v793 = vsub.f32 %v289, %v398
          %v794 = vsub.f32 %v290, %v398
          %v795 = vlaneseq
          %v796 = vshrl.u32 %v795, 7
          %v797 = vsub.s32 0, %v796
          %v798 = vrot.slane %v789, %v797
          %v799 = vmul.f32 %v791, %v798
          %v800 = vmul.f32 %v792, %v798
          %v801 = vmul.f32 %v793, %v798
          %v802 = vmul.f32 %v794, %v798
          %v803 = vmul.f32 %v799, %v739
          %v804 = vmul.f32 %v800, %v740
          %v805 = vmul.f32 %v801, %v741
          %v806 = vmul.f32 %v802, %v742
          %v807 = vsub.f32 %v454, %v287
          %v808 = vsub.f32 %v454, %v288
          %v809 = vsub.f32 %v454, %v289
          %v810 = vsub.f32 %v454, %v290
          %v811 = vlaneseq
          %v812 = vshrl.u32 %v811, 7
          %v813 = vsub.s32 0, %v812
          %v814 = vrot.slane %v790, %v813
          %v815 = vmul.f32 %v807, %v814
          %v816 = vmul.f32 %v808, %v814
          %v817 = vmul.f32 %v809, %v814
          %v818 = vmul.f32 %v810, %v814
          %v819 = vmul.f32 %v815, %v785
          %v820 = vmul.f32 %v816, %v786
          %v821 = vmul.f32 %v817, %v787
          %v822 = vmul.f32 %v818, %v788
          %v823 = vadd.f32 %v803, %v819
          %v824 = vadd.f32 %v804, %v820
          %v825 = vadd.f32 %v805, %v821
          %v826 = vadd.f32 %v806, %v822
          %827 = vst [vmem:[#allocation2 + $0x20] sm:$0xff] %v823
          %828 = vst [vmem:[#allocation2 + $0x80] sm:$0xff] %v824
          %829 = vst [vmem:[#allocation2 + $0xe0] sm:$0xff] %v825
          %830 = vst [vmem:[#allocation2 + $0x140] sm:$0xff] %v826
          %v831 = vld [vmem:[#allocation2 + $0x30] sm:$0xff]
          %v832 = vld [vmem:[#allocation2 + $0x90] sm:$0xff]
          %v833 = vld [vmem:[#allocation2 + $0xf0] sm:$0xff]
          %v834 = vld [vmem:[#allocation2 + $0x150] sm:$0xff]
          %v835 = vld [vmem:[#allocation8 + $0x4] sm:$0x1]
          %v836 = vld [vmem:[#allocation8 + $0xe] sm:$0x1]
          %v837 = vsub.f32 %v287, %v426
          %v838 = vsub.f32 %v288, %v426
          %v839 = vsub.f32 %v289, %v426
          %v840 = vsub.f32 %v290, %v426
          %v841 = vlaneseq
          %v842 = vshrl.u32 %v841, 7
          %v843 = vsub.s32 0, %v842
          %v844 = vrot.slane %v835, %v843
          %v845 = vmul.f32 %v837, %v844
          %v846 = vmul.f32 %v838, %v844
          %v847 = vmul.f32 %v839, %v844
          %v848 = vmul.f32 %v840, %v844
          %v849 = vmul.f32 %v845, %v785
          %v850 = vmul.f32 %v846, %v786
          %v851 = vmul.f32 %v847, %v787
          %v852 = vmul.f32 %v848, %v788
          %v853 = vsub.f32 %v482, %v287
          %v854 = vsub.f32 %v482, %v288
          %v855 = vsub.f32 %v482, %v289
          %v856 = vsub.f32 %v482, %v290
          %v857 = vlaneseq
          %v858 = vshrl.u32 %v857, 7
          %v859 = vsub.s32 0, %v858
          %v860 = vrot.slane %v836, %v859
          %v861 = vmul.f32 %v853, %v860
          %v862 = vmul.f32 %v854, %v860
          %v863 = vmul.f32 %v855, %v860
          %v864 = vmul.f32 %v856, %v860
          %v865 = vmul.f32 %v861, %v831
          %v866 = vmul.f32 %v862, %v832
          %v867 = vmul.f32 %v863, %v833
          %v868 = vmul.f32 %v864, %v834
          %v869 = vadd.f32 %v849, %v865
          %v870 = vadd.f32 %v850, %v866
          %v871 = vadd.f32 %v851, %v867
          %v872 = vadd.f32 %v852, %v868
          %873 = vst [vmem:[#allocation2 + $0x28] sm:$0xff] %v869
          %874 = vst [vmem:[#allocation2 + $0x88] sm:$0xff] %v870
          %875 = vst [vmem:[#allocation2 + $0xe8] sm:$0xff] %v871
          %876 = vst [vmem:[#allocation2 + $0x148] sm:$0xff] %v872
          %v877 = vld [vmem:[#allocation2 + $0x38] sm:$0xff]
          %v878 = vld [vmem:[#allocation2 + $0x98] sm:$0xff]
          %v879 = vld [vmem:[#allocation2 + $0xf8] sm:$0xff]
          %v880 = vld [vmem:[#allocation2 + $0x158] sm:$0xff]
          %v881 = vld [vmem:[#allocation8 + $0x5] sm:$0x1]
          %v882 = vld [vmem:[#allocation8 + $0xf] sm:$0x1]
          %v883 = vsub.f32 %v287, %v454
          %v884 = vsub.f32 %v288, %v454
          %v885 = vsub.f32 %v289, %v454
          %v886 = vsub.f32 %v290, %v454
          %v887 = vlaneseq
          %v888 = vshrl.u32 %v887, 7
          %v889 = vsub.s32 0, %v888
          %v890 = vrot.slane %v881, %v889
          %v891 = vmul.f32 %v883, %v890
          %v892 = vmul.f32 %v884, %v890
          %v893 = vmul.f32 %v885, %v890
          %v894 = vmul.f32 %v886, %v890
          %v895 = vmul.f32 %v891, %v831
          %v896 = vmul.f32 %v892, %v832
          %v897 = vmul.f32 %v893, %v833
          %v898 = vmul.f32 %v894, %v834
          %v899 = vsub.f32 %v510, %v287
          %v900 = vsub.f32 %v510, %v288
          %v901 = vsub.f32 %v510, %v289
          %v902 = vsub.f32 %v510, %v290
          %v903 = vlaneseq
          %v904 = vshrl.u32 %v903, 7
          %v905 = vsub.s32 0, %v904
          %v906 = vrot.slane %v882, %v905
          %v907 = vmul.f32 %v899, %v906
          %v908 = vmul.f32 %v900, %v906
          %v909 = vmul.f32 %v901, %v906
          %v910 = vmul.f32 %v902, %v906
          %v911 = vmul.f32 %v907, %v877
          %v912 = vmul.f32 %v908, %v878
          %v913 = vmul.f32 %v909, %v879
          %v914 = vmul.f32 %v910, %v880
          %v915 = vadd.f32 %v895, %v911
          %v916 = vadd.f32 %v896, %v912
          %v917 = vadd.f32 %v897, %v913
          %v918 = vadd.f32 %v898, %v914
          %919 = vst [vmem:[#allocation2 + $0x30] sm:$0xff] %v915
          %920 = vst [vmem:[#allocation2 + $0x90] sm:$0xff] %v916
          %921 = vst [vmem:[#allocation2 + $0xf0] sm:$0xff] %v917
          %922 = vst [vmem:[#allocation2 + $0x150] sm:$0xff] %v918
          %v923 = vld [vmem:[#allocation2 + $0x40] sm:$0xff]
          %v924 = vld [vmem:[#allocation2 + $0xa0] sm:$0xff]
          %v925 = vld [vmem:[#allocation2 + $0x100] sm:$0xff]
          %v926 = vld [vmem:[#allocation2 + $0x160] sm:$0xff]
          %v927 = vld [vmem:[#allocation8 + $0x6] sm:$0x1]
          %v928 = vld [vmem:[#allocation8 + $0x10] sm:$0x1]
          %v929 = vsub.f32 %v287, %v482
          %v930 = vsub.f32 %v288, %v482
          %v931 = vsub.f32 %v289, %v482
          %v932 = vsub.f32 %v290, %v482
          %v933 = vlaneseq
          %v934 = vshrl.u32 %v933, 7
          %v935 = vsub.s32 0, %v934
          %v936 = vrot.slane %v927, %v935
          %v937 = vmul.f32 %v929, %v936
          %v938 = vmul.f32 %v930, %v936
          %v939 = vmul.f32 %v931, %v936
          %v940 = vmul.f32 %v932, %v936
          %v941 = vmul.f32 %v937, %v877
          %v942 = vmul.f32 %v938, %v878
          %v943 = vmul.f32 %v939, %v879
          %v944 = vmul.f32 %v940, %v880
          %v945 = vsub.f32 %v538, %v287
          %v946 = vsub.f32 %v538, %v288
          %v947 = vsub.f32 %v538, %v289
          %v948 = vsub.f32 %v538, %v290
          %v949 = vlaneseq
          %v950 = vshrl.u32 %v949, 7
          %v951 = vsub.s32 0, %v950
          %v952 = vrot.slane %v928, %v951
          %v953 = vmul.f32 %v945, %v952
          %v954 = vmul.f32 %v946, %v952
          %v955 = vmul.f32 %v947, %v952
          %v956 = vmul.f32 %v948, %v952
          %v957 = vmul.f32 %v953, %v923
          %v958 = vmul.f32 %v954, %v924
          %v959 = vmul.f32 %v955, %v925
          %v960 = vmul.f32 %v956, %v926
          %v961 = vadd.f32 %v941, %v957
          %v962 = vadd.f32 %v942, %v958
          %v963 = vadd.f32 %v943, %v959
          %v964 = vadd.f32 %v944, %v960
          %965 = vst [vmem:[#allocation2 + $0x38] sm:$0xff] %v961
          %966 = vst [vmem:[#allocation2 + $0x98] sm:$0xff] %v962
          %967 = vst [vmem:[#allocation2 + $0xf8] sm:$0xff] %v963
          %968 = vst [vmem:[#allocation2 + $0x158] sm:$0xff] %v964
          %v969 = vld [vmem:[#allocation2 + $0x48] sm:$0xff]
          %v970 = vld [vmem:[#allocation2 + $0xa8] sm:$0xff]
          %v971 = vld [vmem:[#allocation2 + $0x108] sm:$0xff]
          %v972 = vld [vmem:[#allocation2 + $0x168] sm:$0xff]
          %v973 = vld [vmem:[#allocation8 + $0x7] sm:$0x1]
          %v974 = vld [vmem:[#allocation8 + $0x11] sm:$0x1]
          %v975 = vsub.f32 %v287, %v510
          %v976 = vsub.f32 %v288, %v510
          %v977 = vsub.f32 %v289, %v510
          %v978 = vsub.f32 %v290, %v510
          %v979 = vlaneseq
          %v980 = vshrl.u32 %v979, 7
          %v981 = vsub.s32 0, %v980
          %v982 = vrot.slane %v973, %v981
          %v983 = vmul.f32 %v975, %v982
          %v984 = vmul.f32 %v976, %v982
          %v985 = vmul.f32 %v977, %v982
          %v986 = vmul.f32 %v978, %v982
          %v987 = vmul.f32 %v983, %v923
          %v988 = vmul.f32 %v984, %v924
          %v989 = vmul.f32 %v985, %v925
          %v990 = vmul.f32 %v986, %v926
          %v991 = vsub.f32 %v566, %v287
          %v992 = vsub.f32 %v566, %v288
          %v993 = vsub.f32 %v566, %v289
          %v994 = vsub.f32 %v566, %v290
          %v995 = vlaneseq
          %v996 = vshrl.u32 %v995, 7
          %v997 = vsub.s32 0, %v996
          %v998 = vrot.slane %v974, %v997
          %v999 = vmul.f32 %v991, %v998
          %v1000 = vmul.f32 %v992, %v998
          %v1001 = vmul.f32 %v993, %v998
          %v1002 = vmul.f32 %v994, %v998
          %v1003 = vmul.f32 %v999, %v969
          %v1004 = vmul.f32 %v1000, %v970
          %v1005 = vmul.f32 %v1001, %v971
          %v1006 = vmul.f32 %v1002, %v972
          %v1007 = vadd.f32 %v987, %v1003
          %v1008 = vadd.f32 %v988, %v1004
          %v1009 = vadd.f32 %v989, %v1005
          %v1010 = vadd.f32 %v990, %v1006
          %1011 = vst [vmem:[#allocation2 + $0x40] sm:$0xff] %v1007
          %1012 = vst [vmem:[#allocation2 + $0xa0] sm:$0xff] %v1008
          %1013 = vst [vmem:[#allocation2 + $0x100] sm:$0xff] %v1009
          %1014 = vst [vmem:[#allocation2 + $0x160] sm:$0xff] %v1010
          %v1015 = vld [vmem:[#allocation2 + $0x50] sm:$0xff]
          %v1016 = vld [vmem:[#allocation2 + $0xb0] sm:$0xff]
          %v1017 = vld [vmem:[#allocation2 + $0x110] sm:$0xff]
          %v1018 = vld [vmem:[#allocation2 + $0x170] sm:$0xff]
          %v1019 = vld [vmem:[#allocation8 + $0x8] sm:$0x1]
          %v1020 = vld [vmem:[#allocation8 + $0x12] sm:$0x1]
          %v1021 = vsub.f32 %v287, %v538
          %v1022 = vsub.f32 %v288, %v538
          %v1023 = vsub.f32 %v289, %v538
          %v1024 = vsub.f32 %v290, %v538
          %v1025 = vlaneseq
          %v1026 = vshrl.u32 %v1025, 7
          %v1027 = vsub.s32 0, %v1026
          %v1028 = vrot.slane %v1019, %v1027
          %v1029 = vmul.f32 %v1021, %v1028
          %v1030 = vmul.f32 %v1022, %v1028
          %v1031 = vmul.f32 %v1023, %v1028
          %v1032 = vmul.f32 %v1024, %v1028
          %v1033 = vmul.f32 %v1029, %v969
          %v1034 = vmul.f32 %v1030, %v970
          %v1035 = vmul.f32 %v1031, %v971
          %v1036 = vmul.f32 %v1032, %v972
          %v1037 = vsub.f32 %v594, %v287
          %v1038 = vsub.f32 %v594, %v288
          %v1039 = vsub.f32 %v594, %v289
          %v1040 = vsub.f32 %v594, %v290
          %v1041 = vlaneseq
          %v1042 = vshrl.u32 %v1041, 7
          %v1043 = vsub.s32 0, %v1042
          %v1044 = vrot.slane %v1020, %v1043
          %v1045 = vmul.f32 %v1037, %v1044
          %v1046 = vmul.f32 %v1038, %v1044
          %v1047 = vmul.f32 %v1039, %v1044
          %v1048 = vmul.f32 %v1040, %v1044
          %v1049 = vmul.f32 %v1045, %v1015
          %v1050 = vmul.f32 %v1046, %v1016
          %v1051 = vmul.f32 %v1047, %v1017
          %v1052 = vmul.f32 %v1048, %v1018
          %v1053 = vadd.f32 %v1033, %v1049
          %v1054 = vadd.f32 %v1034, %v1050
          %v1055 = vadd.f32 %v1035, %v1051
          %v1056 = vadd.f32 %v1036, %v1052
          %1057 = vst [vmem:[#allocation2 + $0x48] sm:$0xff] %v1053
          %1058 = vst [vmem:[#allocation2 + $0xa8] sm:$0xff] %v1054
          %1059 = vst [vmem:[#allocation2 + $0x108] sm:$0xff] %v1055
          %1060 = vst [vmem:[#allocation2 + $0x168] sm:$0xff] %v1056
          %v1061 = vld [vmem:[#allocation2 + $0x58] sm:$0xff]
          %v1062 = vld [vmem:[#allocation2 + $0xb8] sm:$0xff]
          %v1063 = vld [vmem:[#allocation2 + $0x118] sm:$0xff]
          %v1064 = vld [vmem:[#allocation2 + $0x178] sm:$0xff]
          %v1065 = vld [vmem:[#allocation8 + $0x9] sm:$0x1]
          %v1066 = vld [vmem:[#allocation8 + $0x13] sm:$0x1]
          %v1067 = vsub.f32 %v287, %v566
          %v1068 = vsub.f32 %v288, %v566
          %v1069 = vsub.f32 %v289, %v566
          %v1070 = vsub.f32 %v290, %v566
          %v1071 = vlaneseq
          %v1072 = vshrl.u32 %v1071, 7
          %v1073 = vsub.s32 0, %v1072
          %v1074 = vrot.slane %v1065, %v1073
          %v1075 = vmul.f32 %v1067, %v1074
          %v1076 = vmul.f32 %v1068, %v1074
          %v1077 = vmul.f32 %v1069, %v1074
          %v1078 = vmul.f32 %v1070, %v1074
          %v1079 = vmul.f32 %v1075, %v1015
          %v1080 = vmul.f32 %v1076, %v1016
          %v1081 = vmul.f32 %v1077, %v1017
          %v1082 = vmul.f32 %v1078, %v1018
          %v1083 = vsub.f32 %v622, %v287
          %v1084 = vsub.f32 %v622, %v288
          %v1085 = vsub.f32 %v622, %v289
          %v1086 = vsub.f32 %v622, %v290
          %v1087 = vlaneseq
          %v1088 = vshrl.u32 %v1087, 7
          %v1089 = vsub.s32 0, %v1088
          %v1090 = vrot.slane %v1066, %v1089
          %v1091 = vmul.f32 %v1083, %v1090
          %v1092 = vmul.f32 %v1084, %v1090
          %v1093 = vmul.f32 %v1085, %v1090
          %v1094 = vmul.f32 %v1086, %v1090
          %v1095 = vmul.f32 %v1091, %v1061
          %v1096 = vmul.f32 %v1092, %v1062
          %v1097 = vmul.f32 %v1093, %v1063
          %v1098 = vmul.f32 %v1094, %v1064
          %v1099 = vadd.f32 %v1079, %v1095
          %v1100 = vadd.f32 %v1080, %v1096
          %v1101 = vadd.f32 %v1081, %v1097
          %v1102 = vadd.f32 %v1082, %v1098
          %1103 = vst [vmem:[#allocation2 + $0x50] sm:$0xff] %v1099
          %1104 = vst [vmem:[#allocation2 + $0xb0] sm:$0xff] %v1100
          %1105 = vst [vmem:[#allocation2 + $0x110] sm:$0xff] %v1101
          %1106 = vst [vmem:[#allocation2 + $0x170] sm:$0xff] %v1102
          %v1107 = vld [vmem:[#allocation2 + $0x8] sm:$0xff]
          %v1108 = vld [vmem:[#allocation2 + $0x68] sm:$0xff]
          %v1109 = vld [vmem:[#allocation2 + $0xc8] sm:$0xff]
          %v1110 = vld [vmem:[#allocation2 + $0x128] sm:$0xff]
          %v1111 = vld [vmem:[#allocation2 + $0x10] sm:$0xff]
          %v1112 = vld [vmem:[#allocation2 + $0x70] sm:$0xff]
          %v1113 = vld [vmem:[#allocation2 + $0xd0] sm:$0xff]
          %v1114 = vld [vmem:[#allocation2 + $0x130] sm:$0xff]
          %v1115 = vld [vmem:[#allocation8 + $0x14] sm:$0x1]
          %v1116 = vld [vmem:[#allocation8 + $0x1e] sm:$0x1]
          %v1117 = vlaneseq
          %v1118 = vshrl.u32 %v1117, 7
          %v1119 = vsub.s32 0, %v1118
          %v1120 = vrot.slane %v1115, %v1119
          %v1121 = vmul.f32 %v653, %v1120
          %v1122 = vmul.f32 %v654, %v1120
          %v1123 = vmul.f32 %v655, %v1120
          %v1124 = vmul.f32 %v656, %v1120
          %v1125 = vmul.f32 %v1121, %v1107
          %v1126 = vmul.f32 %v1122, %v1108
          %v1127 = vmul.f32 %v1123, %v1109
          %v1128 = vmul.f32 %v1124, %v1110
          %v1129 = vlaneseq
          %v1130 = vshrl.u32 %v1129, 7
          %v1131 = vsub.s32 0, %v1130
          %v1132 = vrot.slane %v1116, %v1131
          %v1133 = vmul.f32 %v715, %v1132
          %v1134 = vmul.f32 %v716, %v1132
          %v1135 = vmul.f32 %v717, %v1132
          %v1136 = vmul.f32 %v718, %v1132
          %v1137 = vmul.f32 %v1133, %v1111
          %v1138 = vmul.f32 %v1134, %v1112
          %v1139 = vmul.f32 %v1135, %v1113
          %v1140 = vmul.f32 %v1136, %v1114
          %v1141 = vadd.f32 %v1125, %v1137
          %v1142 = vadd.f32 %v1126, %v1138
          %v1143 = vadd.f32 %v1127, %v1139
          %v1144 = vadd.f32 %v1128, %v1140
          %1145 = vst [vmem:[#allocation2 + $0x8] sm:$0xff] %v1141
          %1146 = vst [vmem:[#allocation2 + $0x68] sm:$0xff] %v1142
          %1147 = vst [vmem:[#allocation2 + $0xc8] sm:$0xff] %v1143
          %1148 = vst [vmem:[#allocation2 + $0x128] sm:$0xff] %v1144
          %v1149 = vld [vmem:[#allocation2 + $0x18] sm:$0xff]
          %v1150 = vld [vmem:[#allocation2 + $0x78] sm:$0xff]
          %v1151 = vld [vmem:[#allocation2 + $0xd8] sm:$0xff]
          %v1152 = vld [vmem:[#allocation2 + $0x138] sm:$0xff]
          %v1153 = vld [vmem:[#allocation8 + $0x15] sm:$0x1]
          %v1154 = vld [vmem:[#allocation8 + $0x1f] sm:$0x1]
          %v1155 = vlaneseq
          %v1156 = vshrl.u32 %v1155, 7
          %v1157 = vsub.s32 0, %v1156
          %v1158 = vrot.slane %v1153, %v1157
          %v1159 = vmul.f32 %v699, %v1158
          %v1160 = vmul.f32 %v700, %v1158
          %v1161 = vmul.f32 %v701, %v1158
          %v1162 = vmul.f32 %v702, %v1158
          %v1163 = vmul.f32 %v1159, %v1111
          %v1164 = vmul.f32 %v1160, %v1112
          %v1165 = vmul.f32 %v1161, %v1113
          %v1166 = vmul.f32 %v1162, %v1114
          %v1167 = vlaneseq
          %v1168 = vshrl.u32 %v1167, 7
          %v1169 = vsub.s32 0, %v1168
          %v1170 = vrot.slane %v1154, %v1169
          %v1171 = vmul.f32 %v761, %v1170
          %v1172 = vmul.f32 %v762, %v1170
          %v1173 = vmul.f32 %v763, %v1170
          %v1174 = vmul.f32 %v764, %v1170
          %v1175 = vmul.f32 %v1171, %v1149
          %v1176 = vmul.f32 %v1172, %v1150
          %v1177 = vmul.f32 %v1173, %v1151
          %v1178 = vmul.f32 %v1174, %v1152
          %v1179 = vadd.f32 %v1163, %v1175
          %v1180 = vadd.f32 %v1164, %v1176
          %v1181 = vadd.f32 %v1165, %v1177
          %v1182 = vadd.f32 %v1166, %v1178
          %1183 = vst [vmem:[#allocation2 + $0x10] sm:$0xff] %v1179
          %1184 = vst [vmem:[#allocation2 + $0x70] sm:$0xff] %v1180
          %1185 = vst [vmem:[#allocation2 + $0xd0] sm:$0xff] %v1181
          %1186 = vst [vmem:[#allocation2 + $0x130] sm:$0xff] %v1182
          %v1187 = vld [vmem:[#allocation2 + $0x20] sm:$0xff]
          %v1188 = vld [vmem:[#allocation2 + $0x80] sm:$0xff]
          %v1189 = vld [vmem:[#allocation2 + $0xe0] sm:$0xff]
          %v1190 = vld [vmem:[#allocation2 + $0x140] sm:$0xff]
          %v1191 = vld [vmem:[#allocation8 + $0x16] sm:$0x1]
          %v1192 = vld [vmem:[#allocation8 + $0x20] sm:$0x1]
          %v1193 = vlaneseq
          %v1194 = vshrl.u32 %v1193, 7
          %v1195 = vsub.s32 0, %v1194
          %v1196 = vrot.slane %v1191, %v1195
          %v1197 = vmul.f32 %v745, %v1196
          %v1198 = vmul.f32 %v746, %v1196
          %v1199 = vmul.f32 %v747, %v1196
          %v1200 = vmul.f32 %v748, %v1196
          %v1201 = vmul.f32 %v1197, %v1149
          %v1202 = vmul.f32 %v1198, %v1150
          %v1203 = vmul.f32 %v1199, %v1151
          %v1204 = vmul.f32 %v1200, %v1152
          %v1205 = vlaneseq
          %v1206 = vshrl.u32 %v1205, 7
          %v1207 = vsub.s32 0, %v1206
          %v1208 = vrot.slane %v1192, %v1207
          %v1209 = vmul.f32 %v807, %v1208
          %v1210 = vmul.f32 %v808, %v1208
          %v1211 = vmul.f32 %v809, %v1208
          %v1212 = vmul.f32 %v810, %v1208
          %v1213 = vmul.f32 %v1209, %v1187
          %v1214 = vmul.f32 %v1210, %v1188
          %v1215 = vmul.f32 %v1211, %v1189
          %v1216 = vmul.f32 %v1212, %v1190
          %v1217 = vadd.f32 %v1201, %v1213
          %v1218 = vadd.f32 %v1202, %v1214
          %v1219 = vadd.f32 %v1203, %v1215
          %v1220 = vadd.f32 %v1204, %v1216
          %1221 = vst [vmem:[#allocation2 + $0x18] sm:$0xff] %v1217
          %1222 = vst [vmem:[#allocation2 + $0x78] sm:$0xff] %v1218
          %1223 = vst [vmem:[#allocation2 + $0xd8] sm:$0xff] %v1219
          %1224 = vst [vmem:[#allocation2 + $0x138] sm:$0xff] %v1220
          %v1225 = vld [vmem:[#allocation2 + $0x28] sm:$0xff]
          %v1226 = vld [vmem:[#allocation2 + $0x88] sm:$0xff]
          %v1227 = vld [vmem:[#allocation2 + $0xe8] sm:$0xff]
          %v1228 = vld [vmem:[#allocation2 + $0x148] sm:$0xff]
          %v1229 = vld [vmem:[#allocation8 + $0x17] sm:$0x1]
          %v1230 = vld [vmem:[#allocation8 + $0x21] sm:$0x1]
          %v1231 = vlaneseq
          %v1232 = vshrl.u32 %v1231, 7
          %v1233 = vsub.s32 0, %v1232
          %v1234 = vrot.slane %v1229, %v1233
          %v1235 = vmul.f32 %v791, %v1234
          %v1236 = vmul.f32 %v792, %v1234
          %v1237 = vmul.f32 %v793, %v1234
          %v1238 = vmul.f32 %v794, %v1234
          %v1239 = vmul.f32 %v1235, %v1187
          %v1240 = vmul.f32 %v1236, %v1188
          %v1241 = vmul.f32 %v1237, %v1189
          %v1242 = vmul.f32 %v1238, %v1190
          %v1243 = vlaneseq
          %v1244 = vshrl.u32 %v1243, 7
          %v1245 = vsub.s32 0, %v1244
          %v1246 = vrot.slane %v1230, %v1245
          %v1247 = vmul.f32 %v853, %v1246
          %v1248 = vmul.f32 %v854, %v1246
          %v1249 = vmul.f32 %v855, %v1246
          %v1250 = vmul.f32 %v856, %v1246
          %v1251 = vmul.f32 %v1247, %v1225
          %v1252 = vmul.f32 %v1248, %v1226
          %v1253 = vmul.f32 %v1249, %v1227
          %v1254 = vmul.f32 %v1250, %v1228
          %v1255 = vadd.f32 %v1239, %v1251
          %v1256 = vadd.f32 %v1240, %v1252
          %v1257 = vadd.f32 %v1241, %v1253
          %v1258 = vadd.f32 %v1242, %v1254
          %1259 = vst [vmem:[#allocation2 + $0x20] sm:$0xff] %v1255
          %1260 = vst [vmem:[#allocation2 + $0x80] sm:$0xff] %v1256
          %1261 = vst [vmem:[#allocation2 + $0xe0] sm:$0xff] %v1257
          %1262 = vst [vmem:[#allocation2 + $0x140] sm:$0xff] %v1258
          %v1263 = vld [vmem:[#allocation2 + $0x30] sm:$0xff]
          %v1264 = vld [vmem:[#allocation2 + $0x90] sm:$0xff]
          %v1265 = vld [vmem:[#allocation2 + $0xf0] sm:$0xff]
          %v1266 = vld [vmem:[#allocation2 + $0x150] sm:$0xff]
          %v1267 = vld [vmem:[#allocation8 + $0x18] sm:$0x1]
          %v1268 = vld [vmem:[#allocation8 + $0x22] sm:$0x1]
          %v1269 = vlaneseq
          %v1270 = vshrl.u32 %v1269, 7
          %v1271 = vsub.s32 0, %v1270
          %v1272 = vrot.slane %v1267, %v1271
          %v1273 = vmul.f32 %v837, %v1272
          %v1274 = vmul.f32 %v838, %v1272
          %v1275 = vmul.f32 %v839, %v1272
          %v1276 = vmul.f32 %v840, %v1272
          %v1277 = vmul.f32 %v1273, %v1225
          %v1278 = vmul.f32 %v1274, %v1226
          %v1279 = vmul.f32 %v1275, %v1227
          %v1280 = vmul.f32 %v1276, %v1228
          %v1281 = vlaneseq
          %v1282 = vshrl.u32 %v1281, 7
          %v1283 = vsub.s32 0, %v1282
          %v1284 = vrot.slane %v1268, %v1283
          %v1285 = vmul.f32 %v899, %v1284
          %v1286 = vmul.f32 %v900, %v1284
          %v1287 = vmul.f32 %v901, %v1284
          %v1288 = vmul.f32 %v902, %v1284
          %v1289 = vmul.f32 %v1285, %v1263
          %v1290 = vmul.f32 %v1286, %v1264
          %v1291 = vmul.f32 %v1287, %v1265
          %v1292 = vmul.f32 %v1288, %v1266
          %v1293 = vadd.f32 %v1277, %v1289
          %v1294 = vadd.f32 %v1278, %v1290
          %v1295 = vadd.f32 %v1279, %v1291
          %v1296 = vadd.f32 %v1280, %v1292
          %1297 = vst [vmem:[#allocation2 + $0x28] sm:$0xff] %v1293
          %1298 = vst [vmem:[#allocation2 + $0x88] sm:$0xff] %v1294
          %1299 = vst [vmem:[#allocation2 + $0xe8] sm:$0xff] %v1295
          %1300 = vst [vmem:[#allocation2 + $0x148] sm:$0xff] %v1296
          %v1301 = vld [vmem:[#allocation2 + $0x38] sm:$0xff]
          %v1302 = vld [vmem:[#allocation2 + $0x98] sm:$0xff]
          %v1303 = vld [vmem:[#allocation2 + $0xf8] sm:$0xff]
          %v1304 = vld [vmem:[#allocation2 + $0x158] sm:$0xff]
          %v1305 = vld [vmem:[#allocation8 + $0x19] sm:$0x1]
          %v1306 = vld [vmem:[#allocation8 + $0x23] sm:$0x1]
          %v1307 = vlaneseq
          %v1308 = vshrl.u32 %v1307, 7
          %v1309 = vsub.s32 0, %v1308
          %v1310 = vrot.slane %v1305, %v1309
          %v1311 = vmul.f32 %v883, %v1310
          %v1312 = vmul.f32 %v884, %v1310
          %v1313 = vmul.f32 %v885, %v1310
          %v1314 = vmul.f32 %v886, %v1310
          %v1315 = vmul.f32 %v1311, %v1263
          %v1316 = vmul.f32 %v1312, %v1264
          %v1317 = vmul.f32 %v1313, %v1265
          %v1318 = vmul.f32 %v1314, %v1266
          %v1319 = vlaneseq
          %v1320 = vshrl.u32 %v1319, 7
          %v1321 = vsub.s32 0, %v1320
          %v1322 = vrot.slane %v1306, %v1321
          %v1323 = vmul.f32 %v945, %v1322
          %v1324 = vmul.f32 %v946, %v1322
          %v1325 = vmul.f32 %v947, %v1322
          %v1326 = vmul.f32 %v948, %v1322
          %v1327 = vmul.f32 %v1323, %v1301
          %v1328 = vmul.f32 %v1324, %v1302
          %v1329 = vmul.f32 %v1325, %v1303
          %v1330 = vmul.f32 %v1326, %v1304
          %v1331 = vadd.f32 %v1315, %v1327
          %v1332 = vadd.f32 %v1316, %v1328
          %v1333 = vadd.f32 %v1317, %v1329
          %v1334 = vadd.f32 %v1318, %v1330
          %1335 = vst [vmem:[#allocation2 + $0x30] sm:$0xff] %v1331
          %1336 = vst [vmem:[#allocation2 + $0x90] sm:$0xff] %v1332
          %1337 = vst [vmem:[#allocation2 + $0xf0] sm:$0xff] %v1333
          %1338 = vst [vmem:[#allocation2 + $0x150] sm:$0xff] %v1334
          %v1339 = vld [vmem:[#allocation2 + $0x40] sm:$0xff]
          %v1340 = vld [vmem:[#allocation2 + $0xa0] sm:$0xff]
          %v1341 = vld [vmem:[#allocation2 + $0x100] sm:$0xff]
          %v1342 = vld [vmem:[#allocation2 + $0x160] sm:$0xff]
          %v1343 = vld [vmem:[#allocation8 + $0x1a] sm:$0x1]
          %v1344 = vld [vmem:[#allocation8 + $0x24] sm:$0x1]
          %v1345 = vlaneseq
          %v1346 = vshrl.u32 %v1345, 7
          %v1347 = vsub.s32 0, %v1346
          %v1348 = vrot.slane %v1343, %v1347
          %v1349 = vmul.f32 %v929, %v1348
          %v1350 = vmul.f32 %v930, %v1348
          %v1351 = vmul.f32 %v931, %v1348
          %v1352 = vmul.f32 %v932, %v1348
          %v1353 = vmul.f32 %v1349, %v1301
          %v1354 = vmul.f32 %v1350, %v1302
          %v1355 = vmul.f32 %v1351, %v1303
          %v1356 = vmul.f32 %v1352, %v1304
          %v1357 = vlaneseq
          %v1358 = vshrl.u32 %v1357, 7
          %v1359 = vsub.s32 0, %v1358
          %v1360 = vrot.slane %v1344, %v1359
          %v1361 = vmul.f32 %v991, %v1360
          %v1362 = vmul.f32 %v992, %v1360
          %v1363 = vmul.f32 %v993, %v1360
          %v1364 = vmul.f32 %v994, %v1360
          %v1365 = vmul.f32 %v1361, %v1339
          %v1366 = vmul.f32 %v1362, %v1340
          %v1367 = vmul.f32 %v1363, %v1341
          %v1368 = vmul.f32 %v1364, %v1342
          %v1369 = vadd.f32 %v1353, %v1365
          %v1370 = vadd.f32 %v1354, %v1366
          %v1371 = vadd.f32 %v1355, %v1367
          %v1372 = vadd.f32 %v1356, %v1368
          %1373 = vst [vmem:[#allocation2 + $0x38] sm:$0xff] %v1369
          %1374 = vst [vmem:[#allocation2 + $0x98] sm:$0xff] %v1370
          %1375 = vst [vmem:[#allocation2 + $0xf8] sm:$0xff] %v1371
          %1376 = vst [vmem:[#allocation2 + $0x158] sm:$0xff] %v1372
          %v1377 = vld [vmem:[#allocation2 + $0x48] sm:$0xff]
          %v1378 = vld [vmem:[#allocation2 + $0xa8] sm:$0xff]
          %v1379 = vld [vmem:[#allocation2 + $0x108] sm:$0xff]
          %v1380 = vld [vmem:[#allocation2 + $0x168] sm:$0xff]
          %v1381 = vld [vmem:[#allocation8 + $0x1b] sm:$0x1]
          %v1382 = vld [vmem:[#allocation8 + $0x25] sm:$0x1]
          %v1383 = vlaneseq
          %v1384 = vshrl.u32 %v1383, 7
          %v1385 = vsub.s32 0, %v1384
          %v1386 = vrot.slane %v1381, %v1385
          %v1387 = vmul.f32 %v975, %v1386
          %v1388 = vmul.f32 %v976, %v1386
          %v1389 = vmul.f32 %v977, %v1386
          %v1390 = vmul.f32 %v978, %v1386
          %v1391 = vmul.f32 %v1387, %v1339
          %v1392 = vmul.f32 %v1388, %v1340
          %v1393 = vmul.f32 %v1389, %v1341
          %v1394 = vmul.f32 %v1390, %v1342
          %v1395 = vlaneseq
          %v1396 = vshrl.u32 %v1395, 7
          %v1397 = vsub.s32 0, %v1396
          %v1398 = vrot.slane %v1382, %v1397
          %v1399 = vmul.f32 %v1037, %v1398
          %v1400 = vmul.f32 %v1038, %v1398
          %v1401 = vmul.f32 %v1039, %v1398
          %v1402 = vmul.f32 %v1040, %v1398
          %v1403 = vmul.f32 %v1399, %v1377
          %v1404 = vmul.f32 %v1400, %v1378
          %v1405 = vmul.f32 %v1401, %v1379
          %v1406 = vmul.f32 %v1402, %v1380
          %v1407 = vadd.f32 %v1391, %v1403
          %v1408 = vadd.f32 %v1392, %v1404
          %v1409 = vadd.f32 %v1393, %v1405
          %v1410 = vadd.f32 %v1394, %v1406
          %1411 = vst [vmem:[#allocation2 + $0x40] sm:$0xff] %v1407
          %1412 = vst [vmem:[#allocation2 + $0xa0] sm:$0xff] %v1408
          %1413 = vst [vmem:[#allocation2 + $0x100] sm:$0xff] %v1409
          %1414 = vst [vmem:[#allocation2 + $0x160] sm:$0xff] %v1410
          %v1415 = vld [vmem:[#allocation2 + $0x50] sm:$0xff]
          %v1416 = vld [vmem:[#allocation2 + $0xb0] sm:$0xff]
          %v1417 = vld [vmem:[#allocation2 + $0x110] sm:$0xff]
          %v1418 = vld [vmem:[#allocation2 + $0x170] sm:$0xff]
          %v1419 = vld [vmem:[#allocation8 + $0x1c] sm:$0x1]
          %v1420 = vld [vmem:[#allocation8 + $0x26] sm:$0x1]
          %v1421 = vlaneseq
          %v1422 = vshrl.u32 %v1421, 7
          %v1423 = vsub.s32 0, %v1422
          %v1424 = vrot.slane %v1419, %v1423
          %v1425 = vmul.f32 %v1021, %v1424
          %v1426 = vmul.f32 %v1022, %v1424
          %v1427 = vmul.f32 %v1023, %v1424
          %v1428 = vmul.f32 %v1024, %v1424
          %v1429 = vmul.f32 %v1425, %v1377
          %v1430 = vmul.f32 %v1426, %v1378
          %v1431 = vmul.f32 %v1427, %v1379
          %v1432 = vmul.f32 %v1428, %v1380
          %v1433 = vlaneseq
          %v1434 = vshrl.u32 %v1433, 7
          %v1435 = vsub.s32 0, %v1434
          %v1436 = vrot.slane %v1420, %v1435
          %v1437 = vmul.f32 %v1083, %v1436
          %v1438 = vmul.f32 %v1084, %v1436
          %v1439 = vmul.f32 %v1085, %v1436
          %v1440 = vmul.f32 %v1086, %v1436
          %v1441 = vmul.f32 %v1437, %v1415
          %v1442 = vmul.f32 %v1438, %v1416
          %v1443 = vmul.f32 %v1439, %v1417
          %v1444 = vmul.f32 %v1440, %v1418
          %v1445 = vadd.f32 %v1429, %v1441
          %v1446 = vadd.f32 %v1430, %v1442
          %v1447 = vadd.f32 %v1431, %v1443
          %v1448 = vadd.f32 %v1432, %v1444
          %1449 = vst [vmem:[#allocation2 + $0x48] sm:$0xff] %v1445
          %1450 = vst [vmem:[#allocation2 + $0xa8] sm:$0xff] %v1446
          %1451 = vst [vmem:[#allocation2 + $0x108] sm:$0xff] %v1447
          %1452 = vst [vmem:[#allocation2 + $0x168] sm:$0xff] %v1448
          %v1453 = vld [vmem:[#allocation2 + $0x8] sm:$0xff]
          %v1454 = vld [vmem:[#allocation2 + $0x68] sm:$0xff]
          %v1455 = vld [vmem:[#allocation2 + $0xc8] sm:$0xff]
          %v1456 = vld [vmem:[#allocation2 + $0x128] sm:$0xff]
          %v1457 = vld [vmem:[#allocation2 + $0x10] sm:$0xff]
          %v1458 = vld [vmem:[#allocation2 + $0x70] sm:$0xff]
          %v1459 = vld [vmem:[#allocation2 + $0xd0] sm:$0xff]
          %v1460 = vld [vmem:[#allocation2 + $0x130] sm:$0xff]
          %v1461 = vld [vmem:[#allocation8 + $0x28] sm:$0x1]
          %v1462 = vld [vmem:[#allocation8 + $0x32] sm:$0x1]
          %v1463 = vlaneseq
          %v1464 = vshrl.u32 %v1463, 7
          %v1465 = vsub.s32 0, %v1464
          %v1466 = vrot.slane %v1461, %v1465
          %v1467 = vmul.f32 %v653, %v1466
          %v1468 = vmul.f32 %v654, %v1466
          %v1469 = vmul.f32 %v655, %v1466
          %v1470 = vmul.f32 %v656, %v1466
          %v1471 = vmul.f32 %v1467, %v1453
          %v1472 = vmul.f32 %v1468, %v1454
          %v1473 = vmul.f32 %v1469, %v1455
          %v1474 = vmul.f32 %v1470, %v1456
          %v1475 = vlaneseq
          %v1476 = vshrl.u32 %v1475, 7
          %v1477 = vsub.s32 0, %v1476
          %v1478 = vrot.slane %v1462, %v1477
          %v1479 = vmul.f32 %v761, %v1478
          %v1480 = vmul.f32 %v762, %v1478
          %v1481 = vmul.f32 %v763, %v1478
          %v1482 = vmul.f32 %v764, %v1478
          %v1483 = vmul.f32 %v1479, %v1457
          %v1484 = vmul.f32 %v1480, %v1458
          %v1485 = vmul.f32 %v1481, %v1459
          %v1486 = vmul.f32 %v1482, %v1460
          %v1487 = vadd.f32 %v1471, %v1483
          %v1488 = vadd.f32 %v1472, %v1484
          %v1489 = vadd.f32 %v1473, %v1485
          %v1490 = vadd.f32 %v1474, %v1486
          %1491 = vst [vmem:[#allocation2 + $0x8] sm:$0xff] %v1487
          %1492 = vst [vmem:[#allocation2 + $0x68] sm:$0xff] %v1488
          %1493 = vst [vmem:[#allocation2 + $0xc8] sm:$0xff] %v1489
          %1494 = vst [vmem:[#allocation2 + $0x128] sm:$0xff] %v1490
          %v1495 = vld [vmem:[#allocation2 + $0x18] sm:$0xff]
          %v1496 = vld [vmem:[#allocation2 + $0x78] sm:$0xff]
          %v1497 = vld [vmem:[#allocation2 + $0xd8] sm:$0xff]
          %v1498 = vld [vmem:[#allocation2 + $0x138] sm:$0xff]
          %v1499 = vld [vmem:[#allocation8 + $0x29] sm:$0x1]
          %v1500 = vld [vmem:[#allocation8 + $0x33] sm:$0x1]
          %v1501 = vlaneseq
          %v1502 = vshrl.u32 %v1501, 7
          %v1503 = vsub.s32 0, %v1502
          %v1504 = vrot.slane %v1499, %v1503
          %v1505 = vmul.f32 %v699, %v1504
          %v1506 = vmul.f32 %v700, %v1504
          %v1507 = vmul.f32 %v701, %v1504
          %v1508 = vmul.f32 %v702, %v1504
          %v1509 = vmul.f32 %v1505, %v1457
          %v1510 = vmul.f32 %v1506, %v1458
          %v1511 = vmul.f32 %v1507, %v1459
          %v1512 = vmul.f32 %v1508, %v1460
          %v1513 = vlaneseq
          %v1514 = vshrl.u32 %v1513, 7
          %v1515 = vsub.s32 0, %v1514
          %v1516 = vrot.slane %v1500, %v1515
          %v1517 = vmul.f32 %v807, %v1516
          %v1518 = vmul.f32 %v808, %v1516
          %v1519 = vmul.f32 %v809, %v1516
          %v1520 = vmul.f32 %v810, %v1516
          %v1521 = vmul.f32 %v1517, %v1495
          %v1522 = vmul.f32 %v1518, %v1496
          %v1523 = vmul.f32 %v1519, %v1497
          %v1524 = vmul.f32 %v1520, %v1498
          %v1525 = vadd.f32 %v1509, %v1521
          %v1526 = vadd.f32 %v1510, %v1522
          %v1527 = vadd.f32 %v1511, %v1523
          %v1528 = vadd.f32 %v1512, %v1524
          %1529 = vst [vmem:[#allocation2 + $0x10] sm:$0xff] %v1525
          %1530 = vst [vmem:[#allocation2 + $0x70] sm:$0xff] %v1526
          %1531 = vst [vmem:[#allocation2 + $0xd0] sm:$0xff] %v1527
          %1532 = vst [vmem:[#allocation2 + $0x130] sm:$0xff] %v1528
          %v1533 = vld [vmem:[#allocation2 + $0x20] sm:$0xff]
          %v1534 = vld [vmem:[#allocation2 + $0x80] sm:$0xff]
          %v1535 = vld [vmem:[#allocation2 + $0xe0] sm:$0xff]
          %v1536 = vld [vmem:[#allocation2 + $0x140] sm:$0xff]
          %v1537 = vld [vmem:[#allocation8 + $0x2a] sm:$0x1]
          %v1538 = vld [vmem:[#allocation8 + $0x34] sm:$0x1]
          %v1539 = vlaneseq
          %v1540 = vshrl.u32 %v1539, 7
          %v1541 = vsub.s32 0, %v1540
          %v1542 = vrot.slane %v1537, %v1541
          %v1543 = vmul.f32 %v745, %v1542
          %v1544 = vmul.f32 %v746, %v1542
          %v1545 = vmul.f32 %v747, %v1542
          %v1546 = vmul.f32 %v748, %v1542
          %v1547 = vmul.f32 %v1543, %v1495
          %v1548 = vmul.f32 %v1544, %v1496
          %v1549 = vmul.f32 %v1545, %v1497
          %v1550 = vmul.f32 %v1546, %v1498
          %v1551 = vlaneseq
          %v1552 = vshrl.u32 %v1551, 7
          %v1553 = vsub.s32 0, %v1552
          %v1554 = vrot.slane %v1538, %v1553
          %v1555 = vmul.f32 %v853, %v1554
          %v1556 = vmul.f32 %v854, %v1554
          %v1557 = vmul.f32 %v855, %v1554
          %v1558 = vmul.f32 %v856, %v1554
          %v1559 = vmul.f32 %v1555, %v1533
          %v1560 = vmul.f32 %v1556, %v1534
          %v1561 = vmul.f32 %v1557, %v1535
          %v1562 = vmul.f32 %v1558, %v1536
          %v1563 = vadd.f32 %v1547, %v1559
          %v1564 = vadd.f32 %v1548, %v1560
          %v1565 = vadd.f32 %v1549, %v1561
          %v1566 = vadd.f32 %v1550, %v1562
          %1567 = vst [vmem:[#allocation2 + $0x18] sm:$0xff] %v1563
          %1568 = vst [vmem:[#allocation2 + $0x78] sm:$0xff] %v1564
          %1569 = vst [vmem:[#allocation2 + $0xd8] sm:$0xff] %v1565
          %1570 = vst [vmem:[#allocation2 + $0x138] sm:$0xff] %v1566
          %v1571 = vld [vmem:[#allocation2 + $0x28] sm:$0xff]
          %v1572 = vld [vmem:[#allocation2 + $0x88] sm:$0xff]
          %v1573 = vld [vmem:[#allocation2 + $0xe8] sm:$0xff]
          %v1574 = vld [vmem:[#allocation2 + $0x148] sm:$0xff]
          %v1575 = vld [vmem:[#allocation8 + $0x2b] sm:$0x1]
          %v1576 = vld [vmem:[#allocation8 + $0x35] sm:$0x1]
          %v1577 = vlaneseq
          %v1578 = vshrl.u32 %v1577, 7
          %v1579 = vsub.s32 0, %v1578
          %v1580 = vrot.slane %v1575, %v1579
          %v1581 = vmul.f32 %v791, %v1580
          %v1582 = vmul.f32 %v792, %v1580
          %v1583 = vmul.f32 %v793, %v1580
          %v1584 = vmul.f32 %v794, %v1580
          %v1585 = vmul.f32 %v1581, %v1533
          %v1586 = vmul.f32 %v1582, %v1534
          %v1587 = vmul.f32 %v1583, %v1535
          %v1588 = vmul.f32 %v1584, %v1536
          %v1589 = vlaneseq
          %v1590 = vshrl.u32 %v1589, 7
          %v1591 = vsub.s32 0, %v1590
          %v1592 = vrot.slane %v1576, %v1591
          %v1593 = vmul.f32 %v899, %v1592
          %v1594 = vmul.f32 %v900, %v1592
          %v1595 = vmul.f32 %v901, %v1592
          %v1596 = vmul.f32 %v902, %v1592
          %v1597 = vmul.f32 %v1593, %v1571
          %v1598 = vmul.f32 %v1594, %v1572
          %v1599 = vmul.f32 %v1595, %v1573
          %v1600 = vmul.f32 %v1596, %v1574
          %v1601 = vadd.f32 %v1585, %v1597
          %v1602 = vadd.f32 %v1586, %v1598
          %v1603 = vadd.f32 %v1587, %v1599
          %v1604 = vadd.f32 %v1588, %v1600
          %1605 = vst [vmem:[#allocation2 + $0x20] sm:$0xff] %v1601
          %1606 = vst [vmem:[#allocation2 + $0x80] sm:$0xff] %v1602
          %1607 = vst [vmem:[#allocation2 + $0xe0] sm:$0xff] %v1603
          %1608 = vst [vmem:[#allocation2 + $0x140] sm:$0xff] %v1604
          %v1609 = vld [vmem:[#allocation2 + $0x30] sm:$0xff]
          %v1610 = vld [vmem:[#allocation2 + $0x90] sm:$0xff]
          %v1611 = vld [vmem:[#allocation2 + $0xf0] sm:$0xff]
          %v1612 = vld [vmem:[#allocation2 + $0x150] sm:$0xff]
          %v1613 = vld [vmem:[#allocation8 + $0x2c] sm:$0x1]
          %v1614 = vld [vmem:[#allocation8 + $0x36] sm:$0x1]
          %v1615 = vlaneseq
          %v1616 = vshrl.u32 %v1615, 7
          %v1617 = vsub.s32 0, %v1616
          %v1618 = vrot.slane %v1613, %v1617
          %v1619 = vmul.f32 %v837, %v1618
          %v1620 = vmul.f32 %v838, %v1618
          %v1621 = vmul.f32 %v839, %v1618
          %v1622 = vmul.f32 %v840, %v1618
          %v1623 = vmul.f32 %v1619, %v1571
          %v1624 = vmul.f32 %v1620, %v1572
          %v1625 = vmul.f32 %v1621, %v1573
          %v1626 = vmul.f32 %v1622, %v1574
          %v1627 = vlaneseq
          %v1628 = vshrl.u32 %v1627, 7
          %v1629 = vsub.s32 0, %v1628
          %v1630 = vrot.slane %v1614, %v1629
          %v1631 = vmul.f32 %v945, %v1630
          %v1632 = vmul.f32 %v946, %v1630
          %v1633 = vmul.f32 %v947, %v1630
          %v1634 = vmul.f32 %v948, %v1630
          %v1635 = vmul.f32 %v1631, %v1609
          %v1636 = vmul.f32 %v1632, %v1610
          %v1637 = vmul.f32 %v1633, %v1611
          %v1638 = vmul.f32 %v1634, %v1612
          %v1639 = vadd.f32 %v1623, %v1635
          %v1640 = vadd.f32 %v1624, %v1636
          %v1641 = vadd.f32 %v1625, %v1637
          %v1642 = vadd.f32 %v1626, %v1638
          %1643 = vst [vmem:[#allocation2 + $0x28] sm:$0xff] %v1639
          %1644 = vst [vmem:[#allocation2 + $0x88] sm:$0xff] %v1640
          %1645 = vst [vmem:[#allocation2 + $0xe8] sm:$0xff] %v1641
          %1646 = vst [vmem:[#allocation2 + $0x148] sm:$0xff] %v1642
          %v1647 = vld [vmem:[#allocation2 + $0x38] sm:$0xff]
          %v1648 = vld [vmem:[#allocation2 + $0x98] sm:$0xff]
          %v1649 = vld [vmem:[#allocation2 + $0xf8] sm:$0xff]
          %v1650 = vld [vmem:[#allocation2 + $0x158] sm:$0xff]
          %v1651 = vld [vmem:[#allocation8 + $0x2d] sm:$0x1]
          %v1652 = vld [vmem:[#allocation8 + $0x37] sm:$0x1]
          %v1653 = vlaneseq
          %v1654 = vshrl.u32 %v1653, 7
          %v1655 = vsub.s32 0, %v1654
          %v1656 = vrot.slane %v1651, %v1655
          %v1657 = vmul.f32 %v883, %v1656
          %v1658 = vmul.f32 %v884, %v1656
          %v1659 = vmul.f32 %v885, %v1656
          %v1660 = vmul.f32 %v886, %v1656
          %v1661 = vmul.f32 %v1657, %v1609
          %v1662 = vmul.f32 %v1658, %v1610
          %v1663 = vmul.f32 %v1659, %v1611
          %v1664 = vmul.f32 %v1660, %v1612
          %v1665 = vlaneseq
          %v1666 = vshrl.u32 %v1665, 7
          %v1667 = vsub.s32 0, %v1666
          %v1668 = vrot.slane %v1652, %v1667
          %v1669 = vmul.f32 %v991, %v1668
          %v1670 = vmul.f32 %v992, %v1668
          %v1671 = vmul.f32 %v993, %v1668
          %v1672 = vmul.f32 %v994, %v1668
          %v1673 = vmul.f32 %v1669, %v1647
          %v1674 = vmul.f32 %v1670, %v1648
          %v1675 = vmul.f32 %v1671, %v1649
          %v1676 = vmul.f32 %v1672, %v1650
          %v1677 = vadd.f32 %v1661, %v1673
          %v1678 = vadd.f32 %v1662, %v1674
          %v1679 = vadd.f32 %v1663, %v1675
          %v1680 = vadd.f32 %v1664, %v1676
          %1681 = vst [vmem:[#allocation2 + $0x30] sm:$0xff] %v1677
          %1682 = vst [vmem:[#allocation2 + $0x90] sm:$0xff] %v1678
          %1683 = vst [vmem:[#allocation2 + $0xf0] sm:$0xff] %v1679
          %1684 = vst [vmem:[#allocation2 + $0x150] sm:$0xff] %v1680
          %v1685 = vld [vmem:[#allocation2 + $0x40] sm:$0xff]
          %v1686 = vld [vmem:[#allocation2 + $0xa0] sm:$0xff]
          %v1687 = vld [vmem:[#allocation2 + $0x100] sm:$0xff]
          %v1688 = vld [vmem:[#allocation2 + $0x160] sm:$0xff]
          %v1689 = vld [vmem:[#allocation8 + $0x2e] sm:$0x1]
          %v1690 = vld [vmem:[#allocation8 + $0x38] sm:$0x1]
          %v1691 = vlaneseq
          %v1692 = vshrl.u32 %v1691, 7
          %v1693 = vsub.s32 0, %v1692
          %v1694 = vrot.slane %v1689, %v1693
          %v1695 = vmul.f32 %v929, %v1694
          %v1696 = vmul.f32 %v930, %v1694
          %v1697 = vmul.f32 %v931, %v1694
          %v1698 = vmul.f32 %v932, %v1694
          %v1699 = vmul.f32 %v1695, %v1647
          %v1700 = vmul.f32 %v1696, %v1648
          %v1701 = vmul.f32 %v1697, %v1649
          %v1702 = vmul.f32 %v1698, %v1650
          %v1703 = vlaneseq
          %v1704 = vshrl.u32 %v1703, 7
          %v1705 = vsub.s32 0, %v1704
          %v1706 = vrot.slane %v1690, %v1705
          %v1707 = vmul.f32 %v1037, %v1706
          %v1708 = vmul.f32 %v1038, %v1706
          %v1709 = vmul.f32 %v1039, %v1706
          %v1710 = vmul.f32 %v1040, %v1706
          %v1711 = vmul.f32 %v1707, %v1685
          %v1712 = vmul.f32 %v1708, %v1686
          %v1713 = vmul.f32 %v1709, %v1687
          %v1714 = vmul.f32 %v1710, %v1688
          %v1715 = vadd.f32 %v1699, %v1711
          %v1716 = vadd.f32 %v1700, %v1712
          %v1717 = vadd.f32 %v1701, %v1713
          %v1718 = vadd.f32 %v1702, %v1714
          %1719 = vst [vmem:[#allocation2 + $0x38] sm:$0xff] %v1715
          %1720 = vst [vmem:[#allocation2 + $0x98] sm:$0xff] %v1716
          %1721 = vst [vmem:[#allocation2 + $0xf8] sm:$0xff] %v1717
          %1722 = vst [vmem:[#allocation2 + $0x158] sm:$0xff] %v1718
          %v1723 = vld [vmem:[#allocation2 + $0x48] sm:$0xff]
          %v1724 = vld [vmem:[#allocation2 + $0xa8] sm:$0xff]
          %v1725 = vld [vmem:[#allocation2 + $0x108] sm:$0xff]
          %v1726 = vld [vmem:[#allocation2 + $0x168] sm:$0xff]
          %v1727 = vld [vmem:[#allocation8 + $0x2f] sm:$0x1]
          %v1728 = vld [vmem:[#allocation8 + $0x39] sm:$0x1]
          %v1729 = vlaneseq
          %v1730 = vshrl.u32 %v1729, 7
          %v1731 = vsub.s32 0, %v1730
          %v1732 = vrot.slane %v1727, %v1731
          %v1733 = vmul.f32 %v975, %v1732
          %v1734 = vmul.f32 %v976, %v1732
          %v1735 = vmul.f32 %v977, %v1732
          %v1736 = vmul.f32 %v978, %v1732
          %v1737 = vmul.f32 %v1733, %v1685
          %v1738 = vmul.f32 %v1734, %v1686
          %v1739 = vmul.f32 %v1735, %v1687
          %v1740 = vmul.f32 %v1736, %v1688
          %v1741 = vlaneseq
          %v1742 = vshrl.u32 %v1741, 7
          %v1743 = vsub.s32 0, %v1742
          %v1744 = vrot.slane %v1728, %v1743
          %v1745 = vmul.f32 %v1083, %v1744
          %v1746 = vmul.f32 %v1084, %v1744
          %v1747 = vmul.f32 %v1085, %v1744
          %v1748 = vmul.f32 %v1086, %v1744
          %v1749 = vmul.f32 %v1745, %v1723
          %v1750 = vmul.f32 %v1746, %v1724
          %v1751 = vmul.f32 %v1747, %v1725
          %v1752 = vmul.f32 %v1748, %v1726
          %v1753 = vadd.f32 %v1737, %v1749
          %v1754 = vadd.f32 %v1738, %v1750
          %v1755 = vadd.f32 %v1739, %v1751
          %v1756 = vadd.f32 %v1740, %v1752
          %1757 = vst [vmem:[#allocation2 + $0x40] sm:$0xff] %v1753
          %1758 = vst [vmem:[#allocation2 + $0xa0] sm:$0xff] %v1754
          %1759 = vst [vmem:[#allocation2 + $0x100] sm:$0xff] %v1755
          %1760 = vst [vmem:[#allocation2 + $0x160] sm:$0xff] %v1756
        $region56: #{tpu_custom_call.1} parent=35 // pred_fallthru
          _
        %v1761 = vld [vmem:[#allocation2] sm:$0xff]
        %v1762 = vld [vmem:[#allocation2 + $0x8] sm:$0xff]
        %v1763 = vld [vmem:[#allocation2 + $0x10] sm:$0xff]
        %v1764 = vld [vmem:[#allocation2 + $0x18] sm:$0xff]
        %v1765 = vld [vmem:[#allocation2 + $0x20] sm:$0xff]
        %v1766 = vld [vmem:[#allocation2 + $0x28] sm:$0xff]
        %v1767 = vld [vmem:[#allocation2 + $0x30] sm:$0xff]
        %v1768 = vld [vmem:[#allocation2 + $0x38] sm:$0xff]
        %v1769 = vld [vmem:[#allocation2 + $0x40] sm:$0xff]
        %v1770 = vld [vmem:[#allocation2 + $0x60] sm:$0xff]
        %v1771 = vld [vmem:[#allocation2 + $0x68] sm:$0xff]
        %v1772 = vld [vmem:[#allocation2 + $0x70] sm:$0xff]
        %v1773 = vld [vmem:[#allocation2 + $0x78] sm:$0xff]
        %v1774 = vld [vmem:[#allocation2 + $0x80] sm:$0xff]
        %v1775 = vld [vmem:[#allocation2 + $0x88] sm:$0xff]
        %v1776 = vld [vmem:[#allocation2 + $0x90] sm:$0xff]
        %v1777 = vld [vmem:[#allocation2 + $0x98] sm:$0xff]
        %v1778 = vld [vmem:[#allocation2 + $0xa0] sm:$0xff]
        %v1779 = vld [vmem:[#allocation2 + $0xc0] sm:$0xff]
        %v1780 = vld [vmem:[#allocation2 + $0xc8] sm:$0xff]
        %v1781 = vld [vmem:[#allocation2 + $0xd0] sm:$0xff]
        %v1782 = vld [vmem:[#allocation2 + $0xd8] sm:$0xff]
        %v1783 = vld [vmem:[#allocation2 + $0xe0] sm:$0xff]
        %v1784 = vld [vmem:[#allocation2 + $0xe8] sm:$0xff]
        %v1785 = vld [vmem:[#allocation2 + $0xf0] sm:$0xff]
        %v1786 = vld [vmem:[#allocation2 + $0xf8] sm:$0xff]
        %v1787 = vld [vmem:[#allocation2 + $0x100] sm:$0xff]
        %v1788 = vld [vmem:[#allocation2 + $0x120] sm:$0xff]
        %v1789 = vld [vmem:[#allocation2 + $0x128] sm:$0xff]
        %v1790 = vld [vmem:[#allocation2 + $0x130] sm:$0xff]
        %v1791 = vld [vmem:[#allocation2 + $0x138] sm:$0xff]
        %v1792 = vld [vmem:[#allocation2 + $0x140] sm:$0xff]
        %v1793 = vld [vmem:[#allocation2 + $0x148] sm:$0xff]
        %v1794 = vld [vmem:[#allocation2 + $0x150] sm:$0xff]
        %v1795 = vld [vmem:[#allocation2 + $0x158] sm:$0xff]
        %v1796 = vld [vmem:[#allocation2 + $0x160] sm:$0xff]
        %v1797 = vld [vmem:[#allocation9] sm:$0xff]
        %v1798 = vld [vmem:[#allocation9 + $0x8] sm:$0xff]
        %v1799 = vld [vmem:[#allocation9 + $0x10] sm:$0xff]
        %v1800 = vld [vmem:[#allocation9 + $0x18] sm:$0xff]
        %v1801 = vld [vmem:[#allocation9 + $0x20] sm:$0xff]
        %v1802 = vld [vmem:[#allocation9 + $0x28] sm:$0xff]
        %v1803 = vld [vmem:[#allocation9 + $0x30] sm:$0xff]
        %v1804 = vld [vmem:[#allocation9 + $0x38] sm:$0xff]
        %v1805 = vld [vmem:[#allocation9 + $0x40] sm:$0xff]
        %v1806 = vld [vmem:[#allocation9 + $0x48] sm:$0xff]
        %v1807 = vld [vmem:[#allocation9 + $0x50] sm:$0xff]
        %v1808 = vld [vmem:[#allocation9 + $0x58] sm:$0xff]
        %v1809 = vld [vmem:[#allocation9 + $0x60] sm:$0xff]
        %v1810 = vld [vmem:[#allocation9 + $0x68] sm:$0xff]
        %v1811 = vld [vmem:[#allocation9 + $0x70] sm:$0xff]
        %v1812 = vld [vmem:[#allocation9 + $0x78] sm:$0xff]
        %v1813 = vld [vmem:[#allocation9 + $0x80] sm:$0xff]
        %v1814 = vld [vmem:[#allocation9 + $0x88] sm:$0xff]
        %v1815 = vld [vmem:[#allocation9 + $0x90] sm:$0xff]
        %v1816 = vld [vmem:[#allocation9 + $0x98] sm:$0xff]
        %v1817 = vld [vmem:[#allocation9 + $0xa0] sm:$0xff]
        %v1818 = vld [vmem:[#allocation9 + $0xa8] sm:$0xff]
        %v1819 = vld [vmem:[#allocation9 + $0xb0] sm:$0xff]
        %v1820 = vld [vmem:[#allocation9 + $0xb8] sm:$0xff]
        %v1821 = vld [vmem:[#allocation9 + $0xc0] sm:$0xff]
        %v1822 = vld [vmem:[#allocation9 + $0xc8] sm:$0xff]
        %v1823 = vld [vmem:[#allocation9 + $0xd0] sm:$0xff]
        %v1824 = vld [vmem:[#allocation9 + $0xd8] sm:$0xff]
        %v1825 = vld [vmem:[#allocation9 + $0xe0] sm:$0xff]
        %v1826 = vld [vmem:[#allocation9 + $0xe8] sm:$0xff]
        %v1827 = vld [vmem:[#allocation9 + $0xf0] sm:$0xff]
        %v1828 = vld [vmem:[#allocation9 + $0xf8] sm:$0xff]
        %v1829 = vld [vmem:[#allocation9 + $0x100] sm:$0xff]
        %v1830 = vld [vmem:[#allocation9 + $0x108] sm:$0xff]
        %v1831 = vld [vmem:[#allocation9 + $0x110] sm:$0xff]
        %v1832 = vld [vmem:[#allocation9 + $0x118] sm:$0xff]
        %v1833 = vld [vmem:[#allocation9 + $0x120] sm:$0xff]
        %v1834 = vld [vmem:[#allocation9 + $0x128] sm:$0xff]
        %v1835 = vld [vmem:[#allocation9 + $0x130] sm:$0xff]
        %v1836 = vld [vmem:[#allocation9 + $0x138] sm:$0xff]
        %v1837 = vld [vmem:[#allocation9 + $0x140] sm:$0xff]
        %v1838 = vld [vmem:[#allocation9 + $0x148] sm:$0xff]
        %v1839 = vld [vmem:[#allocation9 + $0x150] sm:$0xff]
        %v1840 = vld [vmem:[#allocation9 + $0x158] sm:$0xff]
        %v1841 = vld [vmem:[#allocation9 + $0x160] sm:$0xff]
        %v1842 = vld [vmem:[#allocation9 + $0x168] sm:$0xff]
        %v1843 = vld [vmem:[#allocation9 + $0x170] sm:$0xff]
        %v1844 = vld [vmem:[#allocation9 + $0x178] sm:$0xff]
        %v1845 = vld [vmem:[#allocation9 + $0x180] sm:$0xff]
        %v1846 = vld [vmem:[#allocation9 + $0x188] sm:$0xff]
        %v1847 = vld [vmem:[#allocation9 + $0x190] sm:$0xff]
        %v1848 = vld [vmem:[#allocation9 + $0x198] sm:$0xff]
        %v1849 = vld [vmem:[#allocation9 + $0x1a0] sm:$0xff]
        %v1850 = vld [vmem:[#allocation9 + $0x1a8] sm:$0xff]
        %v1851 = vld [vmem:[#allocation9 + $0x1b0] sm:$0xff]
        %v1852 = vld [vmem:[#allocation9 + $0x1b8] sm:$0xff]
        %v1853 = vld [vmem:[#allocation9 + $0x1c0] sm:$0xff]
        %v1854 = vld [vmem:[#allocation9 + $0x1c8] sm:$0xff]
        %v1855 = vld [vmem:[#allocation9 + $0x1d0] sm:$0xff]
        %v1856 = vld [vmem:[#allocation9 + $0x1d8] sm:$0xff]
        %v1857 = vld [vmem:[#allocation9 + $0x1e0] sm:$0xff]
        %v1858 = vld [vmem:[#allocation9 + $0x1e8] sm:$0xff]
        %v1859 = vld [vmem:[#allocation9 + $0x1f0] sm:$0xff]
        %v1860 = vld [vmem:[#allocation9 + $0x1f8] sm:$0xff]
        %v1861 = vld [vmem:[#allocation9 + $0x200] sm:$0xff]
        %v1862 = vld [vmem:[#allocation9 + $0x208] sm:$0xff]
        %v1863 = vld [vmem:[#allocation9 + $0x210] sm:$0xff]
        %v1864 = vld [vmem:[#allocation9 + $0x218] sm:$0xff]
        %v1865 = vld [vmem:[#allocation9 + $0x220] sm:$0xff]
        %v1866 = vld [vmem:[#allocation9 + $0x228] sm:$0xff]
        %v1867 = vld [vmem:[#allocation9 + $0x230] sm:$0xff]
        %v1868 = vld [vmem:[#allocation9 + $0x238] sm:$0xff]
        %v1869 = vld [vmem:[#allocation9 + $0x240] sm:$0xff]
        %v1870 = vld [vmem:[#allocation9 + $0x248] sm:$0xff]
        %v1871 = vld [vmem:[#allocation9 + $0x250] sm:$0xff]
        %v1872 = vld [vmem:[#allocation9 + $0x258] sm:$0xff]
        %v1873 = vld [vmem:[#allocation9 + $0x260] sm:$0xff]
        %v1874 = vld [vmem:[#allocation9 + $0x268] sm:$0xff]
        %v1875 = vld [vmem:[#allocation9 + $0x270] sm:$0xff]
        %v1876 = vld [vmem:[#allocation9 + $0x278] sm:$0xff]
        %v1877 = vld [vmem:[#allocation9 + $0x280] sm:$0xff]
        %v1878 = vld [vmem:[#allocation9 + $0x288] sm:$0xff]
        %v1879 = vld [vmem:[#allocation9 + $0x290] sm:$0xff]
        %v1880 = vld [vmem:[#allocation9 + $0x298] sm:$0xff]
        %v1881 = vld [vmem:[#allocation9 + $0x2a0] sm:$0xff]
        %v1882 = vld [vmem:[#allocation9 + $0x2a8] sm:$0xff]
        %v1883 = vld [vmem:[#allocation9 + $0x2b0] sm:$0xff]
        %v1884 = vld [vmem:[#allocation9 + $0x2b8] sm:$0xff]
        %v1885 = vld [vmem:[#allocation9 + $0x2c0] sm:$0xff]
        %v1886 = vld [vmem:[#allocation9 + $0x2c8] sm:$0xff]
        %v1887 = vld [vmem:[#allocation9 + $0x2d0] sm:$0xff]
        %v1888 = vld [vmem:[#allocation9 + $0x2d8] sm:$0xff]
        %v1889 = vld [vmem:[#allocation9 + $0x2e0] sm:$0xff]
        %v1890 = vld [vmem:[#allocation9 + $0x2e8] sm:$0xff]
        %v1891 = vld [vmem:[#allocation9 + $0x2f0] sm:$0xff]
        %v1892 = vld [vmem:[#allocation9 + $0x2f8] sm:$0xff]
        %v1893 = vld [vmem:[#allocation9 + $0x300] sm:$0xff]
        %v1894 = vld [vmem:[#allocation9 + $0x308] sm:$0xff]
        %v1895 = vld [vmem:[#allocation9 + $0x310] sm:$0xff]
        %v1896 = vld [vmem:[#allocation9 + $0x318] sm:$0xff]
        %v1897 = vld [vmem:[#allocation9 + $0x320] sm:$0xff]
        %v1898 = vld [vmem:[#allocation9 + $0x328] sm:$0xff]
        %v1899 = vld [vmem:[#allocation9 + $0x330] sm:$0xff]
        %v1900 = vld [vmem:[#allocation9 + $0x338] sm:$0xff]
        %v1901 = vld [vmem:[#allocation9 + $0x340] sm:$0xff]
        %v1902 = vld [vmem:[#allocation9 + $0x348] sm:$0xff]
        %v1903 = vld [vmem:[#allocation9 + $0x350] sm:$0xff]
        %v1904 = vld [vmem:[#allocation9 + $0x358] sm:$0xff]
        %v1905 = vld [vmem:[#allocation9 + $0x360] sm:$0xff]
        %v1906 = vld [vmem:[#allocation9 + $0x368] sm:$0xff]
        %v1907 = vld [vmem:[#allocation9 + $0x370] sm:$0xff]
        %v1908 = vld [vmem:[#allocation9 + $0x378] sm:$0xff]
        %v1909 = vld [vmem:[#allocation9 + $0x380] sm:$0xff]
        %v1910 = vld [vmem:[#allocation9 + $0x388] sm:$0xff]
        %v1911 = vld [vmem:[#allocation9 + $0x390] sm:$0xff]
        %v1912 = vld [vmem:[#allocation9 + $0x398] sm:$0xff]
        %v1913 = vld [vmem:[#allocation9 + $0x3a0] sm:$0xff]
        %v1914 = vld [vmem:[#allocation9 + $0x3a8] sm:$0xff]
        %v1915 = vld [vmem:[#allocation9 + $0x3b0] sm:$0xff]
        %v1916 = vld [vmem:[#allocation9 + $0x3b8] sm:$0xff]
        %v1917 = vld [vmem:[#allocation9 + $0x3c0] sm:$0xff]
        %v1918 = vld [vmem:[#allocation9 + $0x3c8] sm:$0xff]
        %v1919 = vld [vmem:[#allocation9 + $0x3d0] sm:$0xff]
        %v1920 = vld [vmem:[#allocation9 + $0x3d8] sm:$0xff]
        %v1921 = vld [vmem:[#allocation9 + $0x3e0] sm:$0xff]
        %v1922 = vld [vmem:[#allocation9 + $0x3e8] sm:$0xff]
        %v1923 = vld [vmem:[#allocation9 + $0x3f0] sm:$0xff]
        %v1924 = vld [vmem:[#allocation9 + $0x3f8] sm:$0xff]
        %v1925 = vld [vmem:[#allocation9 + $0x400] sm:$0xff]
        %v1926 = vld [vmem:[#allocation9 + $0x408] sm:$0xff]
        %v1927 = vld [vmem:[#allocation9 + $0x410] sm:$0xff]
        %v1928 = vld [vmem:[#allocation9 + $0x418] sm:$0xff]
        %v1929 = vld [vmem:[#allocation9 + $0x420] sm:$0xff]
        %v1930 = vld [vmem:[#allocation9 + $0x428] sm:$0xff]
        %v1931 = vld [vmem:[#allocation9 + $0x430] sm:$0xff]
        %v1932 = vld [vmem:[#allocation9 + $0x438] sm:$0xff]
        %v1933 = vld [vmem:[#allocation9 + $0x440] sm:$0xff]
        %v1934 = vld [vmem:[#allocation9 + $0x448] sm:$0xff]
        %v1935 = vld [vmem:[#allocation9 + $0x450] sm:$0xff]
        %v1936 = vld [vmem:[#allocation9 + $0x458] sm:$0xff]
        %v1937 = vld [vmem:[#allocation9 + $0x460] sm:$0xff]
        %v1938 = vld [vmem:[#allocation9 + $0x468] sm:$0xff]
        %v1939 = vld [vmem:[#allocation9 + $0x470] sm:$0xff]
        %v1940 = vld [vmem:[#allocation9 + $0x478] sm:$0xff]
        %1941 = vmatprep.subr.mxu0 0.0
        %1942 = vmatpush1.msra.mxu0 %v1797
        %1943 = vmatprep.subr.mxu0 0.0
        %1944 = vmatpush1.msra.mxu0 %v1798
        %1945 = vmatprep.subr.mxu0 0.0
        %1946 = vmatpush1.msra.mxu0 %v1799
        %1947 = vmatprep.subr.mxu0 0.0
        %1948 = vmatpush1.msra.mxu0 %v1800
        %1949 = vmatprep.subr.mxu0 0.0
        %1950 = vmatpush1.msra.mxu0 %v1801
        %1951 = vmatprep.subr.mxu0 0.0
        %1952 = vmatpush1.msra.mxu0 %v1802
        %1953 = vmatprep.subr.mxu0 0.0
        %1954 = vmatpush1.msra.mxu0 %v1803
        %1955 = vmatprep.subr.mxu0 0.0
        %1956 = vmatpush1.msra.mxu0 %v1804
        %1957 = vmatprep.subr.mxu0 0.0
        %1958 = vmatpush1.msra.mxu0 %v1805
        %1959 = vmatprep.subr.mxu0 0.0
        %1960 = vmatpush1.msra.mxu0 %v1806
        %1961 = vmatprep.subr.mxu0 0.0
        %1962 = vmatpush1.msra.mxu0 %v1807
        %1963 = vmatprep.subr.mxu0 0.0
        %1964 = vmatpush1.msra.mxu0 %v1808
        %1965 = vmatprep.subr.mxu0 0.0
        %1966 = vmatpush1.msra.mxu0 %v1809
        %1967 = vmatprep.subr.mxu0 0.0
        %1968 = vmatpush1.msra.mxu0 %v1810
        %1969 = vmatprep.subr.mxu0 0.0
        %1970 = vmatpush1.msra.mxu0 %v1811
        %1971 = vmatprep.subr.mxu0 0.0
        %1972 = vmatpush1.msra.mxu0 %v1812
        %1973 = vmatprep.subr.mxu0 0.0
        %1974 = vmatpush1.msra.mxu0 %v1813
        %1975 = vmatprep.subr.mxu0 0.0
        %1976 = vmatpush1.msra.mxu0 %v1814
        %1977 = vmatprep.subr.mxu0 0.0
        %1978 = vmatpush1.msra.mxu0 %v1815
        %1979 = vmatprep.subr.mxu0 0.0
        %1980 = vmatpush1.msra.mxu0 %v1816
        %1981 = vmatprep.subr.mxu0 0.0
        %1982 = vmatpush1.msra.mxu0 %v1817
        %1983 = vmatprep.subr.mxu0 0.0
        %1984 = vmatpush1.msra.mxu0 %v1818
        %1985 = vmatprep.subr.mxu0 0.0
        %1986 = vmatpush1.msra.mxu0 %v1819
        %1987 = vmatprep.subr.mxu0 0.0
        %1988 = vmatpush1.msra.mxu0 %v1820
        %1989 = vmatprep.subr.mxu0 0.0
        %1990 = vmatpush1.msra.mxu0 %v1821
        %1991 = vmatprep.subr.mxu0 0.0
        %1992 = vmatpush1.msra.mxu0 %v1822
        %1993 = vmatprep.subr.mxu0 0.0
        %1994 = vmatpush1.msra.mxu0 %v1823
        %1995 = vmatprep.subr.mxu0 0.0
        %1996 = vmatpush1.msra.mxu0 %v1824
        %1997 = vmatprep.subr.mxu0 0.0
        %1998 = vmatpush1.msra.mxu0 %v1825
        %1999 = vmatprep.subr.mxu0 0.0
        %2000 = vmatpush1.msra.mxu0 %v1826
        %2001 = vmatprep.subr.mxu0 0.0
        %2002 = vmatpush1.msra.mxu0 %v1827
        %2003 = vmatprep.subr.mxu0 0.0
        %2004 = vmatpush1.msra.mxu0 %v1828
        %2005 = vmatprep.mubr.f32.mxu0 %v1762
        %2006 = vmatmul.mubr.f32.gmra.mrb[0].mxu0 %v1761
        %v2007 = vpop.f32.mrb[0].mxu0
        %v2008 = vadd.f32 0.0, %v2007
        %v2009 = vpop.f32.mrb[0].mxu0
        %2010 = vmatprep.mubr.f32.mxu0 %v1771
        %2011 = vmatmul.mubr.f32.gmra.mrb[0].mxu0 %v1770
        %v2012 = vpop.f32.mrb[0].mxu0
        %v2013 = vadd.f32 0.0, %v2012
        %v2014 = vpop.f32.mrb[0].mxu0
        %2015 = vmatprep.mubr.f32.mxu0 %v1780
        %2016 = vmatmul.mubr.f32.gmra.mrb[0].mxu0 %v1779
        %v2017 = vpop.f32.mrb[0].mxu0
        %v2018 = vadd.f32 0.0, %v2017
        %v2019 = vpop.f32.mrb[0].mxu0
        %2020 = vmatprep.mubr.f32.mxu0 %v1789
        %2021 = vmatmul.mubr.f32.gmra.mrb[0].mxu0 %v1788
        %v2022 = vpop.f32.mrb[0].mxu0
        %v2023 = vadd.f32 0.0, %v2022
        %v2024 = vpop.f32.mrb[0].mxu0
        %2025 = vdwg.mxu0
        %2026 = vmatprep.subr.mxu0 0.0
        %2027 = vmatpush1.msra.mxu0 %v1829
        %2028 = vmatprep.subr.mxu0 0.0
        %2029 = vmatpush1.msra.mxu0 %v1830
        %2030 = vmatprep.subr.mxu0 0.0
        %2031 = vmatpush1.msra.mxu0 %v1831
        %2032 = vmatprep.subr.mxu0 0.0
        %2033 = vmatpush1.msra.mxu0 %v1832
        %2034 = vmatprep.subr.mxu0 0.0
        %2035 = vmatpush1.msra.mxu0 %v1833
        %2036 = vmatprep.subr.mxu0 0.0
        %2037 = vmatpush1.msra.mxu0 %v1834
        %2038 = vmatprep.subr.mxu0 0.0
        %2039 = vmatpush1.msra.mxu0 %v1835
        %2040 = vmatprep.subr.mxu0 0.0
        %2041 = vmatpush1.msra.mxu0 %v1836
        %2042 = vmatprep.subr.mxu0 0.0
        %2043 = vmatpush1.msra.mxu0 %v1837
        %2044 = vmatprep.subr.mxu0 0.0
        %2045 = vmatpush1.msra.mxu0 %v1838
        %2046 = vmatprep.subr.mxu0 0.0
        %2047 = vmatpush1.msra.mxu0 %v1839
        %2048 = vmatprep.subr.mxu0 0.0
        %2049 = vmatpush1.msra.mxu0 %v1840
        %2050 = vmatprep.subr.mxu0 0.0
        %2051 = vmatpush1.msra.mxu0 %v1841
        %2052 = vmatprep.subr.mxu0 0.0
        %2053 = vmatpush1.msra.mxu0 %v1842
        %2054 = vmatprep.subr.mxu0 0.0
        %2055 = vmatpush1.msra.mxu0 %v1843
        %2056 = vmatprep.subr.mxu0 0.0
        %2057 = vmatpush1.msra.mxu0 %v1844
        %2058 = vmatprep.subr.mxu0 0.0
        %2059 = vmatpush1.msra.mxu0 %v1845
        %2060 = vmatprep.subr.mxu0 0.0
        %2061 = vmatpush1.msra.mxu0 %v1846
        %2062 = vmatprep.subr.mxu0 0.0
        %2063 = vmatpush1.msra.mxu0 %v1847
        %2064 = vmatprep.subr.mxu0 0.0
        %2065 = vmatpush1.msra.mxu0 %v1848
        %2066 = vmatprep.subr.mxu0 0.0
        %2067 = vmatpush1.msra.mxu0 %v1849
        %2068 = vmatprep.subr.mxu0 0.0
        %2069 = vmatpush1.msra.mxu0 %v1850
        %2070 = vmatprep.subr.mxu0 0.0
        %2071 = vmatpush1.msra.mxu0 %v1851
        %2072 = vmatprep.subr.mxu0 0.0
        %2073 = vmatpush1.msra.mxu0 %v1852
        %2074 = vmatprep.subr.mxu0 0.0
        %2075 = vmatpush1.msra.mxu0 %v1853
        %2076 = vmatprep.subr.mxu0 0.0
        %2077 = vmatpush1.msra.mxu0 %v1854
        %2078 = vmatprep.subr.mxu0 0.0
        %2079 = vmatpush1.msra.mxu0 %v1855
        %2080 = vmatprep.subr.mxu0 0.0
        %2081 = vmatpush1.msra.mxu0 %v1856
        %2082 = vmatprep.subr.mxu0 0.0
        %2083 = vmatpush1.msra.mxu0 %v1857
        %2084 = vmatprep.subr.mxu0 0.0
        %2085 = vmatpush1.msra.mxu0 %v1858
        %2086 = vmatprep.subr.mxu0 0.0
        %2087 = vmatpush1.msra.mxu0 %v1859
        %2088 = vmatprep.subr.mxu0 0.0
        %2089 = vmatpush1.msra.mxu0 %v1860
        %2090 = vmatprep.mubr.f32.mxu0 %v1764
        %2091 = vmatmul.mubr.f32.gmra.mrb[0].mxu0 %v1763
        %v2092 = vpop.f32.mrb[0].mxu0
        %v2093 = vadd.f32 %v2008, %v2092
        %v2094 = vpop.f32.mrb[0].mxu0
        %2095 = vmatprep.mubr.f32.mxu0 %v1773
        %2096 = vmatmul.mubr.f32.gmra.mrb[0].mxu0 %v1772
        %v2097 = vpop.f32.mrb[0].mxu0
        %v2098 = vadd.f32 %v2013, %v2097
        %v2099 = vpop.f32.mrb[0].mxu0
        %2100 = vmatprep.mubr.f32.mxu0 %v1782
        %2101 = vmatmul.mubr.f32.gmra.mrb[0].mxu0 %v1781
        %v2102 = vpop.f32.mrb[0].mxu0
        %v2103 = vadd.f32 %v2018, %v2102
        %v2104 = vpop.f32.mrb[0].mxu0
        %2105 = vmatprep.mubr.f32.mxu0 %v1791
        %2106 = vmatmul.mubr.f32.gmra.mrb[0].mxu0 %v1790
        %v2107 = vpop.f32.mrb[0].mxu0
        %v2108 = vadd.f32 %v2023, %v2107
        %v2109 = vpop.f32.mrb[0].mxu0
        %2110 = vdwg.mxu0
        %2111 = vmatprep.subr.mxu0 0.0
        %2112 = vmatpush1.msra.mxu0 %v1861
        %2113 = vmatprep.subr.mxu0 0.0
        %2114 = vmatpush1.msra.mxu0 %v1862
        %2115 = vmatprep.subr.mxu0 0.0
        %2116 = vmatpush1.msra.mxu0 %v1863
        %2117 = vmatprep.subr.mxu0 0.0
        %2118 = vmatpush1.msra.mxu0 %v1864
        %2119 = vmatprep.subr.mxu0 0.0
        %2120 = vmatpush1.msra.mxu0 %v1865
        %2121 = vmatprep.subr.mxu0 0.0
        %2122 = vmatpush1.msra.mxu0 %v1866
        %2123 = vmatprep.subr.mxu0 0.0
        %2124 = vmatpush1.msra.mxu0 %v1867
        %2125 = vmatprep.subr.mxu0 0.0
        %2126 = vmatpush1.msra.mxu0 %v1868
        %2127 = vmatprep.subr.mxu0 0.0
        %2128 = vmatpush1.msra.mxu0 %v1869
        %2129 = vmatprep.subr.mxu0 0.0
        %2130 = vmatpush1.msra.mxu0 %v1870
        %2131 = vmatprep.subr.mxu0 0.0
        %2132 = vmatpush1.msra.mxu0 %v1871
        %2133 = vmatprep.subr.mxu0 0.0
        %2134 = vmatpush1.msra.mxu0 %v1872
        %2135 = vmatprep.subr.mxu0 0.0
        %2136 = vmatpush1.msra.mxu0 %v1873
        %2137 = vmatprep.subr.mxu0 0.0
        %2138 = vmatpush1.msra.mxu0 %v1874
        %2139 = vmatprep.subr.mxu0 0.0
        %2140 = vmatpush1.msra.mxu0 %v1875
        %2141 = vmatprep.subr.mxu0 0.0
        %2142 = vmatpush1.msra.mxu0 %v1876
        %2143 = vmatprep.subr.mxu0 0.0
        %2144 = vmatpush1.msra.mxu0 %v1877
        %2145 = vmatprep.subr.mxu0 0.0
        %2146 = vmatpush1.msra.mxu0 %v1878
        %2147 = vmatprep.subr.mxu0 0.0
        %2148 = vmatpush1.msra.mxu0 %v1879
        %2149 = vmatprep.subr.mxu0 0.0
        %2150 = vmatpush1.msra.mxu0 %v1880
        %2151 = vmatprep.subr.mxu0 0.0
        %2152 = vmatpush1.msra.mxu0 %v1881
        %2153 = vmatprep.subr.mxu0 0.0
        %2154 = vmatpush1.msra.mxu0 %v1882
        %2155 = vmatprep.subr.mxu0 0.0
        %2156 = vmatpush1.msra.mxu0 %v1883
        %2157 = vmatprep.subr.mxu0 0.0
        %2158 = vmatpush1.msra.mxu0 %v1884
        %2159 = vmatprep.subr.mxu0 0.0
        %2160 = vmatpush1.msra.mxu0 %v1885
        %2161 = vmatprep.subr.mxu0 0.0
        %2162 = vmatpush1.msra.mxu0 %v1886
        %2163 = vmatprep.subr.mxu0 0.0
        %2164 = vmatpush1.msra.mxu0 %v1887
        %2165 = vmatprep.subr.mxu0 0.0
        %2166 = vmatpush1.msra.mxu0 %v1888
        %2167 = vmatprep.subr.mxu0 0.0
        %2168 = vmatpush1.msra.mxu0 %v1889
        %2169 = vmatprep.subr.mxu0 0.0
        %2170 = vmatpush1.msra.mxu0 %v1890
        %2171 = vmatprep.subr.mxu0 0.0
        %2172 = vmatpush1.msra.mxu0 %v1891
        %2173 = vmatprep.subr.mxu0 0.0
        %2174 = vmatpush1.msra.mxu0 %v1892
        %2175 = vmatprep.mubr.f32.mxu0 %v1766
        %2176 = vmatmul.mubr.f32.gmra.mrb[0].mxu0 %v1765
        %v2177 = vpop.f32.mrb[0].mxu0
        %v2178 = vadd.f32 %v2093, %v2177
        %v2179 = vpop.f32.mrb[0].mxu0
        %2180 = vmatprep.mubr.f32.mxu0 %v1775
        %2181 = vmatmul.mubr.f32.gmra.mrb[0].mxu0 %v1774
        %v2182 = vpop.f32.mrb[0].mxu0
        %v2183 = vadd.f32 %v2098, %v2182
        %v2184 = vpop.f32.mrb[0].mxu0
        %2185 = vmatprep.mubr.f32.mxu0 %v1784
        %2186 = vmatmul.mubr.f32.gmra.mrb[0].mxu0 %v1783
        %v2187 = vpop.f32.mrb[0].mxu0
        %v2188 = vadd.f32 %v2103, %v2187
        %v2189 = vpop.f32.mrb[0].mxu0
        %2190 = vmatprep.mubr.f32.mxu0 %v1793
        %2191 = vmatmul.mubr.f32.gmra.mrb[0].mxu0 %v1792
        %v2192 = vpop.f32.mrb[0].mxu0
        %v2193 = vadd.f32 %v2108, %v2192
        %v2194 = vpop.f32.mrb[0].mxu0
        %2195 = vdwg.mxu0
        %2196 = vmatprep.subr.mxu0 0.0
        %2197 = vmatpush1.msra.mxu0 %v1893
        %2198 = vmatprep.subr.mxu0 0.0
        %2199 = vmatpush1.msra.mxu0 %v1894
        %2200 = vmatprep.subr.mxu0 0.0
        %2201 = vmatpush1.msra.mxu0 %v1895
        %2202 = vmatprep.subr.mxu0 0.0
        %2203 = vmatpush1.msra.mxu0 %v1896
        %2204 = vmatprep.subr.mxu0 0.0
        %2205 = vmatpush1.msra.mxu0 %v1897
        %2206 = vmatprep.subr.mxu0 0.0
        %2207 = vmatpush1.msra.mxu0 %v1898
        %2208 = vmatprep.subr.mxu0 0.0
        %2209 = vmatpush1.msra.mxu0 %v1899
        %2210 = vmatprep.subr.mxu0 0.0
        %2211 = vmatpush1.msra.mxu0 %v1900
        %2212 = vmatprep.subr.mxu0 0.0
        %2213 = vmatpush1.msra.mxu0 %v1901
        %2214 = vmatprep.subr.mxu0 0.0
        %2215 = vmatpush1.msra.mxu0 %v1902
        %2216 = vmatprep.subr.mxu0 0.0
        %2217 = vmatpush1.msra.mxu0 %v1903
        %2218 = vmatprep.subr.mxu0 0.0
        %2219 = vmatpush1.msra.mxu0 %v1904
        %2220 = vmatprep.subr.mxu0 0.0
        %2221 = vmatpush1.msra.mxu0 %v1905
        %2222 = vmatprep.subr.mxu0 0.0
        %2223 = vmatpush1.msra.mxu0 %v1906
        %2224 = vmatprep.subr.mxu0 0.0
        %2225 = vmatpush1.msra.mxu0 %v1907
        %2226 = vmatprep.subr.mxu0 0.0
        %2227 = vmatpush1.msra.mxu0 %v1908
        %2228 = vmatprep.subr.mxu0 0.0
        %2229 = vmatpush1.msra.mxu0 %v1909
        %2230 = vmatprep.subr.mxu0 0.0
        %2231 = vmatpush1.msra.mxu0 %v1910
        %2232 = vmatprep.subr.mxu0 0.0
        %2233 = vmatpush1.msra.mxu0 %v1911
        %2234 = vmatprep.subr.mxu0 0.0
        %2235 = vmatpush1.msra.mxu0 %v1912
        %2236 = vmatprep.subr.mxu0 0.0
        %2237 = vmatpush1.msra.mxu0 %v1913
        %2238 = vmatprep.subr.mxu0 0.0
        %2239 = vmatpush1.msra.mxu0 %v1914
        %2240 = vmatprep.subr.mxu0 0.0
        %2241 = vmatpush1.msra.mxu0 %v1915
        %2242 = vmatprep.subr.mxu0 0.0
        %2243 = vmatpush1.msra.mxu0 %v1916
        %2244 = vmatprep.subr.mxu0 0.0
        %2245 = vmatpush1.msra.mxu0 %v1917
        %2246 = vmatprep.subr.mxu0 0.0
        %2247 = vmatpush1.msra.mxu0 %v1918
        %2248 = vmatprep.subr.mxu0 0.0
        %2249 = vmatpush1.msra.mxu0 %v1919
        %2250 = vmatprep.subr.mxu0 0.0
        %2251 = vmatpush1.msra.mxu0 %v1920
        %2252 = vmatprep.subr.mxu0 0.0
        %2253 = vmatpush1.msra.mxu0 %v1921
        %2254 = vmatprep.subr.mxu0 0.0
        %2255 = vmatpush1.msra.mxu0 %v1922
        %2256 = vmatprep.subr.mxu0 0.0
        %2257 = vmatpush1.msra.mxu0 %v1923
        %2258 = vmatprep.subr.mxu0 0.0
        %2259 = vmatpush1.msra.mxu0 %v1924
        %2260 = vmatprep.mubr.f32.mxu0 %v1768
        %2261 = vmatmul.mubr.f32.gmra.mrb[0].mxu0 %v1767
        %v2262 = vpop.f32.mrb[0].mxu0
        %v2263 = vadd.f32 %v2178, %v2262
        %v2264 = vpop.f32.mrb[0].mxu0
        %2265 = vmatprep.mubr.f32.mxu0 %v1777
        %2266 = vmatmul.mubr.f32.gmra.mrb[0].mxu0 %v1776
        %v2267 = vpop.f32.mrb[0].mxu0
        %v2268 = vadd.f32 %v2183, %v2267
        %v2269 = vpop.f32.mrb[0].mxu0
        %2270 = vmatprep.mubr.f32.mxu0 %v1786
        %2271 = vmatmul.mubr.f32.gmra.mrb[0].mxu0 %v1785
        %v2272 = vpop.f32.mrb[0].mxu0
        %v2273 = vadd.f32 %v2188, %v2272
        %v2274 = vpop.f32.mrb[0].mxu0
        %2275 = vmatprep.mubr.f32.mxu0 %v1795
        %2276 = vmatmul.mubr.f32.gmra.mrb[0].mxu0 %v1794
        %v2277 = vpop.f32.mrb[0].mxu0
        %v2278 = vadd.f32 %v2193, %v2277
        %v2279 = vpop.f32.mrb[0].mxu0
        %2280 = vdwg.mxu0
        %2281 = vmatprep.subr.mxu0 0.0
        %2282 = vmatpush1.msra.mxu0 %v1925
        %2283 = vmatprep.subr.mxu0 0.0
        %2284 = vmatpush1.msra.mxu0 %v1926
        %2285 = vmatprep.subr.mxu0 0.0
        %2286 = vmatpush1.msra.mxu0 %v1927
        %2287 = vmatprep.subr.mxu0 0.0
        %2288 = vmatpush1.msra.mxu0 %v1928
        %2289 = vmatprep.subr.mxu0 0.0
        %2290 = vmatpush1.msra.mxu0 %v1929
        %2291 = vmatprep.subr.mxu0 0.0
        %2292 = vmatpush1.msra.mxu0 %v1930
        %2293 = vmatprep.subr.mxu0 0.0
        %2294 = vmatpush1.msra.mxu0 %v1931
        %2295 = vmatprep.subr.mxu0 0.0
        %2296 = vmatpush1.msra.mxu0 %v1932
        %2297 = vmatprep.subr.mxu0 0.0
        %2298 = vmatpush1.msra.mxu0 %v1933
        %2299 = vmatprep.subr.mxu0 0.0
        %2300 = vmatpush1.msra.mxu0 %v1934
        %2301 = vmatprep.subr.mxu0 0.0
        %2302 = vmatpush1.msra.mxu0 %v1935
        %2303 = vmatprep.subr.mxu0 0.0
        %2304 = vmatpush1.msra.mxu0 %v1936
        %2305 = vmatprep.subr.mxu0 0.0
        %2306 = vmatpush1.msra.mxu0 %v1937
        %2307 = vmatprep.subr.mxu0 0.0
        %2308 = vmatpush1.msra.mxu0 %v1938
        %2309 = vmatprep.subr.mxu0 0.0
        %2310 = vmatpush1.msra.mxu0 %v1939
        %2311 = vmatprep.subr.mxu0 0.0
        %2312 = vmatpush1.msra.mxu0 %v1940
        %2313 = vmatprep.subr.mxu0 0.0
        %2314 = vmatpush1.msra.mxu0 0.0
        %2315 = vmatprep.subr.mxu0 0.0
        %2316 = vmatpush1.msra.mxu0 0.0
        %2317 = vmatprep.subr.mxu0 0.0
        %2318 = vmatpush1.msra.mxu0 0.0
        %2319 = vmatprep.subr.mxu0 0.0
        %2320 = vmatpush1.msra.mxu0 0.0
        %2321 = vmatprep.subr.mxu0 0.0
        %2322 = vmatpush1.msra.mxu0 0.0
        %2323 = vmatprep.subr.mxu0 0.0
        %2324 = vmatpush1.msra.mxu0 0.0
        %2325 = vmatprep.subr.mxu0 0.0
        %2326 = vmatpush1.msra.mxu0 0.0
        %2327 = vmatprep.subr.mxu0 0.0
        %2328 = vmatpush1.msra.mxu0 0.0
        %2329 = vmatprep.subr.mxu0 0.0
        %2330 = vmatpush1.msra.mxu0 0.0
        %2331 = vmatprep.subr.mxu0 0.0
        %2332 = vmatpush1.msra.mxu0 0.0
        %2333 = vmatprep.subr.mxu0 0.0
        %2334 = vmatpush1.msra.mxu0 0.0
        %2335 = vmatprep.subr.mxu0 0.0
        %2336 = vmatpush1.msra.mxu0 0.0
        %2337 = vmatprep.subr.mxu0 0.0
        %2338 = vmatpush1.msra.mxu0 0.0
        %2339 = vmatprep.subr.mxu0 0.0
        %2340 = vmatpush1.msra.mxu0 0.0
        %2341 = vmatprep.subr.mxu0 0.0
        %2342 = vmatpush1.msra.mxu0 0.0
        %2343 = vmatprep.subr.mxu0 0.0
        %2344 = vmatpush1.msra.mxu0 0.0
        %2345 = vmatprep.mubr.f32.mxu0 0.0
        %2346 = vmatmul.mubr.f32.gmra.mrb[0].mxu0 %v1769
        %v2347 = vpop.f32.mrb[0].mxu0
        %v2348 = vadd.f32 %v2263, %v2347
        %v2349 = vpop.f32.mrb[0].mxu0
        %2350 = vmatprep.mubr.f32.mxu0 0.0
        %2351 = vmatmul.mubr.f32.gmra.mrb[0].mxu0 %v1778
        %v2352 = vpop.f32.mrb[0].mxu0
        %v2353 = vadd.f32 %v2268, %v2352
        %v2354 = vpop.f32.mrb[0].mxu0
        %2355 = vmatprep.mubr.f32.mxu0 0.0
        %2356 = vmatmul.mubr.f32.gmra.mrb[0].mxu0 %v1787
        %v2357 = vpop.f32.mrb[0].mxu0
        %v2358 = vadd.f32 %v2273, %v2357
        %v2359 = vpop.f32.mrb[0].mxu0
        %2360 = vmatprep.mubr.f32.mxu0 0.0
        %2361 = vmatmul.mubr.f32.gmra.mrb[0].mxu0 %v1796
        %v2362 = vpop.f32.mrb[0].mxu0
        %v2363 = vadd.f32 %v2278, %v2362
        %v2364 = vpop.f32.mrb[0].mxu0
        %2365 = vdwg.mxu0
        %2366 = vst [vmem:[%s280] sm:$0xff] %v2348
        %2367 = vst [vmem:[%s280 + $0x8] sm:$0xff] %v2353
        %2368 = vst [vmem:[%s280 + $0x10] sm:$0xff] %v2358
        %2369 = vst [vmem:[%s280 + $0x18] sm:$0xff] %v2363
        %s2370 = sand.u32 %s139, 1
        %s2371 = scalar_lea.sflag [#allocation5], %s2370
        %s2372 = sand.u32 %s139, 1
        %s2373 = smul.addr %s2372, 32
        %s2374 = scalar_lea.vmem [#allocation11], %s2373
        // Predicated region
        $region57: #{tpu_custom_call.1} parent=35 // pred_check
          %p2375 = pneg %p149
        $region58: #{tpu_custom_call.1} parent=35 // pred_check_branch
          %2377 = sbr.rel (%p2375) target = $region60
        $region59: #{tpu_custom_call.1} parent=35 // pred_region
          %s2378 = smul.u32 4, %s27
          %s2380 = ssub.s32 512, 512
          %2381 = vsyncadd %s2371, %s2380
          %s2382 = sadd.s32 %s28, %s2378
          %s2383 = smul.addr %s2382, 128
          %s2384 = scalar_lea.hbm %s4, %s2383
          %s2385 = sshll.u32 %s2374, 4
          %s2386 = int_to_ptr.vmem [resolvable:$true] %s2385
          %2391 = dma.vmem_to_hbm [thread:$0]  %s2386, 512, %s2384, %s2371, 128, 128, 8
        $region60: #{tpu_custom_call.1} parent=35 // pred_fallthru
          _
      $region36: #{tpu_custom_call.1} parent=5 // pred_fallthru
        _
      %p2392 = scmp.le.s32.totalorder 2, %s18
      // Predicated region
      $region61: #{tpu_custom_call.1} parent=5 // pred_check
        %p2393 = pneg %p2392
      $region62: #{tpu_custom_call.1} parent=5 // pred_check_branch
        %2395 = sbr.rel (%p2393) target = $region64
      $region63: #{tpu_custom_call.1} parent=5 // pred_region
        %s2396 = ssub.s32 %s18, 2
        // Predicated region
        $region65: #{tpu_custom_call.1} parent=63 // pred_check
          %p2397 = pneg %p155
        $region66: #{tpu_custom_call.1} parent=63 // pred_check_branch
          %2399 = sbr.rel (%p2397) target = $region68
        $region67: #{tpu_custom_call.1} parent=63 // pred_region
          %s2400 = sand.u32 %s140, 1
          %s2401 = scalar_lea.sflag [#allocation5], %s2400
          %s2402 = sand.u32 %s140, 1
          %s2403 = smul.addr %s2402, 32
          %s2404 = scalar_lea.vmem [#allocation11], %s2403
          %2405 = dma.done %s2401, 512
        $region68: #{tpu_custom_call.1} parent=63 // pred_fallthru
          _
      $region64: #{tpu_custom_call.1} parent=5 // pred_fallthru
        _
    $region6: #{tpu_custom_call.1} parent=1 // loop_footer
      %s22 = sadd.s32 1, %s18
    $region7: #{tpu_custom_call.1} parent=1 // loop_footer_branch
      %17 = sbr.rel target = $region3
    $region8: #{tpu_custom_call.1} parent=1 // loop_exit
      _
    %2406 = vsyncpa [#allocation4], 1
    %s2407 = scalar_lea.sflag [#allocation4], 1
    %2408 = vsyncpa %s2407, 1
    %2409 = vsyncpa [#allocation7], 1
    %2410 = vsyncpa [#allocation10], 1
    %2411 = vsyncpa [#allocation5], 1
    %s2412 = scalar_lea.sflag [#allocation5], 1
    %2413 = vsyncpa %s2412, 1

</llo_original>
